<compile_context>
chip_gen: v7x
topology: tpu7x:2x2x1
jax: 0.10.0
libtpu: 0.0.40
codegen_flags: <defaults>
</compile_context>

<pallas_src>
import math

import jax
import jax.numpy as jnp
from jax import lax
from jax.experimental import pallas as pl
from jax.experimental.pallas import tpu as pltpu


def _round_up(x, m):
    return (x + m - 1) // m * m


def _vmem_limit_bytes():
    """Scoped-VMEM budget derived from the device (v5e/v6e: 128 MiB, v7x: 64 MiB)."""
    cap = 64 * 1024 * 1024
    try:
        info = pltpu.get_tpu_info()
        cap = int(getattr(info, "vmem_capacity_bytes", cap))
    except Exception:
        pass
    # Leave headroom for the compiler; never ask for more than 96 MiB.
    return int(min(96 * 1024 * 1024, cap * 3 // 4))


def gru_chunk_kernel(xp_ref, whh_ref, bhn_ref, out_ref, h_scr):
    """One time-chunk of the GRU recurrence (PyTorch gate order r, z, n).

    xp_ref : [Tc, Bb, 3*Hp]      precomputed input projections
                                 (x @ W_ih^T + b_ih, b_hr/b_hz folded in);
                                 may be bf16 (upcast inside).
    whh_ref: [Hp, 3*Hp]          fused recurrent weights [W_hr^T | W_hz^T | W_hn^T]
    bhn_ref: [Bb, Hp]  f32       recurrent bias of the n gate (pre-broadcast)
    out_ref: [Tc, Bb, Hp] f32    per-step hidden states
    h_scr  : [Bb, Hp]  f32       hidden-state carry across time chunks
    """
    # A new batch chunk starts at time-chunk 0 -> reset the carry.
    @pl.when(pl.program_id(1) == 0)
    def _():
        h_scr[...] = jnp.zeros_like(h_scr)

    whh = whh_ref[...]            # resident weights, loaded once per chunk
    bhn = bhn_ref[...]            # pre-broadcast bias, loaded once per chunk
    hp = h_scr.shape[-1]
    t_chunk = xp_ref.shape[0]

    def step(i, h):
        xp = xp_ref[i].astype(jnp.float32)            # [Bb, 3*Hp]
        # Single fused MXU push per step: [Bb, Hp] @ [Hp, 3*Hp] -> [Bb, 3*Hp].
        g = jnp.dot(h.astype(whh.dtype), whh,
                    preferred_element_type=jnp.float32)
        r = jax.nn.sigmoid(xp[:, :hp] + g[:, :hp])
        z = jax.nn.sigmoid(xp[:, hp:2 * hp] + g[:, hp:2 * hp])
        n = jnp.tanh(xp[:, 2 * hp:] + r * (g[:, 2 * hp:] + bhn))
        h_new = (1.0 - z) * n + z * h
        out_ref[i] = h_new
        return h_new

    # Partial unroll: keeps LLO scheduling visibility without vreg spills when
    # the time chunk is large.
    h_scr[...] = lax.fori_loop(0, t_chunk, step, h_scr[...],
                               unroll=min(8, t_chunk))


def encoder_forward(tokens, params, *, time_block=None, batch_block=None,
                    matmul_dtype=jnp.bfloat16, xp_dtype=None):
    """Pallas-backed equivalent of Encoder.forward(src) (eval-mode dropout)."""
    emb_table = params["embedding"]   # [V, H]
    w_ih = params["w_ih"]             # [3H, H]  (gate order r, z, n)
    w_hh = params["w_hh"]             # [3H, H]
    b_ih = params["b_ih"]             # [3H]
    b_hh = params["b_hh"]             # [3H]

    B, T = tokens.shape
    V, H = emb_table.shape
    Hp = _round_up(H, 128)                      # lane-dense feature dim

    if xp_dtype is None:
        xp_dtype = (jnp.float32
                    if jnp.dtype(matmul_dtype) == jnp.dtype(jnp.float32)
                    else jnp.bfloat16)

    # ---- Batch tile: fill the MXU M dimension (cap at 256 for v6e/v7x 256x256
    # arrays).  With Bp >= 2*Bb the "parallel" batch axis also feeds both
    # TensorCores on v7x.
    Bb = _round_up(B, 8) if batch_block is None else _round_up(batch_block, 8)
    Bb = max(8, min(Bb, 256))
    Bp = _round_up(B, Bb)
    n_bc = Bp // Bb

    # ---- Lane-padded fused input-projection weights [H, 3*Hp]:
    # gate g occupies columns [g*Hp, g*Hp + H), padded lanes are exactly zero.
    w_ih_g = jnp.transpose(w_ih.reshape(3, H, H), (2, 0, 1))        # [in, g, out]
    w_in_pad = jnp.pad(w_ih_g, ((0, 0), (0, 0), (0, Hp - H))).reshape(H, 3 * Hp)

    b_ir, b_iz, b_in = jnp.split(b_ih, 3)
    b_hr, b_hz, b_hn = jnp.split(b_hh, 3)
    # b_hr / b_hz fold into the input projection; b_hn cannot (it sits inside
    # r * (h @ W_hn + b_hn)).
    bias_g = jnp.stack([b_ir + b_hr, b_iz + b_hz, b_in])            # [3, H]
    bias_pad = jnp.pad(bias_g, ((0, 0), (0, Hp - H))).reshape(3 * Hp)

    # ---- Hoisted input projection, produced directly in [T, B, 3*Hp] order.
    # Dropout is identity in eval mode, so folding it away is exact.
    # TODO(synk): training-mode dropout is stochastic and cannot match PyTorch
    # RNG bit-for-bit; implemented as identity (eval mode) only.
    if V <= B * T:
        # Eval-mode fusion: project the embedding table once, gather rows.
        table = jnp.dot(emb_table.astype(jnp.float32), w_in_pad,
                        preferred_element_type=jnp.float32) + bias_pad   # [V, 3*Hp]
        xp_tb = jnp.take(table, tokens.T, axis=0)                        # [T, B, 3*Hp]
    else:
        x_tb = jnp.take(emb_table, tokens.T, axis=0).astype(jnp.float32) # [T, B, H]
        xp_tb = (jnp.dot(x_tb.reshape(T * B, H), w_in_pad,
                         preferred_element_type=jnp.float32)
                 + bias_pad).reshape(T, B, 3 * Hp)

    # ---- Time tile derived from the per-generation VMEM budget.
    vmem_limit = _vmem_limit_bytes()
    xp_isz = jnp.dtype(xp_dtype).itemsize
    mm_isz = jnp.dtype(matmul_dtype).itemsize
    per_step = 2 * Bb * 3 * Hp * xp_isz + 2 * Bb * Hp * 4   # dbl-buffered xp + out
    fixed = (2 * Hp * 3 * Hp * mm_isz          # whh (worst case double-buffered)
             + 2 * Bb * Hp * 4                 # bhn
             + Bb * Hp * 4                     # h carry scratch
             + (4 << 20))                      # headroom
    if time_block is None:
        Tc = int(max(1, min(64, (vmem_limit - fixed) // per_step)))
        Tc = min(Tc, T)
    else:
        Tc = int(time_block)
    Tp = _round_up(T, Tc)
    n_tc = Tp // Tc

    # Tail padding of the small [T, B, .] activation only when actually needed.
    if Tp != T or Bp != B:
        xp_tb = jnp.pad(xp_tb, ((0, Tp - T), (0, Bp - B), (0, 0)))
    xp = xp_tb.astype(xp_dtype)

    # ---- Fused, pre-transposed recurrent weights: [Hp, 3*Hp] (padded lanes zero).
    whh = jnp.transpose(w_hh.reshape(3, H, H), (2, 0, 1))            # [in, g, out]
    whh = jnp.pad(whh, ((0, Hp - H), (0, 0), (0, Hp - H)))
    whh = whh.reshape(Hp, 3 * Hp).astype(matmul_dtype)

    # Pre-broadcast n-gate recurrent bias once (no per-step broadcast_in_dim).
    bhn = jnp.broadcast_to(jnp.pad(b_hn, (0, Hp - H))[None, :], (Bb, Hp))
    bhn = bhn.astype(jnp.float32)

    def _call(single_buffer_residents):
        res_kw = {}
        if single_buffer_residents and hasattr(pl, "Buffered"):
            res_kw = dict(pipeline_mode=pl.Buffered(1))
        grid_spec = pltpu.PrefetchScalarGridSpec(
            num_scalar_prefetch=0,
            grid=(n_bc, n_tc),                       # (batch chunks, time chunks)
            in_specs=[
                pl.BlockSpec((Tc, Bb, 3 * Hp), lambda b, c: (c, b, 0)),
                pl.BlockSpec((Hp, 3 * Hp), lambda b, c: (0, 0), **res_kw),  # resident
                pl.BlockSpec((Bb, Hp), lambda b, c: (0, 0), **res_kw),      # resident
            ],
            out_specs=pl.BlockSpec((Tc, Bb, Hp), lambda b, c: (c, b, 0)),
            scratch_shapes=[pltpu.VMEM((Bb, Hp), jnp.float32)],
        )
        out = pl.pallas_call(
            gru_chunk_kernel,
            out_shape=jax.ShapeDtypeStruct((Tp, Bp, Hp), jnp.float32),
            grid_spec=grid_spec,
            compiler_params=pltpu.CompilerParams(
                dimension_semantics=("parallel", "arbitrary"),
                vmem_limit_bytes=vmem_limit),
        )(xp, whh, bhn)
        return jax.block_until_ready(out)

    try:
        out_tm = _call(True)
    except Exception:
        # pipeline_mode=Buffered(1) not supported on this jax version; the
        # default double-buffered resident blocks are still correct.
        out_tm = _call(False)

    outputs = jnp.transpose(out_tm[:T, :B, :H], (1, 0, 2))   # [B, T, H] batch_first
    # hidden assumes full-length sequences (no packed/variable-length batching),
    # matching torch.nn.GRU with default h0=0 and num_layers=1.
    hidden = outputs[:, -1, :][None, :, :]                   # [1, B, H]
    return outputs, hidden


def encoder_reference(tokens, params):
    """Pure-JAX reference mirroring torch.nn.GRU semantics (for validation)."""
    emb_table = params["embedding"]
    w_ih, w_hh = params["w_ih"], params["w_hh"]
    b_ih, b_hh = params["b_ih"], params["b_hh"]
    B, T = tokens.shape
    x = jnp.take(emb_table, tokens, axis=0)  # [B, T, H]
    H = emb_table.shape[1]

    w_ir, w_iz, w_in = jnp.split(w_ih, 3, axis=0)
    w_hr, w_hz, w_hn = jnp.split(w_hh, 3, axis=0)
    b_ir, b_iz, b_in = jnp.split(b_ih, 3)
    b_hr, b_hz, b_hn = jnp.split(b_hh, 3)

    def step(h, x_t):
        r = jax.nn.sigmoid(x_t @ w_ir.T + b_ir + h @ w_hr.T + b_hr)
        z = jax.nn.sigmoid(x_t @ w_iz.T + b_iz + h @ w_hz.T + b_hz)
        n = jnp.tanh(x_t @ w_in.T + b_in + r * (h @ w_hn.T + b_hn))
        h_new = (1.0 - z) * n + z * h
        return h_new, h_new

    h0 = jnp.zeros((B, H), jnp.float32)
    h_last, outs = lax.scan(step, h0, jnp.transpose(x, (1, 0, 2)))
    return jnp.transpose(outs, (1, 0, 2)), h_last[None, :, :]


if __name__ == "__main__":
    V, H, B, T = 16, 32, 2, 8   # input_size=16, hidden_size=32, batch=2, seq=8

    key = jax.random.PRNGKey(0)
    k_emb, k_wih, k_whh, k_bih, k_bhh, k_tok = jax.random.split(key, 6)
    bound = 1.0 / math.sqrt(H)

    params = {
        "embedding": jax.random.normal(k_emb, (V, H), jnp.float32),
        "w_ih": jax.random.uniform(k_wih, (3 * H, H), jnp.float32, -bound, bound),
        "w_hh": jax.random.uniform(k_whh, (3 * H, H), jnp.float32, -bound, bound),
        "b_ih": jax.random.uniform(k_bih, (3 * H,), jnp.float32, -bound, bound),
        "b_hh": jax.random.uniform(k_bhh, (3 * H,), jnp.float32, -bound, bound),
    }
    tokens = jax.random.randint(k_tok, (B, T), 0, V, dtype=jnp.int32)

    ref_out, ref_hid = encoder_reference(tokens, params)

    # Exact path: f32 recurrent matmul + f32 xp stream.
    out_f32, hid_f32 = encoder_forward(tokens, params,
                                       matmul_dtype=jnp.float32)
    jax.block_until_ready((out_f32, hid_f32))
    assert out_f32.shape == (B, T, H) and hid_f32.shape == (1, B, H)
    assert jnp.allclose(out_f32, ref_out, atol=1e-4, rtol=1e-4)
    assert jnp.allclose(hid_f32, ref_hid, atol=1e-4, rtol=1e-4)

    # Performance path: bf16 MXU operands + bf16 xp stream, f32 accumulation
    # and f32 hidden-state carry.
    out_bf, hid_bf = encoder_forward(tokens, params,
                                     matmul_dtype=jnp.bfloat16)
    jax.block_until_ready((out_bf, hid_bf))
    assert out_bf.shape == (B, T, H) and hid_bf.shape == (1, B, H)
    assert jnp.allclose(out_bf, ref_out, atol=5e-2, rtol=0)
    assert jnp.allclose(hid_bf, ref_hid, atol=5e-2, rtol=0)

    print("KERNEL_OK")
</pallas_src>

<mosaic_0001>
module attributes {stable_mosaic.version = 11 : i64} {
  func.func @gru_chunk_kernel(%arg0: i32, %arg1: i32, %arg2: memref<8x8x384xf32, #tpu.memory_space<vmem>>, %arg3: memref<128x384xf32, #tpu.memory_space<vmem>>, %arg4: memref<8x128xf32, #tpu.memory_space<vmem>>, %arg5: memref<8x8x128xf32, #tpu.memory_space<vmem>>, %arg6: memref<8x128xf32, #tpu.memory_space<vmem>>) attributes {dimension_semantics = [#tpu.dimension_semantics<parallel>, #tpu.dimension_semantics<arbitrary>], iteration_bounds = array<i64: 1, 1>, scalar_prefetch = 0 : i64, scratch_operands = 1 : i64, tpu.core_type = #tpu.core_type<tc>, window_params = [{transform_indices = @transform_0, window_bounds = array<i64: 8, 8, 384>}, {pipeline_mode = #tpu.pipeline_mode<synchronous>, transform_indices = @transform_1, window_bounds = array<i64: 128, 384>}, {pipeline_mode = #tpu.pipeline_mode<synchronous>, transform_indices = @transform_2, window_bounds = array<i64: 8, 128>}, {transform_indices = @transform_3, window_bounds = array<i64: 8, 8, 128>}]} {
    %c0_i32 = arith.constant 0 : i32
    %0 = arith.cmpi eq, %arg1, %c0_i32 : i32
    %1 = arith.extui %0 : i1 to i32
    %c0_i32_0 = arith.constant 0 : i32
    %2 = arith.cmpi ne, %1, %c0_i32_0 : i32
    scf.if %2 {
      %cst_72 = arith.constant 0.000000e+00 : f32
      %287 = vector.broadcast %cst_72 : f32 to vector<8x128xf32>
      %c0_73 = arith.constant 0 : index
      %c0_74 = arith.constant 0 : index
      %288 = vector.load %arg6[%c0_73, %c0_74] : memref<8x128xf32, #tpu.memory_space<vmem>>, vector<8x128xf32>
      tpu.vector_store %arg6[%c0_73, %c0_74], %287 {strides = array<i32>} : memref<8x128xf32, #tpu.memory_space<vmem>>, vector<8x128xf32>,
    } else {
    }
    %c0 = arith.constant 0 : index
    %c0_1 = arith.constant 0 : index
    %3 = vector.load %arg3[%c0, %c0_1] : memref<128x384xf32, #tpu.memory_space<vmem>>, vector<128x384xf32>
    %c0_2 = arith.constant 0 : index
    %c0_3 = arith.constant 0 : index
    %4 = vector.load %arg4[%c0_2, %c0_3] : memref<8x128xf32, #tpu.memory_space<vmem>>, vector<8x128xf32>
    %c0_4 = arith.constant 0 : index
    %c0_5 = arith.constant 0 : index
    %5 = vector.load %arg6[%c0_4, %c0_5] : memref<8x128xf32, #tpu.memory_space<vmem>>, vector<8x128xf32>
    %c0_i32_6 = arith.constant 0 : i32
    %6 = arith.index_cast %c0_i32_6 : i32 to index
    %c0_7 = arith.constant 0 : index
    %c0_8 = arith.constant 0 : index
    %7 = vector.load %arg2[%6, %c0_7, %c0_8] : memref<8x8x384xf32, #tpu.memory_space<vmem>>, vector<1x8x384xf32>
    %8 = vector.shape_cast %7 : vector<1x8x384xf32> to vector<8x384xf32>
    %cst = arith.constant dense<0.000000e+00> : vector<8x384xf32>
    %9 = tpu.matmul %5, %3, %cst {dimension_numbers = #tpu.dot_dimension_numbers<[1], [0], [0], [1], [0, 0, 1, 1], [], []>} : vector<8x128xf32>, vector<128x384xf32>, vector<8x384xf32> -> vector<8x384xf32>
    %10 = vector.extract_strided_slice %8 {offsets = [0, 0], sizes = [8, 128], strides = [1, 1]} : vector<8x384xf32> to vector<8x128xf32>
    %11 = vector.extract_strided_slice %9 {offsets = [0, 0], sizes = [8, 128], strides = [1, 1]} : vector<8x384xf32> to vector<8x128xf32>
    %12 = arith.addf %10, %11 : vector<8x128xf32>
    %13 = arith.negf %12 : vector<8x128xf32>
    %14 = math.exp %13 : vector<8x128xf32>
    %cst_9 = arith.constant 1.000000e+00 : f32
    %15 = vector.broadcast %cst_9 : f32 to vector<8x128xf32>
    %16 = arith.addf %15, %14 : vector<8x128xf32>
    %17 = arith.divf %15, %16 : vector<8x128xf32>
    %18 = vector.extract_strided_slice %8 {offsets = [0, 128], sizes = [8, 128], strides = [1, 1]} : vector<8x384xf32> to vector<8x128xf32>
    %19 = vector.extract_strided_slice %9 {offsets = [0, 128], sizes = [8, 128], strides = [1, 1]} : vector<8x384xf32> to vector<8x128xf32>
    %20 = arith.addf %18, %19 : vector<8x128xf32>
    %21 = arith.negf %20 : vector<8x128xf32>
    %22 = math.exp %21 : vector<8x128xf32>
    %cst_10 = arith.constant 1.000000e+00 : f32
    %23 = vector.broadcast %cst_10 : f32 to vector<8x128xf32>
    %24 = arith.addf %23, %22 : vector<8x128xf32>
    %25 = arith.divf %23, %24 : vector<8x128xf32>
    %26 = vector.extract_strided_slice %8 {offsets = [0, 256], sizes = [8, 128], strides = [1, 1]} : vector<8x384xf32> to vector<8x128xf32>
    %27 = vector.extract_strided_slice %9 {offsets = [0, 256], sizes = [8, 128], strides = [1, 1]} : vector<8x384xf32> to vector<8x128xf32>
    %28 = arith.addf %27, %4 : vector<8x128xf32>
    %29 = arith.mulf %17, %28 : vector<8x128xf32>
    %30 = arith.addf %26, %29 : vector<8x128xf32>
    %31 = math.tanh %30 : vector<8x128xf32>
    %cst_11 = arith.constant 1.000000e+00 : f32
    %32 = vector.broadcast %cst_11 : f32 to vector<8x128xf32>
    %33 = arith.subf %32, %25 : vector<8x128xf32>
    %34 = arith.mulf %33, %31 : vector<8x128xf32>
    %35 = arith.mulf %25, %5 : vector<8x128xf32>
    %36 = arith.addf %34, %35 : vector<8x128xf32>
    %37 = arith.index_cast %c0_i32_6 : i32 to index
    %c0_12 = arith.constant 0 : index
    %c0_13 = arith.constant 0 : index
    %38 = vector.load %arg5[%37, %c0_12, %c0_13] : memref<8x8x128xf32, #tpu.memory_space<vmem>>, vector<1x8x128xf32>
    %39 = vector.shape_cast %38 : vector<1x8x128xf32> to vector<8x128xf32>
    %40 = vector.shape_cast %36 : vector<8x128xf32> to vector<1x8x128xf32>
    tpu.vector_store %arg5[%37, %c0_12, %c0_13], %40 {strides = array<i32>} : memref<8x8x128xf32, #tpu.memory_space<vmem>>, vector<1x8x128xf32>,
    %c1_i32 = arith.constant 1 : i32
    %41 = arith.index_cast %c1_i32 : i32 to index
    %c0_14 = arith.constant 0 : index
    %c0_15 = arith.constant 0 : index
    %42 = vector.load %arg2[%41, %c0_14, %c0_15] : memref<8x8x384xf32, #tpu.memory_space<vmem>>, vector<1x8x384xf32>
    %43 = vector.shape_cast %42 : vector<1x8x384xf32> to vector<8x384xf32>
    %cst_16 = arith.constant dense<0.000000e+00> : vector<8x384xf32>
    %44 = tpu.matmul %36, %3, %cst_16 {dimension_numbers = #tpu.dot_dimension_numbers<[1], [0], [0], [1], [0, 0, 1, 1], [], []>} : vector<8x128xf32>, vector<128x384xf32>, vector<8x384xf32> -> vector<8x384xf32>
    %45 = vector.extract_strided_slice %43 {offsets = [0, 0], sizes = [8, 128], strides = [1, 1]} : vector<8x384xf32> to vector<8x128xf32>
    %46 = vector.extract_strided_slice %44 {offsets = [0, 0], sizes = [8, 128], strides = [1, 1]} : vector<8x384xf32> to vector<8x128xf32>
    %47 = arith.addf %45, %46 : vector<8x128xf32>
    %48 = arith.negf %47 : vector<8x128xf32>
    %49 = math.exp %48 : vector<8x128xf32>
    %cst_17 = arith.constant 1.000000e+00 : f32
    %50 = vector.broadcast %cst_17 : f32 to vector<8x128xf32>
    %51 = arith.addf %50, %49 : vector<8x128xf32>
    %52 = arith.divf %50, %51 : vector<8x128xf32>
    %53 = vector.extract_strided_slice %43 {offsets = [0, 128], sizes = [8, 128], strides = [1, 1]} : vector<8x384xf32> to vector<8x128xf32>
    %54 = vector.extract_strided_slice %44 {offsets = [0, 128], sizes = [8, 128], strides = [1, 1]} : vector<8x384xf32> to vector<8x128xf32>
    %55 = arith.addf %53, %54 : vector<8x128xf32>
    %56 = arith.negf %55 : vector<8x128xf32>
    %57 = math.exp %56 : vector<8x128xf32>
    %cst_18 = arith.constant 1.000000e+00 : f32
    %58 = vector.broadcast %cst_18 : f32 to vector<8x128xf32>
    %59 = arith.addf %58, %57 : vector<8x128xf32>
    %60 = arith.divf %58, %59 : vector<8x128xf32>
    %61 = vector.extract_strided_slice %43 {offsets = [0, 256], sizes = [8, 128], strides = [1, 1]} : vector<8x384xf32> to vector<8x128xf32>
    %62 = vector.extract_strided_slice %44 {offsets = [0, 256], sizes = [8, 128], strides = [1, 1]} : vector<8x384xf32> to vector<8x128xf32>
    %63 = arith.addf %62, %4 : vector<8x128xf32>
    %64 = arith.mulf %52, %63 : vector<8x128xf32>
    %65 = arith.addf %61, %64 : vector<8x128xf32>
    %66 = math.tanh %65 : vector<8x128xf32>
    %cst_19 = arith.constant 1.000000e+00 : f32
    %67 = vector.broadcast %cst_19 : f32 to vector<8x128xf32>
    %68 = arith.subf %67, %60 : vector<8x128xf32>
    %69 = arith.mulf %68, %66 : vector<8x128xf32>
    %70 = arith.mulf %60, %36 : vector<8x128xf32>
    %71 = arith.addf %69, %70 : vector<8x128xf32>
    %72 = arith.index_cast %c1_i32 : i32 to index
    %c0_20 = arith.constant 0 : index
    %c0_21 = arith.constant 0 : index
    %73 = vector.load %arg5[%72, %c0_20, %c0_21] : memref<8x8x128xf32, #tpu.memory_space<vmem>>, vector<1x8x128xf32>
    %74 = vector.shape_cast %73 : vector<1x8x128xf32> to vector<8x128xf32>
    %75 = vector.shape_cast %71 : vector<8x128xf32> to vector<1x8x128xf32>
    tpu.vector_store %arg5[%72, %c0_20, %c0_21], %75 {strides = array<i32>} : memref<8x8x128xf32, #tpu.memory_space<vmem>>, vector<1x8x128xf32>,
    %c2_i32 = arith.constant 2 : i32
    %76 = arith.index_cast %c2_i32 : i32 to index
    %c0_22 = arith.constant 0 : index
    %c0_23 = arith.constant 0 : index
    %77 = vector.load %arg2[%76, %c0_22, %c0_23] : memref<8x8x384xf32, #tpu.memory_space<vmem>>, vector<1x8x384xf32>
    %78 = vector.shape_cast %77 : vector<1x8x384xf32> to vector<8x384xf32>
    %cst_24 = arith.constant dense<0.000000e+00> : vector<8x384xf32>
    %79 = tpu.matmul %71, %3, %cst_24 {dimension_numbers = #tpu.dot_dimension_numbers<[1], [0], [0], [1], [0, 0, 1, 1], [], []>} : vector<8x128xf32>, vector<128x384xf32>, vector<8x384xf32> -> vector<8x384xf32>
    %80 = vector.extract_strided_slice %78 {offsets = [0, 0], sizes = [8, 128], strides = [1, 1]} : vector<8x384xf32> to vector<8x128xf32>
    %81 = vector.extract_strided_slice %79 {offsets = [0, 0], sizes = [8, 128], strides = [1, 1]} : vector<8x384xf32> to vector<8x128xf32>
    %82 = arith.addf %80, %81 : vector<8x128xf32>
    %83 = arith.negf %82 : vector<8x128xf32>
    %84 = math.exp %83 : vector<8x128xf32>
    %cst_25 = arith.constant 1.000000e+00 : f32
    %85 = vector.broadcast %cst_25 : f32 to vector<8x128xf32>
    %86 = arith.addf %85, %84 : vector<8x128xf32>
    %87 = arith.divf %85, %86 : vector<8x128xf32>
    %88 = vector.extract_strided_slice %78 {offsets = [0, 128], sizes = [8, 128], strides = [1, 1]} : vector<8x384xf32> to vector<8x128xf32>
    %89 = vector.extract_strided_slice %79 {offsets = [0, 128], sizes = [8, 128], strides = [1, 1]} : vector<8x384xf32> to vector<8x128xf32>
    %90 = arith.addf %88, %89 : vector<8x128xf32>
    %91 = arith.negf %90 : vector<8x128xf32>
    %92 = math.exp %91 : vector<8x128xf32>
    %cst_26 = arith.constant 1.000000e+00 : f32
    %93 = vector.broadcast %cst_26 : f32 to vector<8x128xf32>
    %94 = arith.addf %93, %92 : vector<8x128xf32>
    %95 = arith.divf %93, %94 : vector<8x128xf32>
    %96 = vector.extract_strided_slice %78 {offsets = [0, 256], sizes = [8, 128], strides = [1, 1]} : vector<8x384xf32> to vector<8x128xf32>
    %97 = vector.extract_strided_slice %79 {offsets = [0, 256], sizes = [8, 128], strides = [1, 1]} : vector<8x384xf32> to vector<8x128xf32>
    %98 = arith.addf %97, %4 : vector<8x128xf32>
    %99 = arith.mulf %87, %98 : vector<8x128xf32>
    %100 = arith.addf %96, %99 : vector<8x128xf32>
    %101 = math.tanh %100 : vector<8x128xf32>
    %cst_27 = arith.constant 1.000000e+00 : f32
    %102 = vector.broadcast %cst_27 : f32 to vector<8x128xf32>
    %103 = arith.subf %102, %95 : vector<8x128xf32>
    %104 = arith.mulf %103, %101 : vector<8x128xf32>
    %105 = arith.mulf %95, %71 : vector<8x128xf32>
    %106 = arith.addf %104, %105 : vector<8x128xf32>
    %107 = arith.index_cast %c2_i32 : i32 to index
    %c0_28 = arith.constant 0 : index
    %c0_29 = arith.constant 0 : index
    %108 = vector.load %arg5[%107, %c0_28, %c0_29] : memref<8x8x128xf32, #tpu.memory_space<vmem>>, vector<1x8x128xf32>
    %109 = vector.shape_cast %108 : vector<1x8x128xf32> to vector<8x128xf32>
    %110 = vector.shape_cast %106 : vector<8x128xf32> to vector<1x8x128xf32>
    tpu.vector_store %arg5[%107, %c0_28, %c0_29], %110 {strides = array<i32>} : memref<8x8x128xf32, #tpu.memory_space<vmem>>, vector<1x8x128xf32>,
    %c3_i32 = arith.constant 3 : i32
    %111 = arith.index_cast %c3_i32 : i32 to index
    %c0_30 = arith.constant 0 : index
    %c0_31 = arith.constant 0 : index
    %112 = vector.load %arg2[%111, %c0_30, %c0_31] : memref<8x8x384xf32, #tpu.memory_space<vmem>>, vector<1x8x384xf32>
    %113 = vector.shape_cast %112 : vector<1x8x384xf32> to vector<8x384xf32>
    %cst_32 = arith.constant dense<0.000000e+00> : vector<8x384xf32>
    %114 = tpu.matmul %106, %3, %cst_32 {dimension_numbers = #tpu.dot_dimension_numbers<[1], [0], [0], [1], [0, 0, 1, 1], [], []>} : vector<8x128xf32>, vector<128x384xf32>, vector<8x384xf32> -> vector<8x384xf32>
    %115 = vector.extract_strided_slice %113 {offsets = [0, 0], sizes = [8, 128], strides = [1, 1]} : vector<8x384xf32> to vector<8x128xf32>
    %116 = vector.extract_strided_slice %114 {offsets = [0, 0], sizes = [8, 128], strides = [1, 1]} : vector<8x384xf32> to vector<8x128xf32>
    %117 = arith.addf %115, %116 : vector<8x128xf32>
    %118 = arith.negf %117 : vector<8x128xf32>
    %119 = math.exp %118 : vector<8x128xf32>
    %cst_33 = arith.constant 1.000000e+00 : f32
    %120 = vector.broadcast %cst_33 : f32 to vector<8x128xf32>
    %121 = arith.addf %120, %119 : vector<8x128xf32>
    %122 = arith.divf %120, %121 : vector<8x128xf32>
    %123 = vector.extract_strided_slice %113 {offsets = [0, 128], sizes = [8, 128], strides = [1, 1]} : vector<8x384xf32> to vector<8x128xf32>
    %124 = vector.extract_strided_slice %114 {offsets = [0, 128], sizes = [8, 128], strides = [1, 1]} : vector<8x384xf32> to vector<8x128xf32>
    %125 = arith.addf %123, %124 : vector<8x128xf32>
    %126 = arith.negf %125 : vector<8x128xf32>
    %127 = math.exp %126 : vector<8x128xf32>
    %cst_34 = arith.constant 1.000000e+00 : f32
    %128 = vector.broadcast %cst_34 : f32 to vector<8x128xf32>
    %129 = arith.addf %128, %127 : vector<8x128xf32>
    %130 = arith.divf %128, %129 : vector<8x128xf32>
    %131 = vector.extract_strided_slice %113 {offsets = [0, 256], sizes = [8, 128], strides = [1, 1]} : vector<8x384xf32> to vector<8x128xf32>
    %132 = vector.extract_strided_slice %114 {offsets = [0, 256], sizes = [8, 128], strides = [1, 1]} : vector<8x384xf32> to vector<8x128xf32>
    %133 = arith.addf %132, %4 : vector<8x128xf32>
    %134 = arith.mulf %122, %133 : vector<8x128xf32>
    %135 = arith.addf %131, %134 : vector<8x128xf32>
    %136 = math.tanh %135 : vector<8x128xf32>
    %cst_35 = arith.constant 1.000000e+00 : f32
    %137 = vector.broadcast %cst_35 : f32 to vector<8x128xf32>
    %138 = arith.subf %137, %130 : vector<8x128xf32>
    %139 = arith.mulf %138, %136 : vector<8x128xf32>
    %140 = arith.mulf %130, %106 : vector<8x128xf32>
    %141 = arith.addf %139, %140 : vector<8x128xf32>
    %142 = arith.index_cast %c3_i32 : i32 to index
    %c0_36 = arith.constant 0 : index
    %c0_37 = arith.constant 0 : index
    %143 = vector.load %arg5[%142, %c0_36, %c0_37] : memref<8x8x128xf32, #tpu.memory_space<vmem>>, vector<1x8x128xf32>
    %144 = vector.shape_cast %143 : vector<1x8x128xf32> to vector<8x128xf32>
    %145 = vector.shape_cast %141 : vector<8x128xf32> to vector<1x8x128xf32>
    tpu.vector_store %arg5[%142, %c0_36, %c0_37], %145 {strides = array<i32>} : memref<8x8x128xf32, #tpu.memory_space<vmem>>, vector<1x8x128xf32>,
    %c4_i32 = arith.constant 4 : i32
    %146 = arith.index_cast %c4_i32 : i32 to index
    %c0_38 = arith.constant 0 : index
    %c0_39 = arith.constant 0 : index
    %147 = vector.load %arg2[%146, %c0_38, %c0_39] : memref<8x8x384xf32, #tpu.memory_space<vmem>>, vector<1x8x384xf32>
    %148 = vector.shape_cast %147 : vector<1x8x384xf32> to vector<8x384xf32>
    %cst_40 = arith.constant dense<0.000000e+00> : vector<8x384xf32>
    %149 = tpu.matmul %141, %3, %cst_40 {dimension_numbers = #tpu.dot_dimension_numbers<[1], [0], [0], [1], [0, 0, 1, 1], [], []>} : vector<8x128xf32>, vector<128x384xf32>, vector<8x384xf32> -> vector<8x384xf32>
    %150 = vector.extract_strided_slice %148 {offsets = [0, 0], sizes = [8, 128], strides = [1, 1]} : vector<8x384xf32> to vector<8x128xf32>
    %151 = vector.extract_strided_slice %149 {offsets = [0, 0], sizes = [8, 128], strides = [1, 1]} : vector<8x384xf32> to vector<8x128xf32>
    %152 = arith.addf %150, %151 : vector<8x128xf32>
    %153 = arith.negf %152 : vector<8x128xf32>
    %154 = math.exp %153 : vector<8x128xf32>
    %cst_41 = arith.constant 1.000000e+00 : f32
    %155 = vector.broadcast %cst_41 : f32 to vector<8x128xf32>
    %156 = arith.addf %155, %154 : vector<8x128xf32>
    %157 = arith.divf %155, %156 : vector<8x128xf32>
    %158 = vector.extract_strided_slice %148 {offsets = [0, 128], sizes = [8, 128], strides = [1, 1]} : vector<8x384xf32> to vector<8x128xf32>
    %159 = vector.extract_strided_slice %149 {offsets = [0, 128], sizes = [8, 128], strides = [1, 1]} : vector<8x384xf32> to vector<8x128xf32>
    %160 = arith.addf %158, %159 : vector<8x128xf32>
    %161 = arith.negf %160 : vector<8x128xf32>
    %162 = math.exp %161 : vector<8x128xf32>
    %cst_42 = arith.constant 1.000000e+00 : f32
    %163 = vector.broadcast %cst_42 : f32 to vector<8x128xf32>
    %164 = arith.addf %163, %162 : vector<8x128xf32>
    %165 = arith.divf %163, %164 : vector<8x128xf32>
    %166 = vector.extract_strided_slice %148 {offsets = [0, 256], sizes = [8, 128], strides = [1, 1]} : vector<8x384xf32> to vector<8x128xf32>
    %167 = vector.extract_strided_slice %149 {offsets = [0, 256], sizes = [8, 128], strides = [1, 1]} : vector<8x384xf32> to vector<8x128xf32>
    %168 = arith.addf %167, %4 : vector<8x128xf32>
    %169 = arith.mulf %157, %168 : vector<8x128xf32>
    %170 = arith.addf %166, %169 : vector<8x128xf32>
    %171 = math.tanh %170 : vector<8x128xf32>
    %cst_43 = arith.constant 1.000000e+00 : f32
    %172 = vector.broadcast %cst_43 : f32 to vector<8x128xf32>
    %173 = arith.subf %172, %165 : vector<8x128xf32>
    %174 = arith.mulf %173, %171 : vector<8x128xf32>
    %175 = arith.mulf %165, %141 : vector<8x128xf32>
    %176 = arith.addf %174, %175 : vector<8x128xf32>
    %177 = arith.index_cast %c4_i32 : i32 to index
    %c0_44 = arith.constant 0 : index
    %c0_45 = arith.constant 0 : index
    %178 = vector.load %arg5[%177, %c0_44, %c0_45] : memref<8x8x128xf32, #tpu.memory_space<vmem>>, vector<1x8x128xf32>
    %179 = vector.shape_cast %178 : vector<1x8x128xf32> to vector<8x128xf32>
    %180 = vector.shape_cast %176 : vector<8x128xf32> to vector<1x8x128xf32>
    tpu.vector_store %arg5[%177, %c0_44, %c0_45], %180 {strides = array<i32>} : memref<8x8x128xf32, #tpu.memory_space<vmem>>, vector<1x8x128xf32>,
    %c5_i32 = arith.constant 5 : i32
    %181 = arith.index_cast %c5_i32 : i32 to index
    %c0_46 = arith.constant 0 : index
    %c0_47 = arith.constant 0 : index
    %182 = vector.load %arg2[%181, %c0_46, %c0_47] : memref<8x8x384xf32, #tpu.memory_space<vmem>>, vector<1x8x384xf32>
    %183 = vector.shape_cast %182 : vector<1x8x384xf32> to vector<8x384xf32>
    %cst_48 = arith.constant dense<0.000000e+00> : vector<8x384xf32>
    %184 = tpu.matmul %176, %3, %cst_48 {dimension_numbers = #tpu.dot_dimension_numbers<[1], [0], [0], [1], [0, 0, 1, 1], [], []>} : vector<8x128xf32>, vector<128x384xf32>, vector<8x384xf32> -> vector<8x384xf32>
    %185 = vector.extract_strided_slice %183 {offsets = [0, 0], sizes = [8, 128], strides = [1, 1]} : vector<8x384xf32> to vector<8x128xf32>
    %186 = vector.extract_strided_slice %184 {offsets = [0, 0], sizes = [8, 128], strides = [1, 1]} : vector<8x384xf32> to vector<8x128xf32>
    %187 = arith.addf %185, %186 : vector<8x128xf32>
    %188 = arith.negf %187 : vector<8x128xf32>
    %189 = math.exp %188 : vector<8x128xf32>
    %cst_49 = arith.constant 1.000000e+00 : f32
    %190 = vector.broadcast %cst_49 : f32 to vector<8x128xf32>
    %191 = arith.addf %190, %189 : vector<8x128xf32>
    %192 = arith.divf %190, %191 : vector<8x128xf32>
    %193 = vector.extract_strided_slice %183 {offsets = [0, 128], sizes = [8, 128], strides = [1, 1]} : vector<8x384xf32> to vector<8x128xf32>
    %194 = vector.extract_strided_slice %184 {offsets = [0, 128], sizes = [8, 128], strides = [1, 1]} : vector<8x384xf32> to vector<8x128xf32>
    %195 = arith.addf %193, %194 : vector<8x128xf32>
    %196 = arith.negf %195 : vector<8x128xf32>
    %197 = math.exp %196 : vector<8x128xf32>
    %cst_50 = arith.constant 1.000000e+00 : f32
    %198 = vector.broadcast %cst_50 : f32 to vector<8x128xf32>
    %199 = arith.addf %198, %197 : vector<8x128xf32>
    %200 = arith.divf %198, %199 : vector<8x128xf32>
    %201 = vector.extract_strided_slice %183 {offsets = [0, 256], sizes = [8, 128], strides = [1, 1]} : vector<8x384xf32> to vector<8x128xf32>
    %202 = vector.extract_strided_slice %184 {offsets = [0, 256], sizes = [8, 128], strides = [1, 1]} : vector<8x384xf32> to vector<8x128xf32>
    %203 = arith.addf %202, %4 : vector<8x128xf32>
    %204 = arith.mulf %192, %203 : vector<8x128xf32>
    %205 = arith.addf %201, %204 : vector<8x128xf32>
    %206 = math.tanh %205 : vector<8x128xf32>
    %cst_51 = arith.constant 1.000000e+00 : f32
    %207 = vector.broadcast %cst_51 : f32 to vector<8x128xf32>
    %208 = arith.subf %207, %200 : vector<8x128xf32>
    %209 = arith.mulf %208, %206 : vector<8x128xf32>
    %210 = arith.mulf %200, %176 : vector<8x128xf32>
    %211 = arith.addf %209, %210 : vector<8x128xf32>
    %212 = arith.index_cast %c5_i32 : i32 to index
    %c0_52 = arith.constant 0 : index
    %c0_53 = arith.constant 0 : index
    %213 = vector.load %arg5[%212, %c0_52, %c0_53] : memref<8x8x128xf32, #tpu.memory_space<vmem>>, vector<1x8x128xf32>
    %214 = vector.shape_cast %213 : vector<1x8x128xf32> to vector<8x128xf32>
    %215 = vector.shape_cast %211 : vector<8x128xf32> to vector<1x8x128xf32>
    tpu.vector_store %arg5[%212, %c0_52, %c0_53], %215 {strides = array<i32>} : memref<8x8x128xf32, #tpu.memory_space<vmem>>, vector<1x8x128xf32>,
    %c6_i32 = arith.constant 6 : i32
    %216 = arith.index_cast %c6_i32 : i32 to index
    %c0_54 = arith.constant 0 : index
    %c0_55 = arith.constant 0 : index
    %217 = vector.load %arg2[%216, %c0_54, %c0_55] : memref<8x8x384xf32, #tpu.memory_space<vmem>>, vector<1x8x384xf32>
    %218 = vector.shape_cast %217 : vector<1x8x384xf32> to vector<8x384xf32>
    %cst_56 = arith.constant dense<0.000000e+00> : vector<8x384xf32>
    %219 = tpu.matmul %211, %3, %cst_56 {dimension_numbers = #tpu.dot_dimension_numbers<[1], [0], [0], [1], [0, 0, 1, 1], [], []>} : vector<8x128xf32>, vector<128x384xf32>, vector<8x384xf32> -> vector<8x384xf32>
    %220 = vector.extract_strided_slice %218 {offsets = [0, 0], sizes = [8, 128], strides = [1, 1]} : vector<8x384xf32> to vector<8x128xf32>
    %221 = vector.extract_strided_slice %219 {offsets = [0, 0], sizes = [8, 128], strides = [1, 1]} : vector<8x384xf32> to vector<8x128xf32>
    %222 = arith.addf %220, %221 : vector<8x128xf32>
    %223 = arith.negf %222 : vector<8x128xf32>
    %224 = math.exp %223 : vector<8x128xf32>
    %cst_57 = arith.constant 1.000000e+00 : f32
    %225 = vector.broadcast %cst_57 : f32 to vector<8x128xf32>
    %226 = arith.addf %225, %224 : vector<8x128xf32>
    %227 = arith.divf %225, %226 : vector<8x128xf32>
    %228 = vector.extract_strided_slice %218 {offsets = [0, 128], sizes = [8, 128], strides = [1, 1]} : vector<8x384xf32> to vector<8x128xf32>
    %229 = vector.extract_strided_slice %219 {offsets = [0, 128], sizes = [8, 128], strides = [1, 1]} : vector<8x384xf32> to vector<8x128xf32>
    %230 = arith.addf %228, %229 : vector<8x128xf32>
    %231 = arith.negf %230 : vector<8x128xf32>
    %232 = math.exp %231 : vector<8x128xf32>
    %cst_58 = arith.constant 1.000000e+00 : f32
    %233 = vector.broadcast %cst_58 : f32 to vector<8x128xf32>
    %234 = arith.addf %233, %232 : vector<8x128xf32>
    %235 = arith.divf %233, %234 : vector<8x128xf32>
    %236 = vector.extract_strided_slice %218 {offsets = [0, 256], sizes = [8, 128], strides = [1, 1]} : vector<8x384xf32> to vector<8x128xf32>
    %237 = vector.extract_strided_slice %219 {offsets = [0, 256], sizes = [8, 128], strides = [1, 1]} : vector<8x384xf32> to vector<8x128xf32>
    %238 = arith.addf %237, %4 : vector<8x128xf32>
    %239 = arith.mulf %227, %238 : vector<8x128xf32>
    %240 = arith.addf %236, %239 : vector<8x128xf32>
    %241 = math.tanh %240 : vector<8x128xf32>
    %cst_59 = arith.constant 1.000000e+00 : f32
    %242 = vector.broadcast %cst_59 : f32 to vector<8x128xf32>
    %243 = arith.subf %242, %235 : vector<8x128xf32>
    %244 = arith.mulf %243, %241 : vector<8x128xf32>
    %245 = arith.mulf %235, %211 : vector<8x128xf32>
    %246 = arith.addf %244, %245 : vector<8x128xf32>
    %247 = arith.index_cast %c6_i32 : i32 to index
    %c0_60 = arith.constant 0 : index
    %c0_61 = arith.constant 0 : index
    %248 = vector.load %arg5[%247, %c0_60, %c0_61] : memref<8x8x128xf32, #tpu.memory_space<vmem>>, vector<1x8x128xf32>
    %249 = vector.shape_cast %248 : vector<1x8x128xf32> to vector<8x128xf32>
    %250 = vector.shape_cast %246 : vector<8x128xf32> to vector<1x8x128xf32>
    tpu.vector_store %arg5[%247, %c0_60, %c0_61], %250 {strides = array<i32>} : memref<8x8x128xf32, #tpu.memory_space<vmem>>, vector<1x8x128xf32>,
    %c7_i32 = arith.constant 7 : i32
    %251 = arith.index_cast %c7_i32 : i32 to index
    %c0_62 = arith.constant 0 : index
    %c0_63 = arith.constant 0 : index
    %252 = vector.load %arg2[%251, %c0_62, %c0_63] : memref<8x8x384xf32, #tpu.memory_space<vmem>>, vector<1x8x384xf32>
    %253 = vector.shape_cast %252 : vector<1x8x384xf32> to vector<8x384xf32>
    %cst_64 = arith.constant dense<0.000000e+00> : vector<8x384xf32>
    %254 = tpu.matmul %246, %3, %cst_64 {dimension_numbers = #tpu.dot_dimension_numbers<[1], [0], [0], [1], [0, 0, 1, 1], [], []>} : vector<8x128xf32>, vector<128x384xf32>, vector<8x384xf32> -> vector<8x384xf32>
    %255 = vector.extract_strided_slice %253 {offsets = [0, 0], sizes = [8, 128], strides = [1, 1]} : vector<8x384xf32> to vector<8x128xf32>
    %256 = vector.extract_strided_slice %254 {offsets = [0, 0], sizes = [8, 128], strides = [1, 1]} : vector<8x384xf32> to vector<8x128xf32>
    %257 = arith.addf %255, %256 : vector<8x128xf32>
    %258 = arith.negf %257 : vector<8x128xf32>
    %259 = math.exp %258 : vector<8x128xf32>
    %cst_65 = arith.constant 1.000000e+00 : f32
    %260 = vector.broadcast %cst_65 : f32 to vector<8x128xf32>
    %261 = arith.addf %260, %259 : vector<8x128xf32>
    %262 = arith.divf %260, %261 : vector<8x128xf32>
    %263 = vector.extract_strided_slice %253 {offsets = [0, 128], sizes = [8, 128], strides = [1, 1]} : vector<8x384xf32> to vector<8x128xf32>
    %264 = vector.extract_strided_slice %254 {offsets = [0, 128], sizes = [8, 128], strides = [1, 1]} : vector<8x384xf32> to vector<8x128xf32>
    %265 = arith.addf %263, %264 : vector<8x128xf32>
    %266 = arith.negf %265 : vector<8x128xf32>
    %267 = math.exp %266 : vector<8x128xf32>
    %cst_66 = arith.constant 1.000000e+00 : f32
    %268 = vector.broadcast %cst_66 : f32 to vector<8x128xf32>
    %269 = arith.addf %268, %267 : vector<8x128xf32>
    %270 = arith.divf %268, %269 : vector<8x128xf32>
    %271 = vector.extract_strided_slice %253 {offsets = [0, 256], sizes = [8, 128], strides = [1, 1]} : vector<8x384xf32> to vector<8x128xf32>
    %272 = vector.extract_strided_slice %254 {offsets = [0, 256], sizes = [8, 128], strides = [1, 1]} : vector<8x384xf32> to vector<8x128xf32>
    %273 = arith.addf %272, %4 : vector<8x128xf32>
    %274 = arith.mulf %262, %273 : vector<8x128xf32>
    %275 = arith.addf %271, %274 : vector<8x128xf32>
    %276 = math.tanh %275 : vector<8x128xf32>
    %cst_67 = arith.constant 1.000000e+00 : f32
    %277 = vector.broadcast %cst_67 : f32 to vector<8x128xf32>
    %278 = arith.subf %277, %270 : vector<8x128xf32>
    %279 = arith.mulf %278, %276 : vector<8x128xf32>
    %280 = arith.mulf %270, %246 : vector<8x128xf32>
    %281 = arith.addf %279, %280 : vector<8x128xf32>
    %282 = arith.index_cast %c7_i32 : i32 to index
    %c0_68 = arith.constant 0 : index
    %c0_69 = arith.constant 0 : index
    %283 = vector.load %arg5[%282, %c0_68, %c0_69] : memref<8x8x128xf32, #tpu.memory_space<vmem>>, vector<1x8x128xf32>
    %284 = vector.shape_cast %283 : vector<1x8x128xf32> to vector<8x128xf32>
    %285 = vector.shape_cast %281 : vector<8x128xf32> to vector<1x8x128xf32>
    tpu.vector_store %arg5[%282, %c0_68, %c0_69], %285 {strides = array<i32>} : memref<8x8x128xf32, #tpu.memory_space<vmem>>, vector<1x8x128xf32>,
    %c8_i32 = arith.constant 8 : i32
    %c0_70 = arith.constant 0 : index
    %c0_71 = arith.constant 0 : index
    %286 = vector.load %arg6[%c0_70, %c0_71] : memref<8x128xf32, #tpu.memory_space<vmem>>, vector<8x128xf32>
    tpu.vector_store %arg6[%c0_70, %c0_71], %281 {strides = array<i32>} : memref<8x128xf32, #tpu.memory_space<vmem>>, vector<8x128xf32>,
    return
  }
  func.func @transform_0(%arg0: i32, %arg1: i32) -> (i32, i32, i32) {
    %c0_i32 = arith.constant 0 : i32
    %c0_i32_0 = arith.constant 0 : i32
    return %arg1, %arg0, %c0_i32 : i32, i32, i32
  }
  func.func @transform_1(%arg0: i32, %arg1: i32) -> (i32, i32) {
    %c0_i32 = arith.constant 0 : i32
    %c0_i32_0 = arith.constant 0 : i32
    %c0_i32_1 = arith.constant 0 : i32
    return %c0_i32, %c0_i32_0 : i32, i32
  }
  func.func @transform_2(%arg0: i32, %arg1: i32) -> (i32, i32) {
    %c0_i32 = arith.constant 0 : i32
    %c0_i32_0 = arith.constant 0 : i32
    %c0_i32_1 = arith.constant 0 : i32
    return %c0_i32, %c0_i32_0 : i32, i32
  }
  func.func @transform_3(%arg0: i32, %arg1: i32) -> (i32, i32, i32) {
    %c0_i32 = arith.constant 0 : i32
    %c0_i32_0 = arith.constant 0 : i32
    return %arg1, %arg0, %c0_i32 : i32, i32, i32
  }
}

module attributes {stable_mosaic.version = 11 : i64} {
  func.func @gru_chunk_kernel(%arg0: i32, %arg1: i32, %arg2: memref<8x8x384xf32, #tpu.memory_space<vmem>>, %arg3: memref<128x384xf32, #tpu.memory_space<vmem>>, %arg4: memref<8x128xf32, #tpu.memory_space<vmem>>, %arg5: memref<8x8x128xf32, #tpu.memory_space<vmem>>, %arg6: memref<8x128xf32, #tpu.memory_space<vmem>>) attributes {dimension_semantics = [#tpu.dimension_semantics<parallel>, #tpu.dimension_semantics<arbitrary>], iteration_bounds = array<i64: 1, 1>, scalar_prefetch = 0 : i64, scratch_operands = 1 : i64, tpu.core_type = #tpu.core_type<tc>, window_params = [{transform_indices = @transform_0, window_bounds = array<i64: 8, 8, 384>}, {pipeline_mode = #tpu.pipeline_mode<synchronous>, transform_indices = @transform_1, window_bounds = array<i64: 128, 384>}, {pipeline_mode = #tpu.pipeline_mode<synchronous>, transform_indices = @transform_2, window_bounds = array<i64: 8, 128>}, {transform_indices = @transform_3, window_bounds = array<i64: 8, 8, 128>}]} {
    %c0_i32 = arith.constant 0 : i32
    %0 = arith.cmpi eq, %arg1, %c0_i32 : i32
    %1 = arith.extui %0 : i1 to i32
    %c0_i32_0 = arith.constant 0 : i32
    %2 = arith.cmpi ne, %1, %c0_i32_0 : i32
    scf.if %2 {
      %cst_72 = arith.constant 0.000000e+00 : f32
      %287 = vector.broadcast %cst_72 : f32 to vector<8x128xf32>
      %c0_73 = arith.constant 0 : index
      %c0_74 = arith.constant 0 : index
      %288 = vector.load %arg6[%c0_73, %c0_74] : memref<8x128xf32, #tpu.memory_space<vmem>>, vector<8x128xf32>
      tpu.vector_store %arg6[%c0_73, %c0_74], %287 {strides = array<i32>} : memref<8x128xf32, #tpu.memory_space<vmem>>, vector<8x128xf32>,
    } else {
    }
    %c0 = arith.constant 0 : index
    %c0_1 = arith.constant 0 : index
    %3 = vector.load %arg3[%c0, %c0_1] : memref<128x384xf32, #tpu.memory_space<vmem>>, vector<128x384xf32>
    %c0_2 = arith.constant 0 : index
    %c0_3 = arith.constant 0 : index
    %4 = vector.load %arg4[%c0_2, %c0_3] : memref<8x128xf32, #tpu.memory_space<vmem>>, vector<8x128xf32>
    %c0_4 = arith.constant 0 : index
    %c0_5 = arith.constant 0 : index
    %5 = vector.load %arg6[%c0_4, %c0_5] : memref<8x128xf32, #tpu.memory_space<vmem>>, vector<8x128xf32>
    %c0_i32_6 = arith.constant 0 : i32
    %6 = arith.index_cast %c0_i32_6 : i32 to index
    %c0_7 = arith.constant 0 : index
    %c0_8 = arith.constant 0 : index
    %7 = vector.load %arg2[%6, %c0_7, %c0_8] : memref<8x8x384xf32, #tpu.memory_space<vmem>>, vector<1x8x384xf32>
    %8 = vector.shape_cast %7 : vector<1x8x384xf32> to vector<8x384xf32>
    %cst = arith.constant dense<0.000000e+00> : vector<8x384xf32>
    %9 = tpu.matmul %5, %3, %cst {dimension_numbers = #tpu.dot_dimension_numbers<[1], [0], [0], [1], [0, 0, 1, 1], [], []>} : vector<8x128xf32>, vector<128x384xf32>, vector<8x384xf32> -> vector<8x384xf32>
    %10 = vector.extract_strided_slice %8 {offsets = [0, 0], sizes = [8, 128], strides = [1, 1]} : vector<8x384xf32> to vector<8x128xf32>
    %11 = vector.extract_strided_slice %9 {offsets = [0, 0], sizes = [8, 128], strides = [1, 1]} : vector<8x384xf32> to vector<8x128xf32>
    %12 = arith.addf %10, %11 : vector<8x128xf32>
    %13 = arith.negf %12 : vector<8x128xf32>
    %14 = math.exp %13 : vector<8x128xf32>
    %cst_9 = arith.constant 1.000000e+00 : f32
    %15 = vector.broadcast %cst_9 : f32 to vector<8x128xf32>
    %16 = arith.addf %15, %14 : vector<8x128xf32>
    %17 = arith.divf %15, %16 : vector<8x128xf32>
    %18 = vector.extract_strided_slice %8 {offsets = [0, 128], sizes = [8, 128], strides = [1, 1]} : vector<8x384xf32> to vector<8x128xf32>
    %19 = vector.extract_strided_slice %9 {offsets = [0, 128], sizes = [8, 128], strides = [1, 1]} : vector<8x384xf32> to vector<8x128xf32>
    %20 = arith.addf %18, %19 : vector<8x128xf32>
    %21 = arith.negf %20 : vector<8x128xf32>
    %22 = math.exp %21 : vector<8x128xf32>
    %cst_10 = arith.constant 1.000000e+00 : f32
    %23 = vector.broadcast %cst_10 : f32 to vector<8x128xf32>
    %24 = arith.addf %23, %22 : vector<8x128xf32>
    %25 = arith.divf %23, %24 : vector<8x128xf32>
    %26 = vector.extract_strided_slice %8 {offsets = [0, 256], sizes = [8, 128], strides = [1, 1]} : vector<8x384xf32> to vector<8x128xf32>
    %27 = vector.extract_strided_slice %9 {offsets = [0, 256], sizes = [8, 128], strides = [1, 1]} : vector<8x384xf32> to vector<8x128xf32>
    %28 = arith.addf %27, %4 : vector<8x128xf32>
    %29 = arith.mulf %17, %28 : vector<8x128xf32>
    %30 = arith.addf %26, %29 : vector<8x128xf32>
    %31 = math.tanh %30 : vector<8x128xf32>
    %cst_11 = arith.constant 1.000000e+00 : f32
    %32 = vector.broadcast %cst_11 : f32 to vector<8x128xf32>
    %33 = arith.subf %32, %25 : vector<8x128xf32>
    %34 = arith.mulf %33, %31 : vector<8x128xf32>
    %35 = arith.mulf %25, %5 : vector<8x128xf32>
    %36 = arith.addf %34, %35 : vector<8x128xf32>
    %37 = arith.index_cast %c0_i32_6 : i32 to index
    %c0_12 = arith.constant 0 : index
    %c0_13 = arith.constant 0 : index
    %38 = vector.load %arg5[%37, %c0_12, %c0_13] : memref<8x8x128xf32, #tpu.memory_space<vmem>>, vector<1x8x128xf32>
    %39 = vector.shape_cast %38 : vector<1x8x128xf32> to vector<8x128xf32>
    %40 = vector.shape_cast %36 : vector<8x128xf32> to vector<1x8x128xf32>
    tpu.vector_store %arg5[%37, %c0_12, %c0_13], %40 {strides = array<i32>} : memref<8x8x128xf32, #tpu.memory_space<vmem>>, vector<1x8x128xf32>,
    %c1_i32 = arith.constant 1 : i32
    %41 = arith.index_cast %c1_i32 : i32 to index
    %c0_14 = arith.constant 0 : index
    %c0_15 = arith.constant 0 : index
    %42 = vector.load %arg2[%41, %c0_14, %c0_15] : memref<8x8x384xf32, #tpu.memory_space<vmem>>, vector<1x8x384xf32>
    %43 = vector.shape_cast %42 : vector<1x8x384xf32> to vector<8x384xf32>
    %cst_16 = arith.constant dense<0.000000e+00> : vector<8x384xf32>
    %44 = tpu.matmul %36, %3, %cst_16 {dimension_numbers = #tpu.dot_dimension_numbers<[1], [0], [0], [1], [0, 0, 1, 1], [], []>} : vector<8x128xf32>, vector<128x384xf32>, vector<8x384xf32> -> vector<8x384xf32>
    %45 = vector.extract_strided_slice %43 {offsets = [0, 0], sizes = [8, 128], strides = [1, 1]} : vector<8x384xf32> to vector<8x128xf32>
    %46 = vector.extract_strided_slice %44 {offsets = [0, 0], sizes = [8, 128], strides = [1, 1]} : vector<8x384xf32> to vector<8x128xf32>
    %47 = arith.addf %45, %46 : vector<8x128xf32>
    %48 = arith.negf %47 : vector<8x128xf32>
    %49 = math.exp %48 : vector<8x128xf32>
    %cst_17 = arith.constant 1.000000e+00 : f32
    %50 = vector.broadcast %cst_17 : f32 to vector<8x128xf32>
    %51 = arith.addf %50, %49 : vector<8x128xf32>
    %52 = arith.divf %50, %51 : vector<8x128xf32>
    %53 = vector.extract_strided_slice %43 {offsets = [0, 128], sizes = [8, 128], strides = [1, 1]} : vector<8x384xf32> to vector<8x128xf32>
    %54 = vector.extract_strided_slice %44 {offsets = [0, 128], sizes = [8, 128], strides = [1, 1]} : vector<8x384xf32> to vector<8x128xf32>
    %55 = arith.addf %53, %54 : vector<8x128xf32>
    %56 = arith.negf %55 : vector<8x128xf32>
    %57 = math.exp %56 : vector<8x128xf32>
    %cst_18 = arith.constant 1.000000e+00 : f32
    %58 = vector.broadcast %cst_18 : f32 to vector<8x128xf32>
    %59 = arith.addf %58, %57 : vector<8x128xf32>
    %60 = arith.divf %58, %59 : vector<8x128xf32>
    %61 = vector.extract_strided_slice %43 {offsets = [0, 256], sizes = [8, 128], strides = [1, 1]} : vector<8x384xf32> to vector<8x128xf32>
    %62 = vector.extract_strided_slice %44 {offsets = [0, 256], sizes = [8, 128], strides = [1, 1]} : vector<8x384xf32> to vector<8x128xf32>
    %63 = arith.addf %62, %4 : vector<8x128xf32>
    %64 = arith.mulf %52, %63 : vector<8x128xf32>
    %65 = arith.addf %61, %64 : vector<8x128xf32>
    %66 = math.tanh %65 : vector<8x128xf32>
    %cst_19 = arith.constant 1.000000e+00 : f32
    %67 = vector.broadcast %cst_19 : f32 to vector<8x128xf32>
    %68 = arith.subf %67, %60 : vector<8x128xf32>
    %69 = arith.mulf %68, %66 : vector<8x128xf32>
    %70 = arith.mulf %60, %36 : vector<8x128xf32>
    %71 = arith.addf %69, %70 : vector<8x128xf32>
    %72 = arith.index_cast %c1_i32 : i32 to index
    %c0_20 = arith.constant 0 : index
    %c0_21 = arith.constant 0 : index
    %73 = vector.load %arg5[%72, %c0_20, %c0_21] : memref<8x8x128xf32, #tpu.memory_space<vmem>>, vector<1x8x128xf32>
    %74 = vector.shape_cast %73 : vector<1x8x128xf32> to vector<8x128xf32>
    %75 = vector.shape_cast %71 : vector<8x128xf32> to vector<1x8x128xf32>
    tpu.vector_store %arg5[%72, %c0_20, %c0_21], %75 {strides = array<i32>} : memref<8x8x128xf32, #tpu.memory_space<vmem>>, vector<1x8x128xf32>,
    %c2_i32 = arith.constant 2 : i32
    %76 = arith.index_cast %c2_i32 : i32 to index
    %c0_22 = arith.constant 0 : index
    %c0_23 = arith.constant 0 : index
    %77 = vector.load %arg2[%76, %c0_22, %c0_23] : memref<8x8x384xf32, #tpu.memory_space<vmem>>, vector<1x8x384xf32>
    %78 = vector.shape_cast %77 : vector<1x8x384xf32> to vector<8x384xf32>
    %cst_24 = arith.constant dense<0.000000e+00> : vector<8x384xf32>
    %79 = tpu.matmul %71, %3, %cst_24 {dimension_numbers = #tpu.dot_dimension_numbers<[1], [0], [0], [1], [0, 0, 1, 1], [], []>} : vector<8x128xf32>, vector<128x384xf32>, vector<8x384xf32> -> vector<8x384xf32>
    %80 = vector.extract_strided_slice %78 {offsets = [0, 0], sizes = [8, 128], strides = [1, 1]} : vector<8x384xf32> to vector<8x128xf32>
    %81 = vector.extract_strided_slice %79 {offsets = [0, 0], sizes = [8, 128], strides = [1, 1]} : vector<8x384xf32> to vector<8x128xf32>
    %82 = arith.addf %80, %81 : vector<8x128xf32>
    %83 = arith.negf %82 : vector<8x128xf32>
    %84 = math.exp %83 : vector<8x128xf32>
    %cst_25 = arith.constant 1.000000e+00 : f32
    %85 = vector.broadcast %cst_25 : f32 to vector<8x128xf32>
    %86 = arith.addf %85, %84 : vector<8x128xf32>
    %87 = arith.divf %85, %86 : vector<8x128xf32>
    %88 = vector.extract_strided_slice %78 {offsets = [0, 128], sizes = [8, 128], strides = [1, 1]} : vector<8x384xf32> to vector<8x128xf32>
    %89 = vector.extract_strided_slice %79 {offsets = [0, 128], sizes = [8, 128], strides = [1, 1]} : vector<8x384xf32> to vector<8x128xf32>
    %90 = arith.addf %88, %89 : vector<8x128xf32>
    %91 = arith.negf %90 : vector<8x128xf32>
    %92 = math.exp %91 : vector<8x128xf32>
    %cst_26 = arith.constant 1.000000e+00 : f32
    %93 = vector.broadcast %cst_26 : f32 to vector<8x128xf32>
    %94 = arith.addf %93, %92 : vector<8x128xf32>
    %95 = arith.divf %93, %94 : vector<8x128xf32>
    %96 = vector.extract_strided_slice %78 {offsets = [0, 256], sizes = [8, 128], strides = [1, 1]} : vector<8x384xf32> to vector<8x128xf32>
    %97 = vector.extract_strided_slice %79 {offsets = [0, 256], sizes = [8, 128], strides = [1, 1]} : vector<8x384xf32> to vector<8x128xf32>
    %98 = arith.addf %97, %4 : vector<8x128xf32>
    %99 = arith.mulf %87, %98 : vector<8x128xf32>
    %100 = arith.addf %96, %99 : vector<8x128xf32>
    %101 = math.tanh %100 : vector<8x128xf32>
    %cst_27 = arith.constant 1.000000e+00 : f32
    %102 = vector.broadcast %cst_27 : f32 to vector<8x128xf32>
    %103 = arith.subf %102, %95 : vector<8x128xf32>
    %104 = arith.mulf %103, %101 : vector<8x128xf32>
    %105 = arith.mulf %95, %71 : vector<8x128xf32>
    %106 = arith.addf %104, %105 : vector<8x128xf32>
    %107 = arith.index_cast %c2_i32 : i32 to index
    %c0_28 = arith.constant 0 : index
    %c0_29 = arith.constant 0 : index
    %108 = vector.load %arg5[%107, %c0_28, %c0_29] : memref<8x8x128xf32, #tpu.memory_space<vmem>>, vector<1x8x128xf32>
    %109 = vector.shape_cast %108 : vector<1x8x128xf32> to vector<8x128xf32>
    %110 = vector.shape_cast %106 : vector<8x128xf32> to vector<1x8x128xf32>
    tpu.vector_store %arg5[%107, %c0_28, %c0_29], %110 {strides = array<i32>} : memref<8x8x128xf32, #tpu.memory_space<vmem>>, vector<1x8x128xf32>,
    %c3_i32 = arith.constant 3 : i32
    %111 = arith.index_cast %c3_i32 : i32 to index
    %c0_30 = arith.constant 0 : index
    %c0_31 = arith.constant 0 : index
    %112 = vector.load %arg2[%111, %c0_30, %c0_31] : memref<8x8x384xf32, #tpu.memory_space<vmem>>, vector<1x8x384xf32>
    %113 = vector.shape_cast %112 : vector<1x8x384xf32> to vector<8x384xf32>
    %cst_32 = arith.constant dense<0.000000e+00> : vector<8x384xf32>
    %114 = tpu.matmul %106, %3, %cst_32 {dimension_numbers = #tpu.dot_dimension_numbers<[1], [0], [0], [1], [0, 0, 1, 1], [], []>} : vector<8x128xf32>, vector<128x384xf32>, vector<8x384xf32> -> vector<8x384xf32>
    %115 = vector.extract_strided_slice %113 {offsets = [0, 0], sizes = [8, 128], strides = [1, 1]} : vector<8x384xf32> to vector<8x128xf32>
    %116 = vector.extract_strided_slice %114 {offsets = [0, 0], sizes = [8, 128], strides = [1, 1]} : vector<8x384xf32> to vector<8x128xf32>
    %117 = arith.addf %115, %116 : vector<8x128xf32>
    %118 = arith.negf %117 : vector<8x128xf32>
    %119 = math.exp %118 : vector<8x128xf32>
    %cst_33 = arith.constant 1.000000e+00 : f32
    %120 = vector.broadcast %cst_33 : f32 to vector<8x128xf32>
    %121 = arith.addf %120, %119 : vector<8x128xf32>
    %122 = arith.divf %120, %121 : vector<8x128xf32>
    %123 = vector.extract_strided_slice %113 {offsets = [0, 128], sizes = [8, 128], strides = [1, 1]} : vector<8x384xf32> to vector<8x128xf32>
    %124 = vector.extract_strided_slice %114 {offsets = [0, 128], sizes = [8, 128], strides = [1, 1]} : vector<8x384xf32> to vector<8x128xf32>
    %125 = arith.addf %123, %124 : vector<8x128xf32>
    %126 = arith.negf %125 : vector<8x128xf32>
    %127 = math.exp %126 : vector<8x128xf32>
    %cst_34 = arith.constant 1.000000e+00 : f32
    %128 = vector.broadcast %cst_34 : f32 to vector<8x128xf32>
    %129 = arith.addf %128, %127 : vector<8x128xf32>
    %130 = arith.divf %128, %129 : vector<8x128xf32>
    %131 = vector.extract_strided_slice %113 {offsets = [0, 256], sizes = [8, 128], strides = [1, 1]} : vector<8x384xf32> to vector<8x128xf32>
    %132 = vector.extract_strided_slice %114 {offsets = [0, 256], sizes = [8, 128], strides = [1, 1]} : vector<8x384xf32> to vector<8x128xf32>
    %133 = arith.addf %132, %4 : vector<8x128xf32>
    %134 = arith.mulf %122, %133 : vector<8x128xf32>
    %135 = arith.addf %131, %134 : vector<8x128xf32>
    %136 = math.tanh %135 : vector<8x128xf32>
    %cst_35 = arith.constant 1.000000e+00 : f32
    %137 = vector.broadcast %cst_35 : f32 to vector<8x128xf32>
    %138 = arith.subf %137, %130 : vector<8x128xf32>
    %139 = arith.mulf %138, %136 : vector<8x128xf32>
    %140 = arith.mulf %130, %106 : vector<8x128xf32>
    %141 = arith.addf %139, %140 : vector<8x128xf32>
    %142 = arith.index_cast %c3_i32 : i32 to index
    %c0_36 = arith.constant 0 : index
    %c0_37 = arith.constant 0 : index
    %143 = vector.load %arg5[%142, %c0_36, %c0_37] : memref<8x8x128xf32, #tpu.memory_space<vmem>>, vector<1x8x128xf32>
    %144 = vector.shape_cast %143 : vector<1x8x128xf32> to vector<8x128xf32>
    %145 = vector.shape_cast %141 : vector<8x128xf32> to vector<1x8x128xf32>
    tpu.vector_store %arg5[%142, %c0_36, %c0_37], %145 {strides = array<i32>} : memref<8x8x128xf32, #tpu.memory_space<vmem>>, vector<1x8x128xf32>,
    %c4_i32 = arith.constant 4 : i32
    %146 = arith.index_cast %c4_i32 : i32 to index
    %c0_38 = arith.constant 0 : index
    %c0_39 = arith.constant 0 : index
    %147 = vector.load %arg2[%146, %c0_38, %c0_39] : memref<8x8x384xf32, #tpu.memory_space<vmem>>, vector<1x8x384xf32>
    %148 = vector.shape_cast %147 : vector<1x8x384xf32> to vector<8x384xf32>
    %cst_40 = arith.constant dense<0.000000e+00> : vector<8x384xf32>
    %149 = tpu.matmul %141, %3, %cst_40 {dimension_numbers = #tpu.dot_dimension_numbers<[1], [0], [0], [1], [0, 0, 1, 1], [], []>} : vector<8x128xf32>, vector<128x384xf32>, vector<8x384xf32> -> vector<8x384xf32>
    %150 = vector.extract_strided_slice %148 {offsets = [0, 0], sizes = [8, 128], strides = [1, 1]} : vector<8x384xf32> to vector<8x128xf32>
    %151 = vector.extract_strided_slice %149 {offsets = [0, 0], sizes = [8, 128], strides = [1, 1]} : vector<8x384xf32> to vector<8x128xf32>
    %152 = arith.addf %150, %151 : vector<8x128xf32>
    %153 = arith.negf %152 : vector<8x128xf32>
    %154 = math.exp %153 : vector<8x128xf32>
    %cst_41 = arith.constant 1.000000e+00 : f32
    %155 = vector.broadcast %cst_41 : f32 to vector<8x128xf32>
    %156 = arith.addf %155, %154 : vector<8x128xf32>
    %157 = arith.divf %155, %156 : vector<8x128xf32>
    %158 = vector.extract_strided_slice %148 {offsets = [0, 128], sizes = [8, 128], strides = [1, 1]} : vector<8x384xf32> to vector<8x128xf32>
    %159 = vector.extract_strided_slice %149 {offsets = [0, 128], sizes = [8, 128], strides = [1, 1]} : vector<8x384xf32> to vector<8x128xf32>
    %160 = arith.addf %158, %159 : vector<8x128xf32>
    %161 = arith.negf %160 : vector<8x128xf32>
    %162 = math.exp %161 : vector<8x128xf32>
    %cst_42 = arith.constant 1.000000e+00 : f32
    %163 = vector.broadcast %cst_42 : f32 to vector<8x128xf32>
    %164 = arith.addf %163, %162 : vector<8x128xf32>
    %165 = arith.divf %163, %164 : vector<8x128xf32>
    %166 = vector.extract_strided_slice %148 {offsets = [0, 256], sizes = [8, 128], strides = [1, 1]} : vector<8x384xf32> to vector<8x128xf32>
    %167 = vector.extract_strided_slice %149 {offsets = [0, 256], sizes = [8, 128], strides = [1, 1]} : vector<8x384xf32> to vector<8x128xf32>
    %168 = arith.addf %167, %4 : vector<8x128xf32>
    %169 = arith.mulf %157, %168 : vector<8x128xf32>
    %170 = arith.addf %166, %169 : vector<8x128xf32>
    %171 = math.tanh %170 : vector<8x128xf32>
    %cst_43 = arith.constant 1.000000e+00 : f32
    %172 = vector.broadcast %cst_43 : f32 to vector<8x128xf32>
    %173 = arith.subf %172, %165 : vector<8x128xf32>
    %174 = arith.mulf %173, %171 : vector<8x128xf32>
    %175 = arith.mulf %165, %141 : vector<8x128xf32>
    %176 = arith.addf %174, %175 : vector<8x128xf32>
    %177 = arith.index_cast %c4_i32 : i32 to index
    %c0_44 = arith.constant 0 : index
    %c0_45 = arith.constant 0 : index
    %178 = vector.load %arg5[%177, %c0_44, %c0_45] : memref<8x8x128xf32, #tpu.memory_space<vmem>>, vector<1x8x128xf32>
    %179 = vector.shape_cast %178 : vector<1x8x128xf32> to vector<8x128xf32>
    %180 = vector.shape_cast %176 : vector<8x128xf32> to vector<1x8x128xf32>
    tpu.vector_store %arg5[%177, %c0_44, %c0_45], %180 {strides = array<i32>} : memref<8x8x128xf32, #tpu.memory_space<vmem>>, vector<1x8x128xf32>,
    %c5_i32 = arith.constant 5 : i32
    %181 = arith.index_cast %c5_i32 : i32 to index
    %c0_46 = arith.constant 0 : index
    %c0_47 = arith.constant 0 : index
    %182 = vector.load %arg2[%181, %c0_46, %c0_47] : memref<8x8x384xf32, #tpu.memory_space<vmem>>, vector<1x8x384xf32>
    %183 = vector.shape_cast %182 : vector<1x8x384xf32> to vector<8x384xf32>
    %cst_48 = arith.constant dense<0.000000e+00> : vector<8x384xf32>
    %184 = tpu.matmul %176, %3, %cst_48 {dimension_numbers = #tpu.dot_dimension_numbers<[1], [0], [0], [1], [0, 0, 1, 1], [], []>} : vector<8x128xf32>, vector<128x384xf32>, vector<8x384xf32> -> vector<8x384xf32>
    %185 = vector.extract_strided_slice %183 {offsets = [0, 0], sizes = [8, 128], strides = [1, 1]} : vector<8x384xf32> to vector<8x128xf32>
    %186 = vector.extract_strided_slice %184 {offsets = [0, 0], sizes = [8, 128], strides = [1, 1]} : vector<8x384xf32> to vector<8x128xf32>
    %187 = arith.addf %185, %186 : vector<8x128xf32>
    %188 = arith.negf %187 : vector<8x128xf32>
    %189 = math.exp %188 : vector<8x128xf32>
    %cst_49 = arith.constant 1.000000e+00 : f32
    %190 = vector.broadcast %cst_49 : f32 to vector<8x128xf32>
    %191 = arith.addf %190, %189 : vector<8x128xf32>
    %192 = arith.divf %190, %191 : vector<8x128xf32>
    %193 = vector.extract_strided_slice %183 {offsets = [0, 128], sizes = [8, 128], strides = [1, 1]} : vector<8x384xf32> to vector<8x128xf32>
    %194 = vector.extract_strided_slice %184 {offsets = [0, 128], sizes = [8, 128], strides = [1, 1]} : vector<8x384xf32> to vector<8x128xf32>
    %195 = arith.addf %193, %194 : vector<8x128xf32>
    %196 = arith.negf %195 : vector<8x128xf32>
    %197 = math.exp %196 : vector<8x128xf32>
    %cst_50 = arith.constant 1.000000e+00 : f32
    %198 = vector.broadcast %cst_50 : f32 to vector<8x128xf32>
    %199 = arith.addf %198, %197 : vector<8x128xf32>
    %200 = arith.divf %198, %199 : vector<8x128xf32>
    %201 = vector.extract_strided_slice %183 {offsets = [0, 256], sizes = [8, 128], strides = [1, 1]} : vector<8x384xf32> to vector<8x128xf32>
    %202 = vector.extract_strided_slice %184 {offsets = [0, 256], sizes = [8, 128], strides = [1, 1]} : vector<8x384xf32> to vector<8x128xf32>
    %203 = arith.addf %202, %4 : vector<8x128xf32>
    %204 = arith.mulf %192, %203 : vector<8x128xf32>
    %205 = arith.addf %201, %204 : vector<8x128xf32>
    %206 = math.tanh %205 : vector<8x128xf32>
    %cst_51 = arith.constant 1.000000e+00 : f32
    %207 = vector.broadcast %cst_51 : f32 to vector<8x128xf32>
    %208 = arith.subf %207, %200 : vector<8x128xf32>
    %209 = arith.mulf %208, %206 : vector<8x128xf32>
    %210 = arith.mulf %200, %176 : vector<8x128xf32>
    %211 = arith.addf %209, %210 : vector<8x128xf32>
    %212 = arith.index_cast %c5_i32 : i32 to index
    %c0_52 = arith.constant 0 : index
    %c0_53 = arith.constant 0 : index
    %213 = vector.load %arg5[%212, %c0_52, %c0_53] : memref<8x8x128xf32, #tpu.memory_space<vmem>>, vector<1x8x128xf32>
    %214 = vector.shape_cast %213 : vector<1x8x128xf32> to vector<8x128xf32>
    %215 = vector.shape_cast %211 : vector<8x128xf32> to vector<1x8x128xf32>
    tpu.vector_store %arg5[%212, %c0_52, %c0_53], %215 {strides = array<i32>} : memref<8x8x128xf32, #tpu.memory_space<vmem>>, vector<1x8x128xf32>,
    %c6_i32 = arith.constant 6 : i32
    %216 = arith.index_cast %c6_i32 : i32 to index
    %c0_54 = arith.constant 0 : index
    %c0_55 = arith.constant 0 : index
    %217 = vector.load %arg2[%216, %c0_54, %c0_55] : memref<8x8x384xf32, #tpu.memory_space<vmem>>, vector<1x8x384xf32>
    %218 = vector.shape_cast %217 : vector<1x8x384xf32> to vector<8x384xf32>
    %cst_56 = arith.constant dense<0.000000e+00> : vector<8x384xf32>
    %219 = tpu.matmul %211, %3, %cst_56 {dimension_numbers = #tpu.dot_dimension_numbers<[1], [0], [0], [1], [0, 0, 1, 1], [], []>} : vector<8x128xf32>, vector<128x384xf32>, vector<8x384xf32> -> vector<8x384xf32>
    %220 = vector.extract_strided_slice %218 {offsets = [0, 0], sizes = [8, 128], strides = [1, 1]} : vector<8x384xf32> to vector<8x128xf32>
    %221 = vector.extract_strided_slice %219 {offsets = [0, 0], sizes = [8, 128], strides = [1, 1]} : vector<8x384xf32> to vector<8x128xf32>
    %222 = arith.addf %220, %221 : vector<8x128xf32>
    %223 = arith.negf %222 : vector<8x128xf32>
    %224 = math.exp %223 : vector<8x128xf32>
    %cst_57 = arith.constant 1.000000e+00 : f32
    %225 = vector.broadcast %cst_57 : f32 to vector<8x128xf32>
    %226 = arith.addf %225, %224 : vector<8x128xf32>
    %227 = arith.divf %225, %226 : vector<8x128xf32>
    %228 = vector.extract_strided_slice %218 {offsets = [0, 128], sizes = [8, 128], strides = [1, 1]} : vector<8x384xf32> to vector<8x128xf32>
    %229 = vector.extract_strided_slice %219 {offsets = [0, 128], sizes = [8, 128], strides = [1, 1]} : vector<8x384xf32> to vector<8x128xf32>
    %230 = arith.addf %228, %229 : vector<8x128xf32>
    %231 = arith.negf %230 : vector<8x128xf32>
    %232 = math.exp %231 : vector<8x128xf32>
    %cst_58 = arith.constant 1.000000e+00 : f32
    %233 = vector.broadcast %cst_58 : f32 to vector<8x128xf32>
    %234 = arith.addf %233, %232 : vector<8x128xf32>
    %235 = arith.divf %233, %234 : vector<8x128xf32>
    %236 = vector.extract_strided_slice %218 {offsets = [0, 256], sizes = [8, 128], strides = [1, 1]} : vector<8x384xf32> to vector<8x128xf32>
    %237 = vector.extract_strided_slice %219 {offsets = [0, 256], sizes = [8, 128], strides = [1, 1]} : vector<8x384xf32> to vector<8x128xf32>
    %238 = arith.addf %237, %4 : vector<8x128xf32>
    %239 = arith.mulf %227, %238 : vector<8x128xf32>
    %240 = arith.addf %236, %239 : vector<8x128xf32>
    %241 = math.tanh %240 : vector<8x128xf32>
    %cst_59 = arith.constant 1.000000e+00 : f32
    %242 = vector.broadcast %cst_59 : f32 to vector<8x128xf32>
    %243 = arith.subf %242, %235 : vector<8x128xf32>
    %244 = arith.mulf %243, %241 : vector<8x128xf32>
    %245 = arith.mulf %235, %211 : vector<8x128xf32>
    %246 = arith.addf %244, %245 : vector<8x128xf32>
    %247 = arith.index_cast %c6_i32 : i32 to index
    %c0_60 = arith.constant 0 : index
    %c0_61 = arith.constant 0 : index
    %248 = vector.load %arg5[%247, %c0_60, %c0_61] : memref<8x8x128xf32, #tpu.memory_space<vmem>>, vector<1x8x128xf32>
    %249 = vector.shape_cast %248 : vector<1x8x128xf32> to vector<8x128xf32>
    %250 = vector.shape_cast %246 : vector<8x128xf32> to vector<1x8x128xf32>
    tpu.vector_store %arg5[%247, %c0_60, %c0_61], %250 {strides = array<i32>} : memref<8x8x128xf32, #tpu.memory_space<vmem>>, vector<1x8x128xf32>,
    %c7_i32 = arith.constant 7 : i32
    %251 = arith.index_cast %c7_i32 : i32 to index
    %c0_62 = arith.constant 0 : index
    %c0_63 = arith.constant 0 : index
    %252 = vector.load %arg2[%251, %c0_62, %c0_63] : memref<8x8x384xf32, #tpu.memory_space<vmem>>, vector<1x8x384xf32>
    %253 = vector.shape_cast %252 : vector<1x8x384xf32> to vector<8x384xf32>
    %cst_64 = arith.constant dense<0.000000e+00> : vector<8x384xf32>
    %254 = tpu.matmul %246, %3, %cst_64 {dimension_numbers = #tpu.dot_dimension_numbers<[1], [0], [0], [1], [0, 0, 1, 1], [], []>} : vector<8x128xf32>, vector<128x384xf32>, vector<8x384xf32> -> vector<8x384xf32>
    %255 = vector.extract_strided_slice %253 {offsets = [0, 0], sizes = [8, 128], strides = [1, 1]} : vector<8x384xf32> to vector<8x128xf32>
    %256 = vector.extract_strided_slice %254 {offsets = [0, 0], sizes = [8, 128], strides = [1, 1]} : vector<8x384xf32> to vector<8x128xf32>
    %257 = arith.addf %255, %256 : vector<8x128xf32>
    %258 = arith.negf %257 : vector<8x128xf32>
    %259 = math.exp %258 : vector<8x128xf32>
    %cst_65 = arith.constant 1.000000e+00 : f32
    %260 = vector.broadcast %cst_65 : f32 to vector<8x128xf32>
    %261 = arith.addf %260, %259 : vector<8x128xf32>
    %262 = arith.divf %260, %261 : vector<8x128xf32>
    %263 = vector.extract_strided_slice %253 {offsets = [0, 128], sizes = [8, 128], strides = [1, 1]} : vector<8x384xf32> to vector<8x128xf32>
    %264 = vector.extract_strided_slice %254 {offsets = [0, 128], sizes = [8, 128], strides = [1, 1]} : vector<8x384xf32> to vector<8x128xf32>
    %265 = arith.addf %263, %264 : vector<8x128xf32>
    %266 = arith.negf %265 : vector<8x128xf32>
    %267 = math.exp %266 : vector<8x128xf32>
    %cst_66 = arith.constant 1.000000e+00 : f32
    %268 = vector.broadcast %cst_66 : f32 to vector<8x128xf32>
    %269 = arith.addf %268, %267 : vector<8x128xf32>
    %270 = arith.divf %268, %269 : vector<8x128xf32>
    %271 = vector.extract_strided_slice %253 {offsets = [0, 256], sizes = [8, 128], strides = [1, 1]} : vector<8x384xf32> to vector<8x128xf32>
    %272 = vector.extract_strided_slice %254 {offsets = [0, 256], sizes = [8, 128], strides = [1, 1]} : vector<8x384xf32> to vector<8x128xf32>
    %273 = arith.addf %272, %4 : vector<8x128xf32>
    %274 = arith.mulf %262, %273 : vector<8x128xf32>
    %275 = arith.addf %271, %274 : vector<8x128xf32>
    %276 = math.tanh %275 : vector<8x128xf32>
    %cst_67 = arith.constant 1.000000e+00 : f32
    %277 = vector.broadcast %cst_67 : f32 to vector<8x128xf32>
    %278 = arith.subf %277, %270 : vector<8x128xf32>
    %279 = arith.mulf %278, %276 : vector<8x128xf32>
    %280 = arith.mulf %270, %246 : vector<8x128xf32>
    %281 = arith.addf %279, %280 : vector<8x128xf32>
    %282 = arith.index_cast %c7_i32 : i32 to index
    %c0_68 = arith.constant 0 : index
    %c0_69 = arith.constant 0 : index
    %283 = vector.load %arg5[%282, %c0_68, %c0_69] : memref<8x8x128xf32, #tpu.memory_space<vmem>>, vector<1x8x128xf32>
    %284 = vector.shape_cast %283 : vector<1x8x128xf32> to vector<8x128xf32>
    %285 = vector.shape_cast %281 : vector<8x128xf32> to vector<1x8x128xf32>
    tpu.vector_store %arg5[%282, %c0_68, %c0_69], %285 {strides = array<i32>} : memref<8x8x128xf32, #tpu.memory_space<vmem>>, vector<1x8x128xf32>,
    %c8_i32 = arith.constant 8 : i32
    %c0_70 = arith.constant 0 : index
    %c0_71 = arith.constant 0 : index
    %286 = vector.load %arg6[%c0_70, %c0_71] : memref<8x128xf32, #tpu.memory_space<vmem>>, vector<8x128xf32>
    tpu.vector_store %arg6[%c0_70, %c0_71], %281 {strides = array<i32>} : memref<8x128xf32, #tpu.memory_space<vmem>>, vector<8x128xf32>,
    return
  }
  func.func @transform_0(%arg0: i32, %arg1: i32) -> (i32, i32, i32) {
    %c0_i32 = arith.constant 0 : i32
    %c0_i32_0 = arith.constant 0 : i32
    return %arg1, %arg0, %c0_i32 : i32, i32, i32
  }
  func.func @transform_1(%arg0: i32, %arg1: i32) -> (i32, i32) {
    %c0_i32 = arith.constant 0 : i32
    %c0_i32_0 = arith.constant 0 : i32
    %c0_i32_1 = arith.constant 0 : i32
    return %c0_i32, %c0_i32_0 : i32, i32
  }
  func.func @transform_2(%arg0: i32, %arg1: i32) -> (i32, i32) {
    %c0_i32 = arith.constant 0 : i32
    %c0_i32_0 = arith.constant 0 : i32
    %c0_i32_1 = arith.constant 0 : i32
    return %c0_i32, %c0_i32_0 : i32, i32
  }
  func.func @transform_3(%arg0: i32, %arg1: i32) -> (i32, i32, i32) {
    %c0_i32 = arith.constant 0 : i32
    %c0_i32_0 = arith.constant 0 : i32
    return %arg1, %arg0, %c0_i32 : i32, i32, i32
  }
}

</mosaic_0001>

<llo_original>
// kernel: tpu_custom_call.1
$region0: #{tpu_custom_call.1}
  #allocation0 [shape = 'u32[]', space=smem, size = 0x4, offset = 0x4, fixed_abs, tag = 'smem constant byte address 0x4 - core index']
  #allocation1 [shape = 'u32[144,128]{1,0:T(1,128)}', space=vmem, size = 0x12000, scoped, tag = 'internal scratch']
  #allocation2 [shape = 'f32[8,128]{1,0:T(8,128)}', space=vmem, size = 0x1000, scoped, tag = 'scratch operand']
  %s0 = inlined_call_operand.hbm [shape: f32[8,8,384], index: 0, kind: input, shape index: {}]
  %s1 = inlined_call_operand.hbm [shape: f32[128,384], index: 1, kind: input, shape index: {}]
  %s2 = inlined_call_operand.hbm [shape: f32[8,128], index: 2, kind: input, shape index: {}]
  %s3 = inlined_call_operand.hbm [shape: f32[8,8,128], index: 3, kind: output, shape index: {}]
  %s4 = sld [smem:[#allocation0]]
  $region38: #{tpu_custom_call.1} parent=0
    _
  %s6 = ssub.s32 1, %s4
  %s7 = scalar_select 0, %s6, %s4
  $region1: #{tpu_custom_call.1} parent=0
    #allocation3 [shape = 'u8[98304]{0}', space=vmem, size = 0x18000, scoped, tag = 'input window, operand 0, single buffered']
    #allocation4 [shape = 's32[1]{0}', space=sflag, size = 0x4, scoped, tag = 'scoped memory for tpu_custom_call.1']
    #allocation5 [shape = 's32[1]{0}', space=sflag, size = 0x4, scoped, tag = 'scoped memory for tpu_custom_call.1']
    #allocation6 [shape = 'u8[196608]{0}', space=vmem, size = 0x30000, scoped, tag = 'input window, operand 1, single buffered']
    #allocation7 [shape = 's32[1]{0}', space=sflag, size = 0x4, scoped, tag = 'scoped memory for tpu_custom_call.1']
    #allocation8 [shape = 'u8[4096]{0}', space=vmem, size = 0x1000, scoped, tag = 'input window, operand 2, single buffered']
    #allocation9 [shape = 'u8[32768]{0}', space=vmem, size = 0x8000, scoped, tag = 'output window, operand 0, single buffered']
    %8 = vsyncpa [#allocation4], 0
    %9 = vsyncpa [#allocation7], 0
    %10 = vsyncpa [#allocation5], 0
    // Predicated region
    $region2: #{tpu_custom_call.1} parent=1 // pred_check
      _
    $region3: #{tpu_custom_call.1} parent=1 // pred_check_branch
      %12 = sbr.rel (0) target = $region5
    $region4: #{tpu_custom_call.1} parent=1 // pred_region
      %s14 = ssub.s32 3072, 3072
      %15 = vsyncadd [#allocation4], %s14
      %s16 = sshll.u32 [#allocation3], 4
      %s17 = int_to_ptr.vmem [resolvable:$true] %s16
      %22 = dma.hbm_to_vmem [thread:$0]  %s0, 3072, %s17, [#allocation4], 384, 384, 24
    $region5: #{tpu_custom_call.1} parent=1 // pred_fallthru
      _
    // Predicated region
    $region6: #{tpu_custom_call.1} parent=1 // pred_check
      _
    $region7: #{tpu_custom_call.1} parent=1 // pred_check_branch
      %24 = sbr.rel (0) target = $region9
    $region8: #{tpu_custom_call.1} parent=1 // pred_region
      %s26 = ssub.s32 6144, 6144
      %27 = vsyncadd [#allocation7], %s26
      %s28 = sshll.u32 [#allocation6], 4
      %s29 = int_to_ptr.vmem [resolvable:$true] %s28
      %34 = dma.hbm_to_vmem [thread:$0]  %s1, 6144, %s29, [#allocation7], 384, 384, 24
    $region9: #{tpu_custom_call.1} parent=1 // pred_fallthru
      _
    // Predicated region
    $region10: #{tpu_custom_call.1} parent=1 // pred_check
      _
    $region11: #{tpu_custom_call.1} parent=1 // pred_check_branch
      %36 = sbr.rel (0) target = $region13
    $region12: #{tpu_custom_call.1} parent=1 // pred_region
      %s38 = ssub.s32 128, 128
      %39 = vsyncadd [#allocation7], %s38
      %s41 = sshll.u32 [#allocation8], 4
      %s42 = int_to_ptr.vmem [resolvable:$true] %s41
      %44 = dma.hbm_to_vmem [thread:$0]  %s2, 128, %s42, [#allocation7]
    $region13: #{tpu_custom_call.1} parent=1 // pred_fallthru
      _
    // Predicated region
    $region14: #{tpu_custom_call.1} parent=1 // pred_check
      _
    $region15: #{tpu_custom_call.1} parent=1 // pred_check_branch
      %46 = sbr.rel (0) target = $region17
    $region16: #{tpu_custom_call.1} parent=1 // pred_region
      %47 = dma.done [#allocation4], 3072
    $region17: #{tpu_custom_call.1} parent=1 // pred_fallthru
      _
    // Predicated region
    $region18: #{tpu_custom_call.1} parent=1 // pred_check
      _
    $region19: #{tpu_custom_call.1} parent=1 // pred_check_branch
      %49 = sbr.rel (0) target = $region21
    $region20: #{tpu_custom_call.1} parent=1 // pred_region
      %50 = dma.done [#allocation7], 6144
    $region21: #{tpu_custom_call.1} parent=1 // pred_fallthru
      _
    // Predicated region
    $region22: #{tpu_custom_call.1} parent=1 // pred_check
      _
    $region23: #{tpu_custom_call.1} parent=1 // pred_check_branch
      %52 = sbr.rel (0) target = $region25
    $region24: #{tpu_custom_call.1} parent=1 // pred_region
      %53 = dma.done [#allocation7], 128
    $region25: #{tpu_custom_call.1} parent=1 // pred_fallthru
      _
    %p54 = scmp.eq.s32.totalorder 0, 0
    // Predicated region
    $region26: #{tpu_custom_call.1} parent=1 // pred_check
      %p55 = pneg %p54
    $region27: #{tpu_custom_call.1} parent=1 // pred_check_branch
      %57 = sbr.rel (%p55) target = $region29
    $region28: #{tpu_custom_call.1} parent=1 // pred_region
      %58 = vst [vmem:[#allocation2] sm:$0xff] 0.0
    $region29: #{tpu_custom_call.1} parent=1 // pred_fallthru
      _
    %v59 = vld [vmem:[#allocation6] sm:$0xff]
    %v60 = vld [vmem:[#allocation6 + $0x8] sm:$0xff]
    %v61 = vld [vmem:[#allocation6 + $0x10] sm:$0xff]
    %v62 = vld [vmem:[#allocation6 + $0x18] sm:$0xff]
    %v63 = vld [vmem:[#allocation6 + $0x20] sm:$0xff]
    %v64 = vld [vmem:[#allocation6 + $0x28] sm:$0xff]
    %v65 = vld [vmem:[#allocation6 + $0x30] sm:$0xff]
    %v66 = vld [vmem:[#allocation6 + $0x38] sm:$0xff]
    %v67 = vld [vmem:[#allocation6 + $0x40] sm:$0xff]
    %v68 = vld [vmem:[#allocation6 + $0x48] sm:$0xff]
    %v69 = vld [vmem:[#allocation6 + $0x50] sm:$0xff]
    %v70 = vld [vmem:[#allocation6 + $0x58] sm:$0xff]
    %v71 = vld [vmem:[#allocation6 + $0x60] sm:$0xff]
    %v72 = vld [vmem:[#allocation6 + $0x68] sm:$0xff]
    %v73 = vld [vmem:[#allocation6 + $0x70] sm:$0xff]
    %v74 = vld [vmem:[#allocation6 + $0x78] sm:$0xff]
    %v75 = vld [vmem:[#allocation6 + $0x80] sm:$0xff]
    %v76 = vld [vmem:[#allocation6 + $0x88] sm:$0xff]
    %v77 = vld [vmem:[#allocation6 + $0x90] sm:$0xff]
    %v78 = vld [vmem:[#allocation6 + $0x98] sm:$0xff]
    %v79 = vld [vmem:[#allocation6 + $0xa0] sm:$0xff]
    %v80 = vld [vmem:[#allocation6 + $0xa8] sm:$0xff]
    %v81 = vld [vmem:[#allocation6 + $0xb0] sm:$0xff]
    %v82 = vld [vmem:[#allocation6 + $0xb8] sm:$0xff]
    %v83 = vld [vmem:[#allocation6 + $0xc0] sm:$0xff]
    %v84 = vld [vmem:[#allocation6 + $0xc8] sm:$0xff]
    %v85 = vld [vmem:[#allocation6 + $0xd0] sm:$0xff]
    %v86 = vld [vmem:[#allocation6 + $0xd8] sm:$0xff]
    %v87 = vld [vmem:[#allocation6 + $0xe0] sm:$0xff]
    %v88 = vld [vmem:[#allocation6 + $0xe8] sm:$0xff]
    %v89 = vld [vmem:[#allocation6 + $0xf0] sm:$0xff]
    %v90 = vld [vmem:[#allocation6 + $0xf8] sm:$0xff]
    %v91 = vld [vmem:[#allocation6 + $0x100] sm:$0xff]
    %v92 = vld [vmem:[#allocation6 + $0x108] sm:$0xff]
    %v93 = vld [vmem:[#allocation6 + $0x110] sm:$0xff]
    %v94 = vld [vmem:[#allocation6 + $0x118] sm:$0xff]
    %v95 = vld [vmem:[#allocation6 + $0x120] sm:$0xff]
    %v96 = vld [vmem:[#allocation6 + $0x128] sm:$0xff]
    %v97 = vld [vmem:[#allocation6 + $0x130] sm:$0xff]
    %v98 = vld [vmem:[#allocation6 + $0x138] sm:$0xff]
    %v99 = vld [vmem:[#allocation6 + $0x140] sm:$0xff]
    %v100 = vld [vmem:[#allocation6 + $0x148] sm:$0xff]
    %v101 = vld [vmem:[#allocation6 + $0x150] sm:$0xff]
    %v102 = vld [vmem:[#allocation6 + $0x158] sm:$0xff]
    %v103 = vld [vmem:[#allocation6 + $0x160] sm:$0xff]
    %v104 = vld [vmem:[#allocation6 + $0x168] sm:$0xff]
    %v105 = vld [vmem:[#allocation6 + $0x170] sm:$0xff]
    %v106 = vld [vmem:[#allocation6 + $0x178] sm:$0xff]
    %v107 = vld [vmem:[#allocation8] sm:$0xff]
    %v108 = vld [vmem:[#allocation2] sm:$0xff]
    %v109 = vld [vmem:[#allocation3] sm:$0xff]
    %v110 = vld [vmem:[#allocation3 + $0x8] sm:$0xff]
    %v111 = vld [vmem:[#allocation3 + $0x10] sm:$0xff]
    %112 = vmatprep.subr.mxu0 %v60
    %113 = vmatpush1.msra.mxu0 %v59
    %114 = vmatprep.subr.mxu0 %v63
    %115 = vmatpush1.msra.mxu0 %v62
    %116 = vmatprep.subr.mxu0 %v66
    %117 = vmatpush1.msra.mxu0 %v65
    %118 = vmatprep.subr.mxu0 %v69
    %119 = vmatpush1.msra.mxu0 %v68
    %120 = vmatprep.subr.mxu0 %v72
    %121 = vmatpush1.msra.mxu0 %v71
    %122 = vmatprep.subr.mxu0 %v75
    %123 = vmatpush1.msra.mxu0 %v74
    %124 = vmatprep.subr.mxu0 %v78
    %125 = vmatpush1.msra.mxu0 %v77
    %126 = vmatprep.subr.mxu0 %v81
    %127 = vmatpush1.msra.mxu0 %v80
    %128 = vmatprep.subr.mxu0 %v84
    %129 = vmatpush1.msra.mxu0 %v83
    %130 = vmatprep.subr.mxu0 %v87
    %131 = vmatpush1.msra.mxu0 %v86
    %132 = vmatprep.subr.mxu0 %v90
    %133 = vmatpush1.msra.mxu0 %v89
    %134 = vmatprep.subr.mxu0 %v93
    %135 = vmatpush1.msra.mxu0 %v92
    %136 = vmatprep.subr.mxu0 %v96
    %137 = vmatpush1.msra.mxu0 %v95
    %138 = vmatprep.subr.mxu0 %v99
    %139 = vmatpush1.msra.mxu0 %v98
    %140 = vmatprep.subr.mxu0 %v102
    %141 = vmatpush1.msra.mxu0 %v101
    %142 = vmatprep.subr.mxu0 %v105
    %143 = vmatpush1.msra.mxu0 %v104
    %144 = vmatprep.subr.mxu0 0.0
    %145 = vmatpush1.msra.mxu0 0.0
    %146 = vmatprep.subr.mxu0 0.0
    %147 = vmatpush1.msra.mxu0 0.0
    %148 = vmatprep.subr.mxu0 0.0
    %149 = vmatpush1.msra.mxu0 0.0
    %150 = vmatprep.subr.mxu0 0.0
    %151 = vmatpush1.msra.mxu0 0.0
    %152 = vmatprep.subr.mxu0 0.0
    %153 = vmatpush1.msra.mxu0 0.0
    %154 = vmatprep.subr.mxu0 0.0
    %155 = vmatpush1.msra.mxu0 0.0
    %156 = vmatprep.subr.mxu0 0.0
    %157 = vmatpush1.msra.mxu0 0.0
    %158 = vmatprep.subr.mxu0 0.0
    %159 = vmatpush1.msra.mxu0 0.0
    %160 = vmatprep.subr.mxu0 0.0
    %161 = vmatpush1.msra.mxu0 0.0
    %162 = vmatprep.subr.mxu0 0.0
    %163 = vmatpush1.msra.mxu0 0.0
    %164 = vmatprep.subr.mxu0 0.0
    %165 = vmatpush1.msra.mxu0 0.0
    %166 = vmatprep.subr.mxu0 0.0
    %167 = vmatpush1.msra.mxu0 0.0
    %168 = vmatprep.subr.mxu0 0.0
    %169 = vmatpush1.msra.mxu0 0.0
    %170 = vmatprep.subr.mxu0 0.0
    %171 = vmatpush1.msra.mxu0 0.0
    %172 = vmatprep.subr.mxu0 0.0
    %173 = vmatpush1.msra.mxu0 0.0
    %174 = vmatprep.subr.mxu0 0.0
    %175 = vmatpush1.msra.mxu0 0.0
    %176 = vmatprep.mubr.f32.mxu0 0.0
    %177 = vmatmul.mubr.f32.gmra.mrb[0].mxu0 %v108
    %v178 = vpop.f32.mrb[0].mxu0
    %v179 = vadd.f32 0.0, %v178
    %v180 = vpop.f32.mrb[0].mxu0
    %v181 = vadd.f32 0.0, %v180
    %182 = vdwg.mxu0
    %183 = vmatprep.subr.mxu0 0.0
    %184 = vmatpush1.msra.mxu0 %v61
    %185 = vmatprep.subr.mxu0 0.0
    %186 = vmatpush1.msra.mxu0 %v64
    %187 = vmatprep.subr.mxu0 0.0
    %188 = vmatpush1.msra.mxu0 %v67
    %189 = vmatprep.subr.mxu0 0.0
    %190 = vmatpush1.msra.mxu0 %v70
    %191 = vmatprep.subr.mxu0 0.0
    %192 = vmatpush1.msra.mxu0 %v73
    %193 = vmatprep.subr.mxu0 0.0
    %194 = vmatpush1.msra.mxu0 %v76
    %195 = vmatprep.subr.mxu0 0.0
    %196 = vmatpush1.msra.mxu0 %v79
    %197 = vmatprep.subr.mxu0 0.0
    %198 = vmatpush1.msra.mxu0 %v82
    %199 = vmatprep.subr.mxu0 0.0
    %200 = vmatpush1.msra.mxu0 %v85
    %201 = vmatprep.subr.mxu0 0.0
    %202 = vmatpush1.msra.mxu0 %v88
    %203 = vmatprep.subr.mxu0 0.0
    %204 = vmatpush1.msra.mxu0 %v91
    %205 = vmatprep.subr.mxu0 0.0
    %206 = vmatpush1.msra.mxu0 %v94
    %207 = vmatprep.subr.mxu0 0.0
    %208 = vmatpush1.msra.mxu0 %v97
    %209 = vmatprep.subr.mxu0 0.0
    %210 = vmatpush1.msra.mxu0 %v100
    %211 = vmatprep.subr.mxu0 0.0
    %212 = vmatpush1.msra.mxu0 %v103
    %213 = vmatprep.subr.mxu0 0.0
    %214 = vmatpush1.msra.mxu0 %v106
    %215 = vmatprep.subr.mxu0 0.0
    %216 = vmatpush1.msra.mxu0 0.0
    %217 = vmatprep.subr.mxu0 0.0
    %218 = vmatpush1.msra.mxu0 0.0
    %219 = vmatprep.subr.mxu0 0.0
    %220 = vmatpush1.msra.mxu0 0.0
    %221 = vmatprep.subr.mxu0 0.0
    %222 = vmatpush1.msra.mxu0 0.0
    %223 = vmatprep.subr.mxu0 0.0
    %224 = vmatpush1.msra.mxu0 0.0
    %225 = vmatprep.subr.mxu0 0.0
    %226 = vmatpush1.msra.mxu0 0.0
    %227 = vmatprep.subr.mxu0 0.0
    %228 = vmatpush1.msra.mxu0 0.0
    %229 = vmatprep.subr.mxu0 0.0
    %230 = vmatpush1.msra.mxu0 0.0
    %231 = vmatprep.subr.mxu0 0.0
    %232 = vmatpush1.msra.mxu0 0.0
    %233 = vmatprep.subr.mxu0 0.0
    %234 = vmatpush1.msra.mxu0 0.0
    %235 = vmatprep.subr.mxu0 0.0
    %236 = vmatpush1.msra.mxu0 0.0
    %237 = vmatprep.subr.mxu0 0.0
    %238 = vmatpush1.msra.mxu0 0.0
    %239 = vmatprep.subr.mxu0 0.0
    %240 = vmatpush1.msra.mxu0 0.0
    %241 = vmatprep.subr.mxu0 0.0
    %242 = vmatpush1.msra.mxu0 0.0
    %243 = vmatprep.subr.mxu0 0.0
    %244 = vmatpush1.msra.mxu0 0.0
    %245 = vmatprep.subr.mxu0 0.0
    %246 = vmatpush1.msra.mxu0 0.0
    %247 = vmatprep.mubr.f32.mxu0 0.0
    %248 = vmatmul.mubr.f32.gmra.mrb[0].mxu0 %v108
    %v249 = vpop.f32.mrb[0].mxu0
    %v250 = vadd.f32 0.0, %v249
    %v251 = vpop.f32.mrb[0].mxu0
    %252 = vdwg.mxu0
    %v253 = vadd.f32 %v109, %v179
    %v254 = vxor.u32 %v253, 2147483648
    %v255 = vmul.f32 %v254, 1.442695
    %v256 = vpow.pop %v255
    %v257 = vadd.f32 %v256, 1.0
    %v258 = vrcp.pop %v257
    %v259 = vmul.f32 1.0, %v258
    %v260 = vadd.f32 %v110, %v181
    %v261 = vxor.u32 %v260, 2147483648
    %v262 = vmul.f32 %v261, 1.442695
    %v263 = vpow.pop %v262
    %v264 = vadd.f32 %v263, 1.0
    %v265 = vrcp.pop %v264
    %v266 = vmul.f32 1.0, %v265
    %v267 = vadd.f32 %v250, %v107
    %v268 = vmul.f32 %v259, %v267
    %v269 = vadd.f32 %v111, %v268
    %v270 = vtanh.pop %v269
    %v271 = vsub.f32 1.0, %v266
    %v272 = vmul.f32 %v271, %v270
    %v273 = vmul.f32 %v266, %v108
    %v274 = vadd.f32 %v272, %v273
    %275 = vst [vmem:[#allocation9] sm:$0xff] %v274
    %s276 = scalar_lea.vmem [#allocation3], 24
    %v277 = vld [vmem:[%s276] sm:$0xff]
    %v278 = vld [vmem:[%s276 + $0x8] sm:$0xff]
    %v279 = vld [vmem:[%s276 + $0x10] sm:$0xff]
    %280 = vmatprep.subr.mxu0 %v60
    %281 = vmatpush1.msra.mxu0 %v59
    %282 = vmatprep.subr.mxu0 %v63
    %283 = vmatpush1.msra.mxu0 %v62
    %284 = vmatprep.subr.mxu0 %v66
    %285 = vmatpush1.msra.mxu0 %v65
    %286 = vmatprep.subr.mxu0 %v69
    %287 = vmatpush1.msra.mxu0 %v68
    %288 = vmatprep.subr.mxu0 %v72
    %289 = vmatpush1.msra.mxu0 %v71
    %290 = vmatprep.subr.mxu0 %v75
    %291 = vmatpush1.msra.mxu0 %v74
    %292 = vmatprep.subr.mxu0 %v78
    %293 = vmatpush1.msra.mxu0 %v77
    %294 = vmatprep.subr.mxu0 %v81
    %295 = vmatpush1.msra.mxu0 %v80
    %296 = vmatprep.subr.mxu0 %v84
    %297 = vmatpush1.msra.mxu0 %v83
    %298 = vmatprep.subr.mxu0 %v87
    %299 = vmatpush1.msra.mxu0 %v86
    %300 = vmatprep.subr.mxu0 %v90
    %301 = vmatpush1.msra.mxu0 %v89
    %302 = vmatprep.subr.mxu0 %v93
    %303 = vmatpush1.msra.mxu0 %v92
    %304 = vmatprep.subr.mxu0 %v96
    %305 = vmatpush1.msra.mxu0 %v95
    %306 = vmatprep.subr.mxu0 %v99
    %307 = vmatpush1.msra.mxu0 %v98
    %308 = vmatprep.subr.mxu0 %v102
    %309 = vmatpush1.msra.mxu0 %v101
    %310 = vmatprep.subr.mxu0 %v105
    %311 = vmatpush1.msra.mxu0 %v104
    %312 = vmatprep.subr.mxu0 0.0
    %313 = vmatpush1.msra.mxu0 0.0
    %314 = vmatprep.subr.mxu0 0.0
    %315 = vmatpush1.msra.mxu0 0.0
    %316 = vmatprep.subr.mxu0 0.0
    %317 = vmatpush1.msra.mxu0 0.0
    %318 = vmatprep.subr.mxu0 0.0
    %319 = vmatpush1.msra.mxu0 0.0
    %320 = vmatprep.subr.mxu0 0.0
    %321 = vmatpush1.msra.mxu0 0.0
    %322 = vmatprep.subr.mxu0 0.0
    %323 = vmatpush1.msra.mxu0 0.0
    %324 = vmatprep.subr.mxu0 0.0
    %325 = vmatpush1.msra.mxu0 0.0
    %326 = vmatprep.subr.mxu0 0.0
    %327 = vmatpush1.msra.mxu0 0.0
    %328 = vmatprep.subr.mxu0 0.0
    %329 = vmatpush1.msra.mxu0 0.0
    %330 = vmatprep.subr.mxu0 0.0
    %331 = vmatpush1.msra.mxu0 0.0
    %332 = vmatprep.subr.mxu0 0.0
    %333 = vmatpush1.msra.mxu0 0.0
    %334 = vmatprep.subr.mxu0 0.0
    %335 = vmatpush1.msra.mxu0 0.0
    %336 = vmatprep.subr.mxu0 0.0
    %337 = vmatpush1.msra.mxu0 0.0
    %338 = vmatprep.subr.mxu0 0.0
    %339 = vmatpush1.msra.mxu0 0.0
    %340 = vmatprep.subr.mxu0 0.0
    %341 = vmatpush1.msra.mxu0 0.0
    %342 = vmatprep.subr.mxu0 0.0
    %343 = vmatpush1.msra.mxu0 0.0
    %344 = vmatprep.mubr.f32.mxu0 0.0
    %345 = vmatmul.mubr.f32.gmra.mrb[0].mxu0 %v274
    %v346 = vpop.f32.mrb[0].mxu0
    %v347 = vadd.f32 0.0, %v346
    %v348 = vpop.f32.mrb[0].mxu0
    %v349 = vadd.f32 0.0, %v348
    %350 = vdwg.mxu0
    %351 = vmatprep.subr.mxu0 0.0
    %352 = vmatpush1.msra.mxu0 %v61
    %353 = vmatprep.subr.mxu0 0.0
    %354 = vmatpush1.msra.mxu0 %v64
    %355 = vmatprep.subr.mxu0 0.0
    %356 = vmatpush1.msra.mxu0 %v67
    %357 = vmatprep.subr.mxu0 0.0
    %358 = vmatpush1.msra.mxu0 %v70
    %359 = vmatprep.subr.mxu0 0.0
    %360 = vmatpush1.msra.mxu0 %v73
    %361 = vmatprep.subr.mxu0 0.0
    %362 = vmatpush1.msra.mxu0 %v76
    %363 = vmatprep.subr.mxu0 0.0
    %364 = vmatpush1.msra.mxu0 %v79
    %365 = vmatprep.subr.mxu0 0.0
    %366 = vmatpush1.msra.mxu0 %v82
    %367 = vmatprep.subr.mxu0 0.0
    %368 = vmatpush1.msra.mxu0 %v85
    %369 = vmatprep.subr.mxu0 0.0
    %370 = vmatpush1.msra.mxu0 %v88
    %371 = vmatprep.subr.mxu0 0.0
    %372 = vmatpush1.msra.mxu0 %v91
    %373 = vmatprep.subr.mxu0 0.0
    %374 = vmatpush1.msra.mxu0 %v94
    %375 = vmatprep.subr.mxu0 0.0
    %376 = vmatpush1.msra.mxu0 %v97
    %377 = vmatprep.subr.mxu0 0.0
    %378 = vmatpush1.msra.mxu0 %v100
    %379 = vmatprep.subr.mxu0 0.0
    %380 = vmatpush1.msra.mxu0 %v103
    %381 = vmatprep.subr.mxu0 0.0
    %382 = vmatpush1.msra.mxu0 %v106
    %383 = vmatprep.subr.mxu0 0.0
    %384 = vmatpush1.msra.mxu0 0.0
    %385 = vmatprep.subr.mxu0 0.0
    %386 = vmatpush1.msra.mxu0 0.0
    %387 = vmatprep.subr.mxu0 0.0
    %388 = vmatpush1.msra.mxu0 0.0
    %389 = vmatprep.subr.mxu0 0.0
    %390 = vmatpush1.msra.mxu0 0.0
    %391 = vmatprep.subr.mxu0 0.0
    %392 = vmatpush1.msra.mxu0 0.0
    %393 = vmatprep.subr.mxu0 0.0
    %394 = vmatpush1.msra.mxu0 0.0
    %395 = vmatprep.subr.mxu0 0.0
    %396 = vmatpush1.msra.mxu0 0.0
    %397 = vmatprep.subr.mxu0 0.0
    %398 = vmatpush1.msra.mxu0 0.0
    %399 = vmatprep.subr.mxu0 0.0
    %400 = vmatpush1.msra.mxu0 0.0
    %401 = vmatprep.subr.mxu0 0.0
    %402 = vmatpush1.msra.mxu0 0.0
    %403 = vmatprep.subr.mxu0 0.0
    %404 = vmatpush1.msra.mxu0 0.0
    %405 = vmatprep.subr.mxu0 0.0
    %406 = vmatpush1.msra.mxu0 0.0
    %407 = vmatprep.subr.mxu0 0.0
    %408 = vmatpush1.msra.mxu0 0.0
    %409 = vmatprep.subr.mxu0 0.0
    %410 = vmatpush1.msra.mxu0 0.0
    %411 = vmatprep.subr.mxu0 0.0
    %412 = vmatpush1.msra.mxu0 0.0
    %413 = vmatprep.subr.mxu0 0.0
    %414 = vmatpush1.msra.mxu0 0.0
    %415 = vmatprep.mubr.f32.mxu0 0.0
    %416 = vmatmul.mubr.f32.gmra.mrb[0].mxu0 %v274
    %v417 = vpop.f32.mrb[0].mxu0
    %v418 = vadd.f32 0.0, %v417
    %v419 = vpop.f32.mrb[0].mxu0
    %420 = vdwg.mxu0
    %v421 = vadd.f32 %v277, %v347
    %v422 = vxor.u32 %v421, 2147483648
    %v423 = vmul.f32 %v422, 1.442695
    %v424 = vpow.pop %v423
    %v425 = vadd.f32 %v424, 1.0
    %v426 = vrcp.pop %v425
    %v427 = vmul.f32 1.0, %v426
    %v428 = vadd.f32 %v278, %v349
    %v429 = vxor.u32 %v428, 2147483648
    %v430 = vmul.f32 %v429, 1.442695
    %v431 = vpow.pop %v430
    %v432 = vadd.f32 %v431, 1.0
    %v433 = vrcp.pop %v432
    %v434 = vmul.f32 1.0, %v433
    %v435 = vadd.f32 %v418, %v107
    %v436 = vmul.f32 %v427, %v435
    %v437 = vadd.f32 %v279, %v436
    %v438 = vtanh.pop %v437
    %v439 = vsub.f32 1.0, %v434
    %v440 = vmul.f32 %v439, %v438
    %v441 = vmul.f32 %v434, %v274
    %v442 = vadd.f32 %v440, %v441
    %s443 = scalar_lea.vmem [#allocation9], 8
    %444 = vst [vmem:[%s443] sm:$0xff] %v442
    %s445 = scalar_lea.vmem [#allocation3], 48
    %v446 = vld [vmem:[%s445] sm:$0xff]
    %v447 = vld [vmem:[%s445 + $0x8] sm:$0xff]
    %v448 = vld [vmem:[%s445 + $0x10] sm:$0xff]
    %449 = vmatprep.subr.mxu0 %v60
    %450 = vmatpush1.msra.mxu0 %v59
    %451 = vmatprep.subr.mxu0 %v63
    %452 = vmatpush1.msra.mxu0 %v62
    %453 = vmatprep.subr.mxu0 %v66
    %454 = vmatpush1.msra.mxu0 %v65
    %455 = vmatprep.subr.mxu0 %v69
    %456 = vmatpush1.msra.mxu0 %v68
    %457 = vmatprep.subr.mxu0 %v72
    %458 = vmatpush1.msra.mxu0 %v71
    %459 = vmatprep.subr.mxu0 %v75
    %460 = vmatpush1.msra.mxu0 %v74
    %461 = vmatprep.subr.mxu0 %v78
    %462 = vmatpush1.msra.mxu0 %v77
    %463 = vmatprep.subr.mxu0 %v81
    %464 = vmatpush1.msra.mxu0 %v80
    %465 = vmatprep.subr.mxu0 %v84
    %466 = vmatpush1.msra.mxu0 %v83
    %467 = vmatprep.subr.mxu0 %v87
    %468 = vmatpush1.msra.mxu0 %v86
    %469 = vmatprep.subr.mxu0 %v90
    %470 = vmatpush1.msra.mxu0 %v89
    %471 = vmatprep.subr.mxu0 %v93
    %472 = vmatpush1.msra.mxu0 %v92
    %473 = vmatprep.subr.mxu0 %v96
    %474 = vmatpush1.msra.mxu0 %v95
    %475 = vmatprep.subr.mxu0 %v99
    %476 = vmatpush1.msra.mxu0 %v98
    %477 = vmatprep.subr.mxu0 %v102
    %478 = vmatpush1.msra.mxu0 %v101
    %479 = vmatprep.subr.mxu0 %v105
    %480 = vmatpush1.msra.mxu0 %v104
    %481 = vmatprep.subr.mxu0 0.0
    %482 = vmatpush1.msra.mxu0 0.0
    %483 = vmatprep.subr.mxu0 0.0
    %484 = vmatpush1.msra.mxu0 0.0
    %485 = vmatprep.subr.mxu0 0.0
    %486 = vmatpush1.msra.mxu0 0.0
    %487 = vmatprep.subr.mxu0 0.0
    %488 = vmatpush1.msra.mxu0 0.0
    %489 = vmatprep.subr.mxu0 0.0
    %490 = vmatpush1.msra.mxu0 0.0
    %491 = vmatprep.subr.mxu0 0.0
    %492 = vmatpush1.msra.mxu0 0.0
    %493 = vmatprep.subr.mxu0 0.0
    %494 = vmatpush1.msra.mxu0 0.0
    %495 = vmatprep.subr.mxu0 0.0
    %496 = vmatpush1.msra.mxu0 0.0
    %497 = vmatprep.subr.mxu0 0.0
    %498 = vmatpush1.msra.mxu0 0.0
    %499 = vmatprep.subr.mxu0 0.0
    %500 = vmatpush1.msra.mxu0 0.0
    %501 = vmatprep.subr.mxu0 0.0
    %502 = vmatpush1.msra.mxu0 0.0
    %503 = vmatprep.subr.mxu0 0.0
    %504 = vmatpush1.msra.mxu0 0.0
    %505 = vmatprep.subr.mxu0 0.0
    %506 = vmatpush1.msra.mxu0 0.0
    %507 = vmatprep.subr.mxu0 0.0
    %508 = vmatpush1.msra.mxu0 0.0
    %509 = vmatprep.subr.mxu0 0.0
    %510 = vmatpush1.msra.mxu0 0.0
    %511 = vmatprep.subr.mxu0 0.0
    %512 = vmatpush1.msra.mxu0 0.0
    %513 = vmatprep.mubr.f32.mxu0 0.0
    %514 = vmatmul.mubr.f32.gmra.mrb[0].mxu0 %v442
    %v515 = vpop.f32.mrb[0].mxu0
    %v516 = vadd.f32 0.0, %v515
    %v517 = vpop.f32.mrb[0].mxu0
    %v518 = vadd.f32 0.0, %v517
    %519 = vdwg.mxu0
    %520 = vmatprep.subr.mxu0 0.0
    %521 = vmatpush1.msra.mxu0 %v61
    %522 = vmatprep.subr.mxu0 0.0
    %523 = vmatpush1.msra.mxu0 %v64
    %524 = vmatprep.subr.mxu0 0.0
    %525 = vmatpush1.msra.mxu0 %v67
    %526 = vmatprep.subr.mxu0 0.0
    %527 = vmatpush1.msra.mxu0 %v70
    %528 = vmatprep.subr.mxu0 0.0
    %529 = vmatpush1.msra.mxu0 %v73
    %530 = vmatprep.subr.mxu0 0.0
    %531 = vmatpush1.msra.mxu0 %v76
    %532 = vmatprep.subr.mxu0 0.0
    %533 = vmatpush1.msra.mxu0 %v79
    %534 = vmatprep.subr.mxu0 0.0
    %535 = vmatpush1.msra.mxu0 %v82
    %536 = vmatprep.subr.mxu0 0.0
    %537 = vmatpush1.msra.mxu0 %v85
    %538 = vmatprep.subr.mxu0 0.0
    %539 = vmatpush1.msra.mxu0 %v88
    %540 = vmatprep.subr.mxu0 0.0
    %541 = vmatpush1.msra.mxu0 %v91
    %542 = vmatprep.subr.mxu0 0.0
    %543 = vmatpush1.msra.mxu0 %v94
    %544 = vmatprep.subr.mxu0 0.0
    %545 = vmatpush1.msra.mxu0 %v97
    %546 = vmatprep.subr.mxu0 0.0
    %547 = vmatpush1.msra.mxu0 %v100
    %548 = vmatprep.subr.mxu0 0.0
    %549 = vmatpush1.msra.mxu0 %v103
    %550 = vmatprep.subr.mxu0 0.0
    %551 = vmatpush1.msra.mxu0 %v106
    %552 = vmatprep.subr.mxu0 0.0
    %553 = vmatpush1.msra.mxu0 0.0
    %554 = vmatprep.subr.mxu0 0.0
    %555 = vmatpush1.msra.mxu0 0.0
    %556 = vmatprep.subr.mxu0 0.0
    %557 = vmatpush1.msra.mxu0 0.0
    %558 = vmatprep.subr.mxu0 0.0
    %559 = vmatpush1.msra.mxu0 0.0
    %560 = vmatprep.subr.mxu0 0.0
    %561 = vmatpush1.msra.mxu0 0.0
    %562 = vmatprep.subr.mxu0 0.0
    %563 = vmatpush1.msra.mxu0 0.0
    %564 = vmatprep.subr.mxu0 0.0
    %565 = vmatpush1.msra.mxu0 0.0
    %566 = vmatprep.subr.mxu0 0.0
    %567 = vmatpush1.msra.mxu0 0.0
    %568 = vmatprep.subr.mxu0 0.0
    %569 = vmatpush1.msra.mxu0 0.0
    %570 = vmatprep.subr.mxu0 0.0
    %571 = vmatpush1.msra.mxu0 0.0
    %572 = vmatprep.subr.mxu0 0.0
    %573 = vmatpush1.msra.mxu0 0.0
    %574 = vmatprep.subr.mxu0 0.0
    %575 = vmatpush1.msra.mxu0 0.0
    %576 = vmatprep.subr.mxu0 0.0
    %577 = vmatpush1.msra.mxu0 0.0
    %578 = vmatprep.subr.mxu0 0.0
    %579 = vmatpush1.msra.mxu0 0.0
    %580 = vmatprep.subr.mxu0 0.0
    %581 = vmatpush1.msra.mxu0 0.0
    %582 = vmatprep.subr.mxu0 0.0
    %583 = vmatpush1.msra.mxu0 0.0
    %584 = vmatprep.mubr.f32.mxu0 0.0
    %585 = vmatmul.mubr.f32.gmra.mrb[0].mxu0 %v442
    %v586 = vpop.f32.mrb[0].mxu0
    %v587 = vadd.f32 0.0, %v586
    %v588 = vpop.f32.mrb[0].mxu0
    %589 = vdwg.mxu0
    %v590 = vadd.f32 %v446, %v516
    %v591 = vxor.u32 %v590, 2147483648
    %v592 = vmul.f32 %v591, 1.442695
    %v593 = vpow.pop %v592
    %v594 = vadd.f32 %v593, 1.0
    %v595 = vrcp.pop %v594
    %v596 = vmul.f32 1.0, %v595
    %v597 = vadd.f32 %v447, %v518
    %v598 = vxor.u32 %v597, 2147483648
    %v599 = vmul.f32 %v598, 1.442695
    %v600 = vpow.pop %v599
    %v601 = vadd.f32 %v600, 1.0
    %v602 = vrcp.pop %v601
    %v603 = vmul.f32 1.0, %v602
    %v604 = vadd.f32 %v587, %v107
    %v605 = vmul.f32 %v596, %v604
    %v606 = vadd.f32 %v448, %v605
    %v607 = vtanh.pop %v606
    %v608 = vsub.f32 1.0, %v603
    %v609 = vmul.f32 %v608, %v607
    %v610 = vmul.f32 %v603, %v442
    %v611 = vadd.f32 %v609, %v610
    %s612 = scalar_lea.vmem [#allocation9], 16
    %613 = vst [vmem:[%s612] sm:$0xff] %v611
    %s614 = scalar_lea.vmem [#allocation3], 72
    %v615 = vld [vmem:[%s614] sm:$0xff]
    %v616 = vld [vmem:[%s614 + $0x8] sm:$0xff]
    %v617 = vld [vmem:[%s614 + $0x10] sm:$0xff]
    %618 = vmatprep.subr.mxu0 %v60
    %619 = vmatpush1.msra.mxu0 %v59
    %620 = vmatprep.subr.mxu0 %v63
    %621 = vmatpush1.msra.mxu0 %v62
    %622 = vmatprep.subr.mxu0 %v66
    %623 = vmatpush1.msra.mxu0 %v65
    %624 = vmatprep.subr.mxu0 %v69
    %625 = vmatpush1.msra.mxu0 %v68
    %626 = vmatprep.subr.mxu0 %v72
    %627 = vmatpush1.msra.mxu0 %v71
    %628 = vmatprep.subr.mxu0 %v75
    %629 = vmatpush1.msra.mxu0 %v74
    %630 = vmatprep.subr.mxu0 %v78
    %631 = vmatpush1.msra.mxu0 %v77
    %632 = vmatprep.subr.mxu0 %v81
    %633 = vmatpush1.msra.mxu0 %v80
    %634 = vmatprep.subr.mxu0 %v84
    %635 = vmatpush1.msra.mxu0 %v83
    %636 = vmatprep.subr.mxu0 %v87
    %637 = vmatpush1.msra.mxu0 %v86
    %638 = vmatprep.subr.mxu0 %v90
    %639 = vmatpush1.msra.mxu0 %v89
    %640 = vmatprep.subr.mxu0 %v93
    %641 = vmatpush1.msra.mxu0 %v92
    %642 = vmatprep.subr.mxu0 %v96
    %643 = vmatpush1.msra.mxu0 %v95
    %644 = vmatprep.subr.mxu0 %v99
    %645 = vmatpush1.msra.mxu0 %v98
    %646 = vmatprep.subr.mxu0 %v102
    %647 = vmatpush1.msra.mxu0 %v101
    %648 = vmatprep.subr.mxu0 %v105
    %649 = vmatpush1.msra.mxu0 %v104
    %650 = vmatprep.subr.mxu0 0.0
    %651 = vmatpush1.msra.mxu0 0.0
    %652 = vmatprep.subr.mxu0 0.0
    %653 = vmatpush1.msra.mxu0 0.0
    %654 = vmatprep.subr.mxu0 0.0
    %655 = vmatpush1.msra.mxu0 0.0
    %656 = vmatprep.subr.mxu0 0.0
    %657 = vmatpush1.msra.mxu0 0.0
    %658 = vmatprep.subr.mxu0 0.0
    %659 = vmatpush1.msra.mxu0 0.0
    %660 = vmatprep.subr.mxu0 0.0
    %661 = vmatpush1.msra.mxu0 0.0
    %662 = vmatprep.subr.mxu0 0.0
    %663 = vmatpush1.msra.mxu0 0.0
    %664 = vmatprep.subr.mxu0 0.0
    %665 = vmatpush1.msra.mxu0 0.0
    %666 = vmatprep.subr.mxu0 0.0
    %667 = vmatpush1.msra.mxu0 0.0
    %668 = vmatprep.subr.mxu0 0.0
    %669 = vmatpush1.msra.mxu0 0.0
    %670 = vmatprep.subr.mxu0 0.0
    %671 = vmatpush1.msra.mxu0 0.0
    %672 = vmatprep.subr.mxu0 0.0
    %673 = vmatpush1.msra.mxu0 0.0
    %674 = vmatprep.subr.mxu0 0.0
    %675 = vmatpush1.msra.mxu0 0.0
    %676 = vmatprep.subr.mxu0 0.0
    %677 = vmatpush1.msra.mxu0 0.0
    %678 = vmatprep.subr.mxu0 0.0
    %679 = vmatpush1.msra.mxu0 0.0
    %680 = vmatprep.subr.mxu0 0.0
    %681 = vmatpush1.msra.mxu0 0.0
    %682 = vmatprep.mubr.f32.mxu0 0.0
    %683 = vmatmul.mubr.f32.gmra.mrb[0].mxu0 %v611
    %v684 = vpop.f32.mrb[0].mxu0
    %v685 = vadd.f32 0.0, %v684
    %v686 = vpop.f32.mrb[0].mxu0
    %v687 = vadd.f32 0.0, %v686
    %688 = vdwg.mxu0
    %689 = vmatprep.subr.mxu0 0.0
    %690 = vmatpush1.msra.mxu0 %v61
    %691 = vmatprep.subr.mxu0 0.0
    %692 = vmatpush1.msra.mxu0 %v64
    %693 = vmatprep.subr.mxu0 0.0
    %694 = vmatpush1.msra.mxu0 %v67
    %695 = vmatprep.subr.mxu0 0.0
    %696 = vmatpush1.msra.mxu0 %v70
    %697 = vmatprep.subr.mxu0 0.0
    %698 = vmatpush1.msra.mxu0 %v73
    %699 = vmatprep.subr.mxu0 0.0
    %700 = vmatpush1.msra.mxu0 %v76
    %701 = vmatprep.subr.mxu0 0.0
    %702 = vmatpush1.msra.mxu0 %v79
    %703 = vmatprep.subr.mxu0 0.0
    %704 = vmatpush1.msra.mxu0 %v82
    %705 = vmatprep.subr.mxu0 0.0
    %706 = vmatpush1.msra.mxu0 %v85
    %707 = vmatprep.subr.mxu0 0.0
    %708 = vmatpush1.msra.mxu0 %v88
    %709 = vmatprep.subr.mxu0 0.0
    %710 = vmatpush1.msra.mxu0 %v91
    %711 = vmatprep.subr.mxu0 0.0
    %712 = vmatpush1.msra.mxu0 %v94
    %713 = vmatprep.subr.mxu0 0.0
    %714 = vmatpush1.msra.mxu0 %v97
    %715 = vmatprep.subr.mxu0 0.0
    %716 = vmatpush1.msra.mxu0 %v100
    %717 = vmatprep.subr.mxu0 0.0
    %718 = vmatpush1.msra.mxu0 %v103
    %719 = vmatprep.subr.mxu0 0.0
    %720 = vmatpush1.msra.mxu0 %v106
    %721 = vmatprep.subr.mxu0 0.0
    %722 = vmatpush1.msra.mxu0 0.0
    %723 = vmatprep.subr.mxu0 0.0
    %724 = vmatpush1.msra.mxu0 0.0
    %725 = vmatprep.subr.mxu0 0.0
    %726 = vmatpush1.msra.mxu0 0.0
    %727 = vmatprep.subr.mxu0 0.0
    %728 = vmatpush1.msra.mxu0 0.0
    %729 = vmatprep.subr.mxu0 0.0
    %730 = vmatpush1.msra.mxu0 0.0
    %731 = vmatprep.subr.mxu0 0.0
    %732 = vmatpush1.msra.mxu0 0.0
    %733 = vmatprep.subr.mxu0 0.0
    %734 = vmatpush1.msra.mxu0 0.0
    %735 = vmatprep.subr.mxu0 0.0
    %736 = vmatpush1.msra.mxu0 0.0
    %737 = vmatprep.subr.mxu0 0.0
    %738 = vmatpush1.msra.mxu0 0.0
    %739 = vmatprep.subr.mxu0 0.0
    %740 = vmatpush1.msra.mxu0 0.0
    %741 = vmatprep.subr.mxu0 0.0
    %742 = vmatpush1.msra.mxu0 0.0
    %743 = vmatprep.subr.mxu0 0.0
    %744 = vmatpush1.msra.mxu0 0.0
    %745 = vmatprep.subr.mxu0 0.0
    %746 = vmatpush1.msra.mxu0 0.0
    %747 = vmatprep.subr.mxu0 0.0
    %748 = vmatpush1.msra.mxu0 0.0
    %749 = vmatprep.subr.mxu0 0.0
    %750 = vmatpush1.msra.mxu0 0.0
    %751 = vmatprep.subr.mxu0 0.0
    %752 = vmatpush1.msra.mxu0 0.0
    %753 = vmatprep.mubr.f32.mxu0 0.0
    %754 = vmatmul.mubr.f32.gmra.mrb[0].mxu0 %v611
    %v755 = vpop.f32.mrb[0].mxu0
    %v756 = vadd.f32 0.0, %v755
    %v757 = vpop.f32.mrb[0].mxu0
    %758 = vdwg.mxu0
    %v759 = vadd.f32 %v615, %v685
    %v760 = vxor.u32 %v759, 2147483648
    %v761 = vmul.f32 %v760, 1.442695
    %v762 = vpow.pop %v761
    %v763 = vadd.f32 %v762, 1.0
    %v764 = vrcp.pop %v763
    %v765 = vmul.f32 1.0, %v764
    %v766 = vadd.f32 %v616, %v687
    %v767 = vxor.u32 %v766, 2147483648
    %v768 = vmul.f32 %v767, 1.442695
    %v769 = vpow.pop %v768
    %v770 = vadd.f32 %v769, 1.0
    %v771 = vrcp.pop %v770
    %v772 = vmul.f32 1.0, %v771
    %v773 = vadd.f32 %v756, %v107
    %v774 = vmul.f32 %v765, %v773
    %v775 = vadd.f32 %v617, %v774
    %v776 = vtanh.pop %v775
    %v777 = vsub.f32 1.0, %v772
    %v778 = vmul.f32 %v777, %v776
    %v779 = vmul.f32 %v772, %v611
    %v780 = vadd.f32 %v778, %v779
    %s781 = scalar_lea.vmem [#allocation9], 24
    %782 = vst [vmem:[%s781] sm:$0xff] %v780
    %s783 = scalar_lea.vmem [#allocation3], 96
    %v784 = vld [vmem:[%s783] sm:$0xff]
    %v785 = vld [vmem:[%s783 + $0x8] sm:$0xff]
    %v786 = vld [vmem:[%s783 + $0x10] sm:$0xff]
    %787 = vmatprep.subr.mxu0 %v60
    %788 = vmatpush1.msra.mxu0 %v59
    %789 = vmatprep.subr.mxu0 %v63
    %790 = vmatpush1.msra.mxu0 %v62
    %791 = vmatprep.subr.mxu0 %v66
    %792 = vmatpush1.msra.mxu0 %v65
    %793 = vmatprep.subr.mxu0 %v69
    %794 = vmatpush1.msra.mxu0 %v68
    %795 = vmatprep.subr.mxu0 %v72
    %796 = vmatpush1.msra.mxu0 %v71
    %797 = vmatprep.subr.mxu0 %v75
    %798 = vmatpush1.msra.mxu0 %v74
    %799 = vmatprep.subr.mxu0 %v78
    %800 = vmatpush1.msra.mxu0 %v77
    %801 = vmatprep.subr.mxu0 %v81
    %802 = vmatpush1.msra.mxu0 %v80
    %803 = vmatprep.subr.mxu0 %v84
    %804 = vmatpush1.msra.mxu0 %v83
    %805 = vmatprep.subr.mxu0 %v87
    %806 = vmatpush1.msra.mxu0 %v86
    %807 = vmatprep.subr.mxu0 %v90
    %808 = vmatpush1.msra.mxu0 %v89
    %809 = vmatprep.subr.mxu0 %v93
    %810 = vmatpush1.msra.mxu0 %v92
    %811 = vmatprep.subr.mxu0 %v96
    %812 = vmatpush1.msra.mxu0 %v95
    %813 = vmatprep.subr.mxu0 %v99
    %814 = vmatpush1.msra.mxu0 %v98
    %815 = vmatprep.subr.mxu0 %v102
    %816 = vmatpush1.msra.mxu0 %v101
    %817 = vmatprep.subr.mxu0 %v105
    %818 = vmatpush1.msra.mxu0 %v104
    %819 = vmatprep.subr.mxu0 0.0
    %820 = vmatpush1.msra.mxu0 0.0
    %821 = vmatprep.subr.mxu0 0.0
    %822 = vmatpush1.msra.mxu0 0.0
    %823 = vmatprep.subr.mxu0 0.0
    %824 = vmatpush1.msra.mxu0 0.0
    %825 = vmatprep.subr.mxu0 0.0
    %826 = vmatpush1.msra.mxu0 0.0
    %827 = vmatprep.subr.mxu0 0.0
    %828 = vmatpush1.msra.mxu0 0.0
    %829 = vmatprep.subr.mxu0 0.0
    %830 = vmatpush1.msra.mxu0 0.0
    %831 = vmatprep.subr.mxu0 0.0
    %832 = vmatpush1.msra.mxu0 0.0
    %833 = vmatprep.subr.mxu0 0.0
    %834 = vmatpush1.msra.mxu0 0.0
    %835 = vmatprep.subr.mxu0 0.0
    %836 = vmatpush1.msra.mxu0 0.0
    %837 = vmatprep.subr.mxu0 0.0
    %838 = vmatpush1.msra.mxu0 0.0
    %839 = vmatprep.subr.mxu0 0.0
    %840 = vmatpush1.msra.mxu0 0.0
    %841 = vmatprep.subr.mxu0 0.0
    %842 = vmatpush1.msra.mxu0 0.0
    %843 = vmatprep.subr.mxu0 0.0
    %844 = vmatpush1.msra.mxu0 0.0
    %845 = vmatprep.subr.mxu0 0.0
    %846 = vmatpush1.msra.mxu0 0.0
    %847 = vmatprep.subr.mxu0 0.0
    %848 = vmatpush1.msra.mxu0 0.0
    %849 = vmatprep.subr.mxu0 0.0
    %850 = vmatpush1.msra.mxu0 0.0
    %851 = vmatprep.mubr.f32.mxu0 0.0
    %852 = vmatmul.mubr.f32.gmra.mrb[0].mxu0 %v780
    %v853 = vpop.f32.mrb[0].mxu0
    %v854 = vadd.f32 0.0, %v853
    %v855 = vpop.f32.mrb[0].mxu0
    %v856 = vadd.f32 0.0, %v855
    %857 = vdwg.mxu0
    %858 = vmatprep.subr.mxu0 0.0
    %859 = vmatpush1.msra.mxu0 %v61
    %860 = vmatprep.subr.mxu0 0.0
    %861 = vmatpush1.msra.mxu0 %v64
    %862 = vmatprep.subr.mxu0 0.0
    %863 = vmatpush1.msra.mxu0 %v67
    %864 = vmatprep.subr.mxu0 0.0
    %865 = vmatpush1.msra.mxu0 %v70
    %866 = vmatprep.subr.mxu0 0.0
    %867 = vmatpush1.msra.mxu0 %v73
    %868 = vmatprep.subr.mxu0 0.0
    %869 = vmatpush1.msra.mxu0 %v76
    %870 = vmatprep.subr.mxu0 0.0
    %871 = vmatpush1.msra.mxu0 %v79
    %872 = vmatprep.subr.mxu0 0.0
    %873 = vmatpush1.msra.mxu0 %v82
    %874 = vmatprep.subr.mxu0 0.0
    %875 = vmatpush1.msra.mxu0 %v85
    %876 = vmatprep.subr.mxu0 0.0
    %877 = vmatpush1.msra.mxu0 %v88
    %878 = vmatprep.subr.mxu0 0.0
    %879 = vmatpush1.msra.mxu0 %v91
    %880 = vmatprep.subr.mxu0 0.0
    %881 = vmatpush1.msra.mxu0 %v94
    %882 = vmatprep.subr.mxu0 0.0
    %883 = vmatpush1.msra.mxu0 %v97
    %884 = vmatprep.subr.mxu0 0.0
    %885 = vmatpush1.msra.mxu0 %v100
    %886 = vmatprep.subr.mxu0 0.0
    %887 = vmatpush1.msra.mxu0 %v103
    %888 = vmatprep.subr.mxu0 0.0
    %889 = vmatpush1.msra.mxu0 %v106
    %890 = vmatprep.subr.mxu0 0.0
    %891 = vmatpush1.msra.mxu0 0.0
    %892 = vmatprep.subr.mxu0 0.0
    %893 = vmatpush1.msra.mxu0 0.0
    %894 = vmatprep.subr.mxu0 0.0
    %895 = vmatpush1.msra.mxu0 0.0
    %896 = vmatprep.subr.mxu0 0.0
    %897 = vmatpush1.msra.mxu0 0.0
    %898 = vmatprep.subr.mxu0 0.0
    %899 = vmatpush1.msra.mxu0 0.0
    %900 = vmatprep.subr.mxu0 0.0
    %901 = vmatpush1.msra.mxu0 0.0
    %902 = vmatprep.subr.mxu0 0.0
    %903 = vmatpush1.msra.mxu0 0.0
    %904 = vmatprep.subr.mxu0 0.0
    %905 = vmatpush1.msra.mxu0 0.0
    %906 = vmatprep.subr.mxu0 0.0
    %907 = vmatpush1.msra.mxu0 0.0
    %908 = vmatprep.subr.mxu0 0.0
    %909 = vmatpush1.msra.mxu0 0.0
    %910 = vmatprep.subr.mxu0 0.0
    %911 = vmatpush1.msra.mxu0 0.0
    %912 = vmatprep.subr.mxu0 0.0
    %913 = vmatpush1.msra.mxu0 0.0
    %914 = vmatprep.subr.mxu0 0.0
    %915 = vmatpush1.msra.mxu0 0.0
    %916 = vmatprep.subr.mxu0 0.0
    %917 = vmatpush1.msra.mxu0 0.0
    %918 = vmatprep.subr.mxu0 0.0
    %919 = vmatpush1.msra.mxu0 0.0
    %920 = vmatprep.subr.mxu0 0.0
    %921 = vmatpush1.msra.mxu0 0.0
    %922 = vmatprep.mubr.f32.mxu0 0.0
    %923 = vmatmul.mubr.f32.gmra.mrb[0].mxu0 %v780
    %v924 = vpop.f32.mrb[0].mxu0
    %v925 = vadd.f32 0.0, %v924
    %v926 = vpop.f32.mrb[0].mxu0
    %927 = vdwg.mxu0
    %v928 = vadd.f32 %v784, %v854
    %v929 = vxor.u32 %v928, 2147483648
    %v930 = vmul.f32 %v929, 1.442695
    %v931 = vpow.pop %v930
    %v932 = vadd.f32 %v931, 1.0
    %v933 = vrcp.pop %v932
    %v934 = vmul.f32 1.0, %v933
    %v935 = vadd.f32 %v785, %v856
    %v936 = vxor.u32 %v935, 2147483648
    %v937 = vmul.f32 %v936, 1.442695
    %v938 = vpow.pop %v937
    %v939 = vadd.f32 %v938, 1.0
    %v940 = vrcp.pop %v939
    %v941 = vmul.f32 1.0, %v940
    %v942 = vadd.f32 %v925, %v107
    %v943 = vmul.f32 %v934, %v942
    %v944 = vadd.f32 %v786, %v943
    %v945 = vtanh.pop %v944
    %v946 = vsub.f32 1.0, %v941
    %v947 = vmul.f32 %v946, %v945
    %v948 = vmul.f32 %v941, %v780
    %v949 = vadd.f32 %v947, %v948
    %s950 = scalar_lea.vmem [#allocation9], 32
    %951 = vst [vmem:[%s950] sm:$0xff] %v949
    %s952 = scalar_lea.vmem [#allocation3], 120
    %v953 = vld [vmem:[%s952] sm:$0xff]
    %v954 = vld [vmem:[%s952 + $0x8] sm:$0xff]
    %v955 = vld [vmem:[%s952 + $0x10] sm:$0xff]
    %956 = vmatprep.subr.mxu0 %v60
    %957 = vmatpush1.msra.mxu0 %v59
    %958 = vmatprep.subr.mxu0 %v63
    %959 = vmatpush1.msra.mxu0 %v62
    %960 = vmatprep.subr.mxu0 %v66
    %961 = vmatpush1.msra.mxu0 %v65
    %962 = vmatprep.subr.mxu0 %v69
    %963 = vmatpush1.msra.mxu0 %v68
    %964 = vmatprep.subr.mxu0 %v72
    %965 = vmatpush1.msra.mxu0 %v71
    %966 = vmatprep.subr.mxu0 %v75
    %967 = vmatpush1.msra.mxu0 %v74
    %968 = vmatprep.subr.mxu0 %v78
    %969 = vmatpush1.msra.mxu0 %v77
    %970 = vmatprep.subr.mxu0 %v81
    %971 = vmatpush1.msra.mxu0 %v80
    %972 = vmatprep.subr.mxu0 %v84
    %973 = vmatpush1.msra.mxu0 %v83
    %974 = vmatprep.subr.mxu0 %v87
    %975 = vmatpush1.msra.mxu0 %v86
    %976 = vmatprep.subr.mxu0 %v90
    %977 = vmatpush1.msra.mxu0 %v89
    %978 = vmatprep.subr.mxu0 %v93
    %979 = vmatpush1.msra.mxu0 %v92
    %980 = vmatprep.subr.mxu0 %v96
    %981 = vmatpush1.msra.mxu0 %v95
    %982 = vmatprep.subr.mxu0 %v99
    %983 = vmatpush1.msra.mxu0 %v98
    %984 = vmatprep.subr.mxu0 %v102
    %985 = vmatpush1.msra.mxu0 %v101
    %986 = vmatprep.subr.mxu0 %v105
    %987 = vmatpush1.msra.mxu0 %v104
    %988 = vmatprep.subr.mxu0 0.0
    %989 = vmatpush1.msra.mxu0 0.0
    %990 = vmatprep.subr.mxu0 0.0
    %991 = vmatpush1.msra.mxu0 0.0
    %992 = vmatprep.subr.mxu0 0.0
    %993 = vmatpush1.msra.mxu0 0.0
    %994 = vmatprep.subr.mxu0 0.0
    %995 = vmatpush1.msra.mxu0 0.0
    %996 = vmatprep.subr.mxu0 0.0
    %997 = vmatpush1.msra.mxu0 0.0
    %998 = vmatprep.subr.mxu0 0.0
    %999 = vmatpush1.msra.mxu0 0.0
    %1000 = vmatprep.subr.mxu0 0.0
    %1001 = vmatpush1.msra.mxu0 0.0
    %1002 = vmatprep.subr.mxu0 0.0
    %1003 = vmatpush1.msra.mxu0 0.0
    %1004 = vmatprep.subr.mxu0 0.0
    %1005 = vmatpush1.msra.mxu0 0.0
    %1006 = vmatprep.subr.mxu0 0.0
    %1007 = vmatpush1.msra.mxu0 0.0
    %1008 = vmatprep.subr.mxu0 0.0
    %1009 = vmatpush1.msra.mxu0 0.0
    %1010 = vmatprep.subr.mxu0 0.0
    %1011 = vmatpush1.msra.mxu0 0.0
    %1012 = vmatprep.subr.mxu0 0.0
    %1013 = vmatpush1.msra.mxu0 0.0
    %1014 = vmatprep.subr.mxu0 0.0
    %1015 = vmatpush1.msra.mxu0 0.0
    %1016 = vmatprep.subr.mxu0 0.0
    %1017 = vmatpush1.msra.mxu0 0.0
    %1018 = vmatprep.subr.mxu0 0.0
    %1019 = vmatpush1.msra.mxu0 0.0
    %1020 = vmatprep.mubr.f32.mxu0 0.0
    %1021 = vmatmul.mubr.f32.gmra.mrb[0].mxu0 %v949
    %v1022 = vpop.f32.mrb[0].mxu0
    %v1023 = vadd.f32 0.0, %v1022
    %v1024 = vpop.f32.mrb[0].mxu0
    %v1025 = vadd.f32 0.0, %v1024
    %1026 = vdwg.mxu0
    %1027 = vmatprep.subr.mxu0 0.0
    %1028 = vmatpush1.msra.mxu0 %v61
    %1029 = vmatprep.subr.mxu0 0.0
    %1030 = vmatpush1.msra.mxu0 %v64
    %1031 = vmatprep.subr.mxu0 0.0
    %1032 = vmatpush1.msra.mxu0 %v67
    %1033 = vmatprep.subr.mxu0 0.0
    %1034 = vmatpush1.msra.mxu0 %v70
    %1035 = vmatprep.subr.mxu0 0.0
    %1036 = vmatpush1.msra.mxu0 %v73
    %1037 = vmatprep.subr.mxu0 0.0
    %1038 = vmatpush1.msra.mxu0 %v76
    %1039 = vmatprep.subr.mxu0 0.0
    %1040 = vmatpush1.msra.mxu0 %v79
    %1041 = vmatprep.subr.mxu0 0.0
    %1042 = vmatpush1.msra.mxu0 %v82
    %1043 = vmatprep.subr.mxu0 0.0
    %1044 = vmatpush1.msra.mxu0 %v85
    %1045 = vmatprep.subr.mxu0 0.0
    %1046 = vmatpush1.msra.mxu0 %v88
    %1047 = vmatprep.subr.mxu0 0.0
    %1048 = vmatpush1.msra.mxu0 %v91
    %1049 = vmatprep.subr.mxu0 0.0
    %1050 = vmatpush1.msra.mxu0 %v94
    %1051 = vmatprep.subr.mxu0 0.0
    %1052 = vmatpush1.msra.mxu0 %v97
    %1053 = vmatprep.subr.mxu0 0.0
    %1054 = vmatpush1.msra.mxu0 %v100
    %1055 = vmatprep.subr.mxu0 0.0
    %1056 = vmatpush1.msra.mxu0 %v103
    %1057 = vmatprep.subr.mxu0 0.0
    %1058 = vmatpush1.msra.mxu0 %v106
    %1059 = vmatprep.subr.mxu0 0.0
    %1060 = vmatpush1.msra.mxu0 0.0
    %1061 = vmatprep.subr.mxu0 0.0
    %1062 = vmatpush1.msra.mxu0 0.0
    %1063 = vmatprep.subr.mxu0 0.0
    %1064 = vmatpush1.msra.mxu0 0.0
    %1065 = vmatprep.subr.mxu0 0.0
    %1066 = vmatpush1.msra.mxu0 0.0
    %1067 = vmatprep.subr.mxu0 0.0
    %1068 = vmatpush1.msra.mxu0 0.0
    %1069 = vmatprep.subr.mxu0 0.0
    %1070 = vmatpush1.msra.mxu0 0.0
    %1071 = vmatprep.subr.mxu0 0.0
    %1072 = vmatpush1.msra.mxu0 0.0
    %1073 = vmatprep.subr.mxu0 0.0
    %1074 = vmatpush1.msra.mxu0 0.0
    %1075 = vmatprep.subr.mxu0 0.0
    %1076 = vmatpush1.msra.mxu0 0.0
    %1077 = vmatprep.subr.mxu0 0.0
    %1078 = vmatpush1.msra.mxu0 0.0
    %1079 = vmatprep.subr.mxu0 0.0
    %1080 = vmatpush1.msra.mxu0 0.0
    %1081 = vmatprep.subr.mxu0 0.0
    %1082 = vmatpush1.msra.mxu0 0.0
    %1083 = vmatprep.subr.mxu0 0.0
    %1084 = vmatpush1.msra.mxu0 0.0
    %1085 = vmatprep.subr.mxu0 0.0
    %1086 = vmatpush1.msra.mxu0 0.0
    %1087 = vmatprep.subr.mxu0 0.0
    %1088 = vmatpush1.msra.mxu0 0.0
    %1089 = vmatprep.subr.mxu0 0.0
    %1090 = vmatpush1.msra.mxu0 0.0
    %1091 = vmatprep.mubr.f32.mxu0 0.0
    %1092 = vmatmul.mubr.f32.gmra.mrb[0].mxu0 %v949
    %v1093 = vpop.f32.mrb[0].mxu0
    %v1094 = vadd.f32 0.0, %v1093
    %v1095 = vpop.f32.mrb[0].mxu0
    %1096 = vdwg.mxu0
    %v1097 = vadd.f32 %v953, %v1023
    %v1098 = vxor.u32 %v1097, 2147483648
    %v1099 = vmul.f32 %v1098, 1.442695
    %v1100 = vpow.pop %v1099
    %v1101 = vadd.f32 %v1100, 1.0
    %v1102 = vrcp.pop %v1101
    %v1103 = vmul.f32 1.0, %v1102
    %v1104 = vadd.f32 %v954, %v1025
    %v1105 = vxor.u32 %v1104, 2147483648
    %v1106 = vmul.f32 %v1105, 1.442695
    %v1107 = vpow.pop %v1106
    %v1108 = vadd.f32 %v1107, 1.0
    %v1109 = vrcp.pop %v1108
    %v1110 = vmul.f32 1.0, %v1109
    %v1111 = vadd.f32 %v1094, %v107
    %v1112 = vmul.f32 %v1103, %v1111
    %v1113 = vadd.f32 %v955, %v1112
    %v1114 = vtanh.pop %v1113
    %v1115 = vsub.f32 1.0, %v1110
    %v1116 = vmul.f32 %v1115, %v1114
    %v1117 = vmul.f32 %v1110, %v949
    %v1118 = vadd.f32 %v1116, %v1117
    %s1119 = scalar_lea.vmem [#allocation9], 40
    %1120 = vst [vmem:[%s1119] sm:$0xff] %v1118
    %s1121 = scalar_lea.vmem [#allocation3], 144
    %v1122 = vld [vmem:[%s1121] sm:$0xff]
    %v1123 = vld [vmem:[%s1121 + $0x8] sm:$0xff]
    %v1124 = vld [vmem:[%s1121 + $0x10] sm:$0xff]
    %1125 = vmatprep.subr.mxu0 %v60
    %1126 = vmatpush1.msra.mxu0 %v59
    %1127 = vmatprep.subr.mxu0 %v63
    %1128 = vmatpush1.msra.mxu0 %v62
    %1129 = vmatprep.subr.mxu0 %v66
    %1130 = vmatpush1.msra.mxu0 %v65
    %1131 = vmatprep.subr.mxu0 %v69
    %1132 = vmatpush1.msra.mxu0 %v68
    %1133 = vmatprep.subr.mxu0 %v72
    %1134 = vmatpush1.msra.mxu0 %v71
    %1135 = vmatprep.subr.mxu0 %v75
    %1136 = vmatpush1.msra.mxu0 %v74
    %1137 = vmatprep.subr.mxu0 %v78
    %1138 = vmatpush1.msra.mxu0 %v77
    %1139 = vmatprep.subr.mxu0 %v81
    %1140 = vmatpush1.msra.mxu0 %v80
    %1141 = vmatprep.subr.mxu0 %v84
    %1142 = vmatpush1.msra.mxu0 %v83
    %1143 = vmatprep.subr.mxu0 %v87
    %1144 = vmatpush1.msra.mxu0 %v86
    %1145 = vmatprep.subr.mxu0 %v90
    %1146 = vmatpush1.msra.mxu0 %v89
    %1147 = vmatprep.subr.mxu0 %v93
    %1148 = vmatpush1.msra.mxu0 %v92
    %1149 = vmatprep.subr.mxu0 %v96
    %1150 = vmatpush1.msra.mxu0 %v95
    %1151 = vmatprep.subr.mxu0 %v99
    %1152 = vmatpush1.msra.mxu0 %v98
    %1153 = vmatprep.subr.mxu0 %v102
    %1154 = vmatpush1.msra.mxu0 %v101
    %1155 = vmatprep.subr.mxu0 %v105
    %1156 = vmatpush1.msra.mxu0 %v104
    %1157 = vmatprep.subr.mxu0 0.0
    %1158 = vmatpush1.msra.mxu0 0.0
    %1159 = vmatprep.subr.mxu0 0.0
    %1160 = vmatpush1.msra.mxu0 0.0
    %1161 = vmatprep.subr.mxu0 0.0
    %1162 = vmatpush1.msra.mxu0 0.0
    %1163 = vmatprep.subr.mxu0 0.0
    %1164 = vmatpush1.msra.mxu0 0.0
    %1165 = vmatprep.subr.mxu0 0.0
    %1166 = vmatpush1.msra.mxu0 0.0
    %1167 = vmatprep.subr.mxu0 0.0
    %1168 = vmatpush1.msra.mxu0 0.0
    %1169 = vmatprep.subr.mxu0 0.0
    %1170 = vmatpush1.msra.mxu0 0.0
    %1171 = vmatprep.subr.mxu0 0.0
    %1172 = vmatpush1.msra.mxu0 0.0
    %1173 = vmatprep.subr.mxu0 0.0
    %1174 = vmatpush1.msra.mxu0 0.0
    %1175 = vmatprep.subr.mxu0 0.0
    %1176 = vmatpush1.msra.mxu0 0.0
    %1177 = vmatprep.subr.mxu0 0.0
    %1178 = vmatpush1.msra.mxu0 0.0
    %1179 = vmatprep.subr.mxu0 0.0
    %1180 = vmatpush1.msra.mxu0 0.0
    %1181 = vmatprep.subr.mxu0 0.0
    %1182 = vmatpush1.msra.mxu0 0.0
    %1183 = vmatprep.subr.mxu0 0.0
    %1184 = vmatpush1.msra.mxu0 0.0
    %1185 = vmatprep.subr.mxu0 0.0
    %1186 = vmatpush1.msra.mxu0 0.0
    %1187 = vmatprep.subr.mxu0 0.0
    %1188 = vmatpush1.msra.mxu0 0.0
    %1189 = vmatprep.mubr.f32.mxu0 0.0
    %1190 = vmatmul.mubr.f32.gmra.mrb[0].mxu0 %v1118
    %v1191 = vpop.f32.mrb[0].mxu0
    %v1192 = vadd.f32 0.0, %v1191
    %v1193 = vpop.f32.mrb[0].mxu0
    %v1194 = vadd.f32 0.0, %v1193
    %1195 = vdwg.mxu0
    %1196 = vmatprep.subr.mxu0 0.0
    %1197 = vmatpush1.msra.mxu0 %v61
    %1198 = vmatprep.subr.mxu0 0.0
    %1199 = vmatpush1.msra.mxu0 %v64
    %1200 = vmatprep.subr.mxu0 0.0
    %1201 = vmatpush1.msra.mxu0 %v67
    %1202 = vmatprep.subr.mxu0 0.0
    %1203 = vmatpush1.msra.mxu0 %v70
    %1204 = vmatprep.subr.mxu0 0.0
    %1205 = vmatpush1.msra.mxu0 %v73
    %1206 = vmatprep.subr.mxu0 0.0
    %1207 = vmatpush1.msra.mxu0 %v76
    %1208 = vmatprep.subr.mxu0 0.0
    %1209 = vmatpush1.msra.mxu0 %v79
    %1210 = vmatprep.subr.mxu0 0.0
    %1211 = vmatpush1.msra.mxu0 %v82
    %1212 = vmatprep.subr.mxu0 0.0
    %1213 = vmatpush1.msra.mxu0 %v85
    %1214 = vmatprep.subr.mxu0 0.0
    %1215 = vmatpush1.msra.mxu0 %v88
    %1216 = vmatprep.subr.mxu0 0.0
    %1217 = vmatpush1.msra.mxu0 %v91
    %1218 = vmatprep.subr.mxu0 0.0
    %1219 = vmatpush1.msra.mxu0 %v94
    %1220 = vmatprep.subr.mxu0 0.0
    %1221 = vmatpush1.msra.mxu0 %v97
    %1222 = vmatprep.subr.mxu0 0.0
    %1223 = vmatpush1.msra.mxu0 %v100
    %1224 = vmatprep.subr.mxu0 0.0
    %1225 = vmatpush1.msra.mxu0 %v103
    %1226 = vmatprep.subr.mxu0 0.0
    %1227 = vmatpush1.msra.mxu0 %v106
    %1228 = vmatprep.subr.mxu0 0.0
    %1229 = vmatpush1.msra.mxu0 0.0
    %1230 = vmatprep.subr.mxu0 0.0
    %1231 = vmatpush1.msra.mxu0 0.0
    %1232 = vmatprep.subr.mxu0 0.0
    %1233 = vmatpush1.msra.mxu0 0.0
    %1234 = vmatprep.subr.mxu0 0.0
    %1235 = vmatpush1.msra.mxu0 0.0
    %1236 = vmatprep.subr.mxu0 0.0
    %1237 = vmatpush1.msra.mxu0 0.0
    %1238 = vmatprep.subr.mxu0 0.0
    %1239 = vmatpush1.msra.mxu0 0.0
    %1240 = vmatprep.subr.mxu0 0.0
    %1241 = vmatpush1.msra.mxu0 0.0
    %1242 = vmatprep.subr.mxu0 0.0
    %1243 = vmatpush1.msra.mxu0 0.0
    %1244 = vmatprep.subr.mxu0 0.0
    %1245 = vmatpush1.msra.mxu0 0.0
    %1246 = vmatprep.subr.mxu0 0.0
    %1247 = vmatpush1.msra.mxu0 0.0
    %1248 = vmatprep.subr.mxu0 0.0
    %1249 = vmatpush1.msra.mxu0 0.0
    %1250 = vmatprep.subr.mxu0 0.0
    %1251 = vmatpush1.msra.mxu0 0.0
    %1252 = vmatprep.subr.mxu0 0.0
    %1253 = vmatpush1.msra.mxu0 0.0
    %1254 = vmatprep.subr.mxu0 0.0
    %1255 = vmatpush1.msra.mxu0 0.0
    %1256 = vmatprep.subr.mxu0 0.0
    %1257 = vmatpush1.msra.mxu0 0.0
    %1258 = vmatprep.subr.mxu0 0.0
    %1259 = vmatpush1.msra.mxu0 0.0
    %1260 = vmatprep.mubr.f32.mxu0 0.0
    %1261 = vmatmul.mubr.f32.gmra.mrb[0].mxu0 %v1118
    %v1262 = vpop.f32.mrb[0].mxu0
    %v1263 = vadd.f32 0.0, %v1262
    %v1264 = vpop.f32.mrb[0].mxu0
    %1265 = vdwg.mxu0
    %v1266 = vadd.f32 %v1122, %v1192
    %v1267 = vxor.u32 %v1266, 2147483648
    %v1268 = vmul.f32 %v1267, 1.442695
    %v1269 = vpow.pop %v1268
    %v1270 = vadd.f32 %v1269, 1.0
    %v1271 = vrcp.pop %v1270
    %v1272 = vmul.f32 1.0, %v1271
    %v1273 = vadd.f32 %v1123, %v1194
    %v1274 = vxor.u32 %v1273, 2147483648
    %v1275 = vmul.f32 %v1274, 1.442695
    %v1276 = vpow.pop %v1275
    %v1277 = vadd.f32 %v1276, 1.0
    %v1278 = vrcp.pop %v1277
    %v1279 = vmul.f32 1.0, %v1278
    %v1280 = vadd.f32 %v1263, %v107
    %v1281 = vmul.f32 %v1272, %v1280
    %v1282 = vadd.f32 %v1124, %v1281
    %v1283 = vtanh.pop %v1282
    %v1284 = vsub.f32 1.0, %v1279
    %v1285 = vmul.f32 %v1284, %v1283
    %v1286 = vmul.f32 %v1279, %v1118
    %v1287 = vadd.f32 %v1285, %v1286
    %s1288 = scalar_lea.vmem [#allocation9], 48
    %1289 = vst [vmem:[%s1288] sm:$0xff] %v1287
    %s1290 = scalar_lea.vmem [#allocation3], 168
    %v1291 = vld [vmem:[%s1290] sm:$0xff]
    %v1292 = vld [vmem:[%s1290 + $0x8] sm:$0xff]
    %v1293 = vld [vmem:[%s1290 + $0x10] sm:$0xff]
    %1294 = vmatprep.subr.mxu0 %v60
    %1295 = vmatpush1.msra.mxu0 %v59
    %1296 = vmatprep.subr.mxu0 %v63
    %1297 = vmatpush1.msra.mxu0 %v62
    %1298 = vmatprep.subr.mxu0 %v66
    %1299 = vmatpush1.msra.mxu0 %v65
    %1300 = vmatprep.subr.mxu0 %v69
    %1301 = vmatpush1.msra.mxu0 %v68
    %1302 = vmatprep.subr.mxu0 %v72
    %1303 = vmatpush1.msra.mxu0 %v71
    %1304 = vmatprep.subr.mxu0 %v75
    %1305 = vmatpush1.msra.mxu0 %v74
    %1306 = vmatprep.subr.mxu0 %v78
    %1307 = vmatpush1.msra.mxu0 %v77
    %1308 = vmatprep.subr.mxu0 %v81
    %1309 = vmatpush1.msra.mxu0 %v80
    %1310 = vmatprep.subr.mxu0 %v84
    %1311 = vmatpush1.msra.mxu0 %v83
    %1312 = vmatprep.subr.mxu0 %v87
    %1313 = vmatpush1.msra.mxu0 %v86
    %1314 = vmatprep.subr.mxu0 %v90
    %1315 = vmatpush1.msra.mxu0 %v89
    %1316 = vmatprep.subr.mxu0 %v93
    %1317 = vmatpush1.msra.mxu0 %v92
    %1318 = vmatprep.subr.mxu0 %v96
    %1319 = vmatpush1.msra.mxu0 %v95
    %1320 = vmatprep.subr.mxu0 %v99
    %1321 = vmatpush1.msra.mxu0 %v98
    %1322 = vmatprep.subr.mxu0 %v102
    %1323 = vmatpush1.msra.mxu0 %v101
    %1324 = vmatprep.subr.mxu0 %v105
    %1325 = vmatpush1.msra.mxu0 %v104
    %1326 = vmatprep.subr.mxu0 0.0
    %1327 = vmatpush1.msra.mxu0 0.0
    %1328 = vmatprep.subr.mxu0 0.0
    %1329 = vmatpush1.msra.mxu0 0.0
    %1330 = vmatprep.subr.mxu0 0.0
    %1331 = vmatpush1.msra.mxu0 0.0
    %1332 = vmatprep.subr.mxu0 0.0
    %1333 = vmatpush1.msra.mxu0 0.0
    %1334 = vmatprep.subr.mxu0 0.0
    %1335 = vmatpush1.msra.mxu0 0.0
    %1336 = vmatprep.subr.mxu0 0.0
    %1337 = vmatpush1.msra.mxu0 0.0
    %1338 = vmatprep.subr.mxu0 0.0
    %1339 = vmatpush1.msra.mxu0 0.0
    %1340 = vmatprep.subr.mxu0 0.0
    %1341 = vmatpush1.msra.mxu0 0.0
    %1342 = vmatprep.subr.mxu0 0.0
    %1343 = vmatpush1.msra.mxu0 0.0
    %1344 = vmatprep.subr.mxu0 0.0
    %1345 = vmatpush1.msra.mxu0 0.0
    %1346 = vmatprep.subr.mxu0 0.0
    %1347 = vmatpush1.msra.mxu0 0.0
    %1348 = vmatprep.subr.mxu0 0.0
    %1349 = vmatpush1.msra.mxu0 0.0
    %1350 = vmatprep.subr.mxu0 0.0
    %1351 = vmatpush1.msra.mxu0 0.0
    %1352 = vmatprep.subr.mxu0 0.0
    %1353 = vmatpush1.msra.mxu0 0.0
    %1354 = vmatprep.subr.mxu0 0.0
    %1355 = vmatpush1.msra.mxu0 0.0
    %1356 = vmatprep.subr.mxu0 0.0
    %1357 = vmatpush1.msra.mxu0 0.0
    %1358 = vmatprep.mubr.f32.mxu0 0.0
    %1359 = vmatmul.mubr.f32.gmra.mrb[0].mxu0 %v1287
    %v1360 = vpop.f32.mrb[0].mxu0
    %v1361 = vadd.f32 0.0, %v1360
    %v1362 = vpop.f32.mrb[0].mxu0
    %v1363 = vadd.f32 0.0, %v1362
    %1364 = vdwg.mxu0
    %1365 = vmatprep.subr.mxu0 0.0
    %1366 = vmatpush1.msra.mxu0 %v61
    %1367 = vmatprep.subr.mxu0 0.0
    %1368 = vmatpush1.msra.mxu0 %v64
    %1369 = vmatprep.subr.mxu0 0.0
    %1370 = vmatpush1.msra.mxu0 %v67
    %1371 = vmatprep.subr.mxu0 0.0
    %1372 = vmatpush1.msra.mxu0 %v70
    %1373 = vmatprep.subr.mxu0 0.0
    %1374 = vmatpush1.msra.mxu0 %v73
    %1375 = vmatprep.subr.mxu0 0.0
    %1376 = vmatpush1.msra.mxu0 %v76
    %1377 = vmatprep.subr.mxu0 0.0
    %1378 = vmatpush1.msra.mxu0 %v79
    %1379 = vmatprep.subr.mxu0 0.0
    %1380 = vmatpush1.msra.mxu0 %v82
    %1381 = vmatprep.subr.mxu0 0.0
    %1382 = vmatpush1.msra.mxu0 %v85
    %1383 = vmatprep.subr.mxu0 0.0
    %1384 = vmatpush1.msra.mxu0 %v88
    %1385 = vmatprep.subr.mxu0 0.0
    %1386 = vmatpush1.msra.mxu0 %v91
    %1387 = vmatprep.subr.mxu0 0.0
    %1388 = vmatpush1.msra.mxu0 %v94
    %1389 = vmatprep.subr.mxu0 0.0
    %1390 = vmatpush1.msra.mxu0 %v97
    %1391 = vmatprep.subr.mxu0 0.0
    %1392 = vmatpush1.msra.mxu0 %v100
    %1393 = vmatprep.subr.mxu0 0.0
    %1394 = vmatpush1.msra.mxu0 %v103
    %1395 = vmatprep.subr.mxu0 0.0
    %1396 = vmatpush1.msra.mxu0 %v106
    %1397 = vmatprep.subr.mxu0 0.0
    %1398 = vmatpush1.msra.mxu0 0.0
    %1399 = vmatprep.subr.mxu0 0.0
    %1400 = vmatpush1.msra.mxu0 0.0
    %1401 = vmatprep.subr.mxu0 0.0
    %1402 = vmatpush1.msra.mxu0 0.0
    %1403 = vmatprep.subr.mxu0 0.0
    %1404 = vmatpush1.msra.mxu0 0.0
    %1405 = vmatprep.subr.mxu0 0.0
    %1406 = vmatpush1.msra.mxu0 0.0
    %1407 = vmatprep.subr.mxu0 0.0
    %1408 = vmatpush1.msra.mxu0 0.0
    %1409 = vmatprep.subr.mxu0 0.0
    %1410 = vmatpush1.msra.mxu0 0.0
    %1411 = vmatprep.subr.mxu0 0.0
    %1412 = vmatpush1.msra.mxu0 0.0
    %1413 = vmatprep.subr.mxu0 0.0
    %1414 = vmatpush1.msra.mxu0 0.0
    %1415 = vmatprep.subr.mxu0 0.0
    %1416 = vmatpush1.msra.mxu0 0.0
    %1417 = vmatprep.subr.mxu0 0.0
    %1418 = vmatpush1.msra.mxu0 0.0
    %1419 = vmatprep.subr.mxu0 0.0
    %1420 = vmatpush1.msra.mxu0 0.0
    %1421 = vmatprep.subr.mxu0 0.0
    %1422 = vmatpush1.msra.mxu0 0.0
    %1423 = vmatprep.subr.mxu0 0.0
    %1424 = vmatpush1.msra.mxu0 0.0
    %1425 = vmatprep.subr.mxu0 0.0
    %1426 = vmatpush1.msra.mxu0 0.0
    %1427 = vmatprep.subr.mxu0 0.0
    %1428 = vmatpush1.msra.mxu0 0.0
    %1429 = vmatprep.mubr.f32.mxu0 0.0
    %1430 = vmatmul.mubr.f32.gmra.mrb[0].mxu0 %v1287
    %v1431 = vpop.f32.mrb[0].mxu0
    %v1432 = vadd.f32 0.0, %v1431
    %v1433 = vpop.f32.mrb[0].mxu0
    %1434 = vdwg.mxu0
    %v1435 = vadd.f32 %v1291, %v1361
    %v1436 = vxor.u32 %v1435, 2147483648
    %v1437 = vmul.f32 %v1436, 1.442695
    %v1438 = vpow.pop %v1437
    %v1439 = vadd.f32 %v1438, 1.0
    %v1440 = vrcp.pop %v1439
    %v1441 = vmul.f32 1.0, %v1440
    %v1442 = vadd.f32 %v1292, %v1363
    %v1443 = vxor.u32 %v1442, 2147483648
    %v1444 = vmul.f32 %v1443, 1.442695
    %v1445 = vpow.pop %v1444
    %v1446 = vadd.f32 %v1445, 1.0
    %v1447 = vrcp.pop %v1446
    %v1448 = vmul.f32 1.0, %v1447
    %v1449 = vadd.f32 %v1432, %v107
    %v1450 = vmul.f32 %v1441, %v1449
    %v1451 = vadd.f32 %v1293, %v1450
    %v1452 = vtanh.pop %v1451
    %v1453 = vsub.f32 1.0, %v1448
    %v1454 = vmul.f32 %v1453, %v1452
    %v1455 = vmul.f32 %v1448, %v1287
    %v1456 = vadd.f32 %v1454, %v1455
    %s1457 = scalar_lea.vmem [#allocation9], 56
    %1458 = vst [vmem:[%s1457] sm:$0xff] %v1456
    %1459 = vst [vmem:[#allocation2] sm:$0xff] %v1456
    // Predicated region
    $region30: #{tpu_custom_call.1} parent=1 // pred_check
      _
    $region31: #{tpu_custom_call.1} parent=1 // pred_check_branch
      %1461 = sbr.rel (0) target = $region33
    $region32: #{tpu_custom_call.1} parent=1 // pred_region
      %s1463 = ssub.s32 1024, 1024
      %1464 = vsyncadd [#allocation5], %s1463
      %s1465 = sshll.u32 [#allocation9], 4
      %s1466 = int_to_ptr.vmem [resolvable:$true] %s1465
      %1471 = dma.vmem_to_hbm [thread:$0]  %s1466, 1024, %s3, [#allocation5], 128, 128, 8
    $region33: #{tpu_custom_call.1} parent=1 // pred_fallthru
      _
    // Predicated region
    $region34: #{tpu_custom_call.1} parent=1 // pred_check
      _
    $region35: #{tpu_custom_call.1} parent=1 // pred_check_branch
      %1473 = sbr.rel (0) target = $region37
    $region36: #{tpu_custom_call.1} parent=1 // pred_region
      %1474 = dma.done [#allocation5], 1024
    $region37: #{tpu_custom_call.1} parent=1 // pred_fallthru
      _
    %1475 = vsyncpa [#allocation4], 1
    %1476 = vsyncpa [#allocation7], 1
    %1477 = vsyncpa [#allocation5], 1

// kernel: tpu_custom_call.1
$region0: #{tpu_custom_call.1}
  #allocation0 [shape = 'u32[]', space=smem, size = 0x4, offset = 0x4, fixed_abs, tag = 'smem constant byte address 0x4 - core index']
  #allocation1 [shape = 'u32[144,128]{1,0:T(1,128)}', space=vmem, size = 0x12000, scoped, tag = 'internal scratch']
  #allocation2 [shape = 'f32[8,128]{1,0:T(8,128)}', space=vmem, size = 0x1000, scoped, tag = 'scratch operand']
  %s0 = inlined_call_operand.hbm [shape: f32[8,8,384], index: 0, kind: input, shape index: {}]
  %s1 = inlined_call_operand.hbm [shape: f32[128,384], index: 1, kind: input, shape index: {}]
  %s2 = inlined_call_operand.hbm [shape: f32[8,128], index: 2, kind: input, shape index: {}]
  %s3 = inlined_call_operand.hbm [shape: f32[8,8,128], index: 3, kind: output, shape index: {}]
  %s4 = sld [smem:[#allocation0]]
  $region38: #{tpu_custom_call.1} parent=0
    _
  %s6 = ssub.s32 1, %s4
  %s7 = scalar_select 0, %s6, %s4
  $region1: #{tpu_custom_call.1} parent=0
    #allocation3 [shape = 'u8[98304]{0}', space=vmem, size = 0x18000, scoped, tag = 'input window, operand 0, single buffered']
    #allocation4 [shape = 's32[1]{0}', space=sflag, size = 0x4, scoped, tag = 'scoped memory for tpu_custom_call.1']
    #allocation5 [shape = 's32[1]{0}', space=sflag, size = 0x4, scoped, tag = 'scoped memory for tpu_custom_call.1']
    #allocation6 [shape = 'u8[196608]{0}', space=vmem, size = 0x30000, scoped, tag = 'input window, operand 1, single buffered']
    #allocation7 [shape = 's32[1]{0}', space=sflag, size = 0x4, scoped, tag = 'scoped memory for tpu_custom_call.1']
    #allocation8 [shape = 'u8[4096]{0}', space=vmem, size = 0x1000, scoped, tag = 'input window, operand 2, single buffered']
    #allocation9 [shape = 'u8[32768]{0}', space=vmem, size = 0x8000, scoped, tag = 'output window, operand 0, single buffered']
    %8 = vsyncpa [#allocation4], 0
    %9 = vsyncpa [#allocation7], 0
    %10 = vsyncpa [#allocation5], 0
    // Predicated region
    $region2: #{tpu_custom_call.1} parent=1 // pred_check
      _
    $region3: #{tpu_custom_call.1} parent=1 // pred_check_branch
      %12 = sbr.rel (0) target = $region5
    $region4: #{tpu_custom_call.1} parent=1 // pred_region
      %s14 = ssub.s32 3072, 3072
      %15 = vsyncadd [#allocation4], %s14
      %s16 = sshll.u32 [#allocation3], 4
      %s17 = int_to_ptr.vmem [resolvable:$true] %s16
      %22 = dma.hbm_to_vmem [thread:$0]  %s0, 3072, %s17, [#allocation4], 384, 384, 24
    $region5: #{tpu_custom_call.1} parent=1 // pred_fallthru
      _
    // Predicated region
    $region6: #{tpu_custom_call.1} parent=1 // pred_check
      _
    $region7: #{tpu_custom_call.1} parent=1 // pred_check_branch
      %24 = sbr.rel (0) target = $region9
    $region8: #{tpu_custom_call.1} parent=1 // pred_region
      %s26 = ssub.s32 6144, 6144
      %27 = vsyncadd [#allocation7], %s26
      %s28 = sshll.u32 [#allocation6], 4
      %s29 = int_to_ptr.vmem [resolvable:$true] %s28
      %34 = dma.hbm_to_vmem [thread:$0]  %s1, 6144, %s29, [#allocation7], 384, 384, 24
    $region9: #{tpu_custom_call.1} parent=1 // pred_fallthru
      _
    // Predicated region
    $region10: #{tpu_custom_call.1} parent=1 // pred_check
      _
    $region11: #{tpu_custom_call.1} parent=1 // pred_check_branch
      %36 = sbr.rel (0) target = $region13
    $region12: #{tpu_custom_call.1} parent=1 // pred_region
      %s38 = ssub.s32 128, 128
      %39 = vsyncadd [#allocation7], %s38
      %s41 = sshll.u32 [#allocation8], 4
      %s42 = int_to_ptr.vmem [resolvable:$true] %s41
      %44 = dma.hbm_to_vmem [thread:$0]  %s2, 128, %s42, [#allocation7]
    $region13: #{tpu_custom_call.1} parent=1 // pred_fallthru
      _
    // Predicated region
    $region14: #{tpu_custom_call.1} parent=1 // pred_check
      _
    $region15: #{tpu_custom_call.1} parent=1 // pred_check_branch
      %46 = sbr.rel (0) target = $region17
    $region16: #{tpu_custom_call.1} parent=1 // pred_region
      %47 = dma.done [#allocation4], 3072
    $region17: #{tpu_custom_call.1} parent=1 // pred_fallthru
      _
    // Predicated region
    $region18: #{tpu_custom_call.1} parent=1 // pred_check
      _
    $region19: #{tpu_custom_call.1} parent=1 // pred_check_branch
      %49 = sbr.rel (0) target = $region21
    $region20: #{tpu_custom_call.1} parent=1 // pred_region
      %50 = dma.done [#allocation7], 6144
    $region21: #{tpu_custom_call.1} parent=1 // pred_fallthru
      _
    // Predicated region
    $region22: #{tpu_custom_call.1} parent=1 // pred_check
      _
    $region23: #{tpu_custom_call.1} parent=1 // pred_check_branch
      %52 = sbr.rel (0) target = $region25
    $region24: #{tpu_custom_call.1} parent=1 // pred_region
      %53 = dma.done [#allocation7], 128
    $region25: #{tpu_custom_call.1} parent=1 // pred_fallthru
      _
    %p54 = scmp.eq.s32.totalorder 0, 0
    // Predicated region
    $region26: #{tpu_custom_call.1} parent=1 // pred_check
      %p55 = pneg %p54
    $region27: #{tpu_custom_call.1} parent=1 // pred_check_branch
      %57 = sbr.rel (%p55) target = $region29
    $region28: #{tpu_custom_call.1} parent=1 // pred_region
      %58 = vst [vmem:[#allocation2] sm:$0xff] 0.0
    $region29: #{tpu_custom_call.1} parent=1 // pred_fallthru
      _
    %v59 = vld [vmem:[#allocation6] sm:$0xff]
    %v60 = vld [vmem:[#allocation6 + $0x8] sm:$0xff]
    %v61 = vld [vmem:[#allocation6 + $0x10] sm:$0xff]
    %v62 = vld [vmem:[#allocation6 + $0x18] sm:$0xff]
    %v63 = vld [vmem:[#allocation6 + $0x20] sm:$0xff]
    %v64 = vld [vmem:[#allocation6 + $0x28] sm:$0xff]
    %v65 = vld [vmem:[#allocation6 + $0x30] sm:$0xff]
    %v66 = vld [vmem:[#allocation6 + $0x38] sm:$0xff]
    %v67 = vld [vmem:[#allocation6 + $0x40] sm:$0xff]
    %v68 = vld [vmem:[#allocation6 + $0x48] sm:$0xff]
    %v69 = vld [vmem:[#allocation6 + $0x50] sm:$0xff]
    %v70 = vld [vmem:[#allocation6 + $0x58] sm:$0xff]
    %v71 = vld [vmem:[#allocation6 + $0x60] sm:$0xff]
    %v72 = vld [vmem:[#allocation6 + $0x68] sm:$0xff]
    %v73 = vld [vmem:[#allocation6 + $0x70] sm:$0xff]
    %v74 = vld [vmem:[#allocation6 + $0x78] sm:$0xff]
    %v75 = vld [vmem:[#allocation6 + $0x80] sm:$0xff]
    %v76 = vld [vmem:[#allocation6 + $0x88] sm:$0xff]
    %v77 = vld [vmem:[#allocation6 + $0x90] sm:$0xff]
    %v78 = vld [vmem:[#allocation6 + $0x98] sm:$0xff]
    %v79 = vld [vmem:[#allocation6 + $0xa0] sm:$0xff]
    %v80 = vld [vmem:[#allocation6 + $0xa8] sm:$0xff]
    %v81 = vld [vmem:[#allocation6 + $0xb0] sm:$0xff]
    %v82 = vld [vmem:[#allocation6 + $0xb8] sm:$0xff]
    %v83 = vld [vmem:[#allocation6 + $0xc0] sm:$0xff]
    %v84 = vld [vmem:[#allocation6 + $0xc8] sm:$0xff]
    %v85 = vld [vmem:[#allocation6 + $0xd0] sm:$0xff]
    %v86 = vld [vmem:[#allocation6 + $0xd8] sm:$0xff]
    %v87 = vld [vmem:[#allocation6 + $0xe0] sm:$0xff]
    %v88 = vld [vmem:[#allocation6 + $0xe8] sm:$0xff]
    %v89 = vld [vmem:[#allocation6 + $0xf0] sm:$0xff]
    %v90 = vld [vmem:[#allocation6 + $0xf8] sm:$0xff]
    %v91 = vld [vmem:[#allocation6 + $0x100] sm:$0xff]
    %v92 = vld [vmem:[#allocation6 + $0x108] sm:$0xff]
    %v93 = vld [vmem:[#allocation6 + $0x110] sm:$0xff]
    %v94 = vld [vmem:[#allocation6 + $0x118] sm:$0xff]
    %v95 = vld [vmem:[#allocation6 + $0x120] sm:$0xff]
    %v96 = vld [vmem:[#allocation6 + $0x128] sm:$0xff]
    %v97 = vld [vmem:[#allocation6 + $0x130] sm:$0xff]
    %v98 = vld [vmem:[#allocation6 + $0x138] sm:$0xff]
    %v99 = vld [vmem:[#allocation6 + $0x140] sm:$0xff]
    %v100 = vld [vmem:[#allocation6 + $0x148] sm:$0xff]
    %v101 = vld [vmem:[#allocation6 + $0x150] sm:$0xff]
    %v102 = vld [vmem:[#allocation6 + $0x158] sm:$0xff]
    %v103 = vld [vmem:[#allocation6 + $0x160] sm:$0xff]
    %v104 = vld [vmem:[#allocation6 + $0x168] sm:$0xff]
    %v105 = vld [vmem:[#allocation6 + $0x170] sm:$0xff]
    %v106 = vld [vmem:[#allocation6 + $0x178] sm:$0xff]
    %v107 = vld [vmem:[#allocation8] sm:$0xff]
    %v108 = vld [vmem:[#allocation2] sm:$0xff]
    %v109 = vld [vmem:[#allocation3] sm:$0xff]
    %v110 = vld [vmem:[#allocation3 + $0x8] sm:$0xff]
    %v111 = vld [vmem:[#allocation3 + $0x10] sm:$0xff]
    %112 = vmatprep.subr.mxu0 %v60
    %113 = vmatpush1.msra.mxu0 %v59
    %114 = vmatprep.subr.mxu0 %v63
    %115 = vmatpush1.msra.mxu0 %v62
    %116 = vmatprep.subr.mxu0 %v66
    %117 = vmatpush1.msra.mxu0 %v65
    %118 = vmatprep.subr.mxu0 %v69
    %119 = vmatpush1.msra.mxu0 %v68
    %120 = vmatprep.subr.mxu0 %v72
    %121 = vmatpush1.msra.mxu0 %v71
    %122 = vmatprep.subr.mxu0 %v75
    %123 = vmatpush1.msra.mxu0 %v74
    %124 = vmatprep.subr.mxu0 %v78
    %125 = vmatpush1.msra.mxu0 %v77
    %126 = vmatprep.subr.mxu0 %v81
    %127 = vmatpush1.msra.mxu0 %v80
    %128 = vmatprep.subr.mxu0 %v84
    %129 = vmatpush1.msra.mxu0 %v83
    %130 = vmatprep.subr.mxu0 %v87
    %131 = vmatpush1.msra.mxu0 %v86
    %132 = vmatprep.subr.mxu0 %v90
    %133 = vmatpush1.msra.mxu0 %v89
    %134 = vmatprep.subr.mxu0 %v93
    %135 = vmatpush1.msra.mxu0 %v92
    %136 = vmatprep.subr.mxu0 %v96
    %137 = vmatpush1.msra.mxu0 %v95
    %138 = vmatprep.subr.mxu0 %v99
    %139 = vmatpush1.msra.mxu0 %v98
    %140 = vmatprep.subr.mxu0 %v102
    %141 = vmatpush1.msra.mxu0 %v101
    %142 = vmatprep.subr.mxu0 %v105
    %143 = vmatpush1.msra.mxu0 %v104
    %144 = vmatprep.subr.mxu0 0.0
    %145 = vmatpush1.msra.mxu0 0.0
    %146 = vmatprep.subr.mxu0 0.0
    %147 = vmatpush1.msra.mxu0 0.0
    %148 = vmatprep.subr.mxu0 0.0
    %149 = vmatpush1.msra.mxu0 0.0
    %150 = vmatprep.subr.mxu0 0.0
    %151 = vmatpush1.msra.mxu0 0.0
    %152 = vmatprep.subr.mxu0 0.0
    %153 = vmatpush1.msra.mxu0 0.0
    %154 = vmatprep.subr.mxu0 0.0
    %155 = vmatpush1.msra.mxu0 0.0
    %156 = vmatprep.subr.mxu0 0.0
    %157 = vmatpush1.msra.mxu0 0.0
    %158 = vmatprep.subr.mxu0 0.0
    %159 = vmatpush1.msra.mxu0 0.0
    %160 = vmatprep.subr.mxu0 0.0
    %161 = vmatpush1.msra.mxu0 0.0
    %162 = vmatprep.subr.mxu0 0.0
    %163 = vmatpush1.msra.mxu0 0.0
    %164 = vmatprep.subr.mxu0 0.0
    %165 = vmatpush1.msra.mxu0 0.0
    %166 = vmatprep.subr.mxu0 0.0
    %167 = vmatpush1.msra.mxu0 0.0
    %168 = vmatprep.subr.mxu0 0.0
    %169 = vmatpush1.msra.mxu0 0.0
    %170 = vmatprep.subr.mxu0 0.0
    %171 = vmatpush1.msra.mxu0 0.0
    %172 = vmatprep.subr.mxu0 0.0
    %173 = vmatpush1.msra.mxu0 0.0
    %174 = vmatprep.subr.mxu0 0.0
    %175 = vmatpush1.msra.mxu0 0.0
    %176 = vmatprep.mubr.f32.mxu0 0.0
    %177 = vmatmul.mubr.f32.gmra.mrb[0].mxu0 %v108
    %v178 = vpop.f32.mrb[0].mxu0
    %v179 = vadd.f32 0.0, %v178
    %v180 = vpop.f32.mrb[0].mxu0
    %v181 = vadd.f32 0.0, %v180
    %182 = vdwg.mxu0
    %183 = vmatprep.subr.mxu0 0.0
    %184 = vmatpush1.msra.mxu0 %v61
    %185 = vmatprep.subr.mxu0 0.0
    %186 = vmatpush1.msra.mxu0 %v64
    %187 = vmatprep.subr.mxu0 0.0
    %188 = vmatpush1.msra.mxu0 %v67
    %189 = vmatprep.subr.mxu0 0.0
    %190 = vmatpush1.msra.mxu0 %v70
    %191 = vmatprep.subr.mxu0 0.0
    %192 = vmatpush1.msra.mxu0 %v73
    %193 = vmatprep.subr.mxu0 0.0
    %194 = vmatpush1.msra.mxu0 %v76
    %195 = vmatprep.subr.mxu0 0.0
    %196 = vmatpush1.msra.mxu0 %v79
    %197 = vmatprep.subr.mxu0 0.0
    %198 = vmatpush1.msra.mxu0 %v82
    %199 = vmatprep.subr.mxu0 0.0
    %200 = vmatpush1.msra.mxu0 %v85
    %201 = vmatprep.subr.mxu0 0.0
    %202 = vmatpush1.msra.mxu0 %v88
    %203 = vmatprep.subr.mxu0 0.0
    %204 = vmatpush1.msra.mxu0 %v91
    %205 = vmatprep.subr.mxu0 0.0
    %206 = vmatpush1.msra.mxu0 %v94
    %207 = vmatprep.subr.mxu0 0.0
    %208 = vmatpush1.msra.mxu0 %v97
    %209 = vmatprep.subr.mxu0 0.0
    %210 = vmatpush1.msra.mxu0 %v100
    %211 = vmatprep.subr.mxu0 0.0
    %212 = vmatpush1.msra.mxu0 %v103
    %213 = vmatprep.subr.mxu0 0.0
    %214 = vmatpush1.msra.mxu0 %v106
    %215 = vmatprep.subr.mxu0 0.0
    %216 = vmatpush1.msra.mxu0 0.0
    %217 = vmatprep.subr.mxu0 0.0
    %218 = vmatpush1.msra.mxu0 0.0
    %219 = vmatprep.subr.mxu0 0.0
    %220 = vmatpush1.msra.mxu0 0.0
    %221 = vmatprep.subr.mxu0 0.0
    %222 = vmatpush1.msra.mxu0 0.0
    %223 = vmatprep.subr.mxu0 0.0
    %224 = vmatpush1.msra.mxu0 0.0
    %225 = vmatprep.subr.mxu0 0.0
    %226 = vmatpush1.msra.mxu0 0.0
    %227 = vmatprep.subr.mxu0 0.0
    %228 = vmatpush1.msra.mxu0 0.0
    %229 = vmatprep.subr.mxu0 0.0
    %230 = vmatpush1.msra.mxu0 0.0
    %231 = vmatprep.subr.mxu0 0.0
    %232 = vmatpush1.msra.mxu0 0.0
    %233 = vmatprep.subr.mxu0 0.0
    %234 = vmatpush1.msra.mxu0 0.0
    %235 = vmatprep.subr.mxu0 0.0
    %236 = vmatpush1.msra.mxu0 0.0
    %237 = vmatprep.subr.mxu0 0.0
    %238 = vmatpush1.msra.mxu0 0.0
    %239 = vmatprep.subr.mxu0 0.0
    %240 = vmatpush1.msra.mxu0 0.0
    %241 = vmatprep.subr.mxu0 0.0
    %242 = vmatpush1.msra.mxu0 0.0
    %243 = vmatprep.subr.mxu0 0.0
    %244 = vmatpush1.msra.mxu0 0.0
    %245 = vmatprep.subr.mxu0 0.0
    %246 = vmatpush1.msra.mxu0 0.0
    %247 = vmatprep.mubr.f32.mxu0 0.0
    %248 = vmatmul.mubr.f32.gmra.mrb[0].mxu0 %v108
    %v249 = vpop.f32.mrb[0].mxu0
    %v250 = vadd.f32 0.0, %v249
    %v251 = vpop.f32.mrb[0].mxu0
    %252 = vdwg.mxu0
    %v253 = vadd.f32 %v109, %v179
    %v254 = vxor.u32 %v253, 2147483648
    %v255 = vmul.f32 %v254, 1.442695
    %v256 = vpow.pop %v255
    %v257 = vadd.f32 %v256, 1.0
    %v258 = vrcp.pop %v257
    %v259 = vmul.f32 1.0, %v258
    %v260 = vadd.f32 %v110, %v181
    %v261 = vxor.u32 %v260, 2147483648
    %v262 = vmul.f32 %v261, 1.442695
    %v263 = vpow.pop %v262
    %v264 = vadd.f32 %v263, 1.0
    %v265 = vrcp.pop %v264
    %v266 = vmul.f32 1.0, %v265
    %v267 = vadd.f32 %v250, %v107
    %v268 = vmul.f32 %v259, %v267
    %v269 = vadd.f32 %v111, %v268
    %v270 = vtanh.pop %v269
    %v271 = vsub.f32 1.0, %v266
    %v272 = vmul.f32 %v271, %v270
    %v273 = vmul.f32 %v266, %v108
    %v274 = vadd.f32 %v272, %v273
    %275 = vst [vmem:[#allocation9] sm:$0xff] %v274
    %s276 = scalar_lea.vmem [#allocation3], 24
    %v277 = vld [vmem:[%s276] sm:$0xff]
    %v278 = vld [vmem:[%s276 + $0x8] sm:$0xff]
    %v279 = vld [vmem:[%s276 + $0x10] sm:$0xff]
    %280 = vmatprep.subr.mxu0 %v60
    %281 = vmatpush1.msra.mxu0 %v59
    %282 = vmatprep.subr.mxu0 %v63
    %283 = vmatpush1.msra.mxu0 %v62
    %284 = vmatprep.subr.mxu0 %v66
    %285 = vmatpush1.msra.mxu0 %v65
    %286 = vmatprep.subr.mxu0 %v69
    %287 = vmatpush1.msra.mxu0 %v68
    %288 = vmatprep.subr.mxu0 %v72
    %289 = vmatpush1.msra.mxu0 %v71
    %290 = vmatprep.subr.mxu0 %v75
    %291 = vmatpush1.msra.mxu0 %v74
    %292 = vmatprep.subr.mxu0 %v78
    %293 = vmatpush1.msra.mxu0 %v77
    %294 = vmatprep.subr.mxu0 %v81
    %295 = vmatpush1.msra.mxu0 %v80
    %296 = vmatprep.subr.mxu0 %v84
    %297 = vmatpush1.msra.mxu0 %v83
    %298 = vmatprep.subr.mxu0 %v87
    %299 = vmatpush1.msra.mxu0 %v86
    %300 = vmatprep.subr.mxu0 %v90
    %301 = vmatpush1.msra.mxu0 %v89
    %302 = vmatprep.subr.mxu0 %v93
    %303 = vmatpush1.msra.mxu0 %v92
    %304 = vmatprep.subr.mxu0 %v96
    %305 = vmatpush1.msra.mxu0 %v95
    %306 = vmatprep.subr.mxu0 %v99
    %307 = vmatpush1.msra.mxu0 %v98
    %308 = vmatprep.subr.mxu0 %v102
    %309 = vmatpush1.msra.mxu0 %v101
    %310 = vmatprep.subr.mxu0 %v105
    %311 = vmatpush1.msra.mxu0 %v104
    %312 = vmatprep.subr.mxu0 0.0
    %313 = vmatpush1.msra.mxu0 0.0
    %314 = vmatprep.subr.mxu0 0.0
    %315 = vmatpush1.msra.mxu0 0.0
    %316 = vmatprep.subr.mxu0 0.0
    %317 = vmatpush1.msra.mxu0 0.0
    %318 = vmatprep.subr.mxu0 0.0
    %319 = vmatpush1.msra.mxu0 0.0
    %320 = vmatprep.subr.mxu0 0.0
    %321 = vmatpush1.msra.mxu0 0.0
    %322 = vmatprep.subr.mxu0 0.0
    %323 = vmatpush1.msra.mxu0 0.0
    %324 = vmatprep.subr.mxu0 0.0
    %325 = vmatpush1.msra.mxu0 0.0
    %326 = vmatprep.subr.mxu0 0.0
    %327 = vmatpush1.msra.mxu0 0.0
    %328 = vmatprep.subr.mxu0 0.0
    %329 = vmatpush1.msra.mxu0 0.0
    %330 = vmatprep.subr.mxu0 0.0
    %331 = vmatpush1.msra.mxu0 0.0
    %332 = vmatprep.subr.mxu0 0.0
    %333 = vmatpush1.msra.mxu0 0.0
    %334 = vmatprep.subr.mxu0 0.0
    %335 = vmatpush1.msra.mxu0 0.0
    %336 = vmatprep.subr.mxu0 0.0
    %337 = vmatpush1.msra.mxu0 0.0
    %338 = vmatprep.subr.mxu0 0.0
    %339 = vmatpush1.msra.mxu0 0.0
    %340 = vmatprep.subr.mxu0 0.0
    %341 = vmatpush1.msra.mxu0 0.0
    %342 = vmatprep.subr.mxu0 0.0
    %343 = vmatpush1.msra.mxu0 0.0
    %344 = vmatprep.mubr.f32.mxu0 0.0
    %345 = vmatmul.mubr.f32.gmra.mrb[0].mxu0 %v274
    %v346 = vpop.f32.mrb[0].mxu0
    %v347 = vadd.f32 0.0, %v346
    %v348 = vpop.f32.mrb[0].mxu0
    %v349 = vadd.f32 0.0, %v348
    %350 = vdwg.mxu0
    %351 = vmatprep.subr.mxu0 0.0
    %352 = vmatpush1.msra.mxu0 %v61
    %353 = vmatprep.subr.mxu0 0.0
    %354 = vmatpush1.msra.mxu0 %v64
    %355 = vmatprep.subr.mxu0 0.0
    %356 = vmatpush1.msra.mxu0 %v67
    %357 = vmatprep.subr.mxu0 0.0
    %358 = vmatpush1.msra.mxu0 %v70
    %359 = vmatprep.subr.mxu0 0.0
    %360 = vmatpush1.msra.mxu0 %v73
    %361 = vmatprep.subr.mxu0 0.0
    %362 = vmatpush1.msra.mxu0 %v76
    %363 = vmatprep.subr.mxu0 0.0
    %364 = vmatpush1.msra.mxu0 %v79
    %365 = vmatprep.subr.mxu0 0.0
    %366 = vmatpush1.msra.mxu0 %v82
    %367 = vmatprep.subr.mxu0 0.0
    %368 = vmatpush1.msra.mxu0 %v85
    %369 = vmatprep.subr.mxu0 0.0
    %370 = vmatpush1.msra.mxu0 %v88
    %371 = vmatprep.subr.mxu0 0.0
    %372 = vmatpush1.msra.mxu0 %v91
    %373 = vmatprep.subr.mxu0 0.0
    %374 = vmatpush1.msra.mxu0 %v94
    %375 = vmatprep.subr.mxu0 0.0
    %376 = vmatpush1.msra.mxu0 %v97
    %377 = vmatprep.subr.mxu0 0.0
    %378 = vmatpush1.msra.mxu0 %v100
    %379 = vmatprep.subr.mxu0 0.0
    %380 = vmatpush1.msra.mxu0 %v103
    %381 = vmatprep.subr.mxu0 0.0
    %382 = vmatpush1.msra.mxu0 %v106
    %383 = vmatprep.subr.mxu0 0.0
    %384 = vmatpush1.msra.mxu0 0.0
    %385 = vmatprep.subr.mxu0 0.0
    %386 = vmatpush1.msra.mxu0 0.0
    %387 = vmatprep.subr.mxu0 0.0
    %388 = vmatpush1.msra.mxu0 0.0
    %389 = vmatprep.subr.mxu0 0.0
    %390 = vmatpush1.msra.mxu0 0.0
    %391 = vmatprep.subr.mxu0 0.0
    %392 = vmatpush1.msra.mxu0 0.0
    %393 = vmatprep.subr.mxu0 0.0
    %394 = vmatpush1.msra.mxu0 0.0
    %395 = vmatprep.subr.mxu0 0.0
    %396 = vmatpush1.msra.mxu0 0.0
    %397 = vmatprep.subr.mxu0 0.0
    %398 = vmatpush1.msra.mxu0 0.0
    %399 = vmatprep.subr.mxu0 0.0
    %400 = vmatpush1.msra.mxu0 0.0
    %401 = vmatprep.subr.mxu0 0.0
    %402 = vmatpush1.msra.mxu0 0.0
    %403 = vmatprep.subr.mxu0 0.0
    %404 = vmatpush1.msra.mxu0 0.0
    %405 = vmatprep.subr.mxu0 0.0
    %406 = vmatpush1.msra.mxu0 0.0
    %407 = vmatprep.subr.mxu0 0.0
    %408 = vmatpush1.msra.mxu0 0.0
    %409 = vmatprep.subr.mxu0 0.0
    %410 = vmatpush1.msra.mxu0 0.0
    %411 = vmatprep.subr.mxu0 0.0
    %412 = vmatpush1.msra.mxu0 0.0
    %413 = vmatprep.subr.mxu0 0.0
    %414 = vmatpush1.msra.mxu0 0.0
    %415 = vmatprep.mubr.f32.mxu0 0.0
    %416 = vmatmul.mubr.f32.gmra.mrb[0].mxu0 %v274
    %v417 = vpop.f32.mrb[0].mxu0
    %v418 = vadd.f32 0.0, %v417
    %v419 = vpop.f32.mrb[0].mxu0
    %420 = vdwg.mxu0
    %v421 = vadd.f32 %v277, %v347
    %v422 = vxor.u32 %v421, 2147483648
    %v423 = vmul.f32 %v422, 1.442695
    %v424 = vpow.pop %v423
    %v425 = vadd.f32 %v424, 1.0
    %v426 = vrcp.pop %v425
    %v427 = vmul.f32 1.0, %v426
    %v428 = vadd.f32 %v278, %v349
    %v429 = vxor.u32 %v428, 2147483648
    %v430 = vmul.f32 %v429, 1.442695
    %v431 = vpow.pop %v430
    %v432 = vadd.f32 %v431, 1.0
    %v433 = vrcp.pop %v432
    %v434 = vmul.f32 1.0, %v433
    %v435 = vadd.f32 %v418, %v107
    %v436 = vmul.f32 %v427, %v435
    %v437 = vadd.f32 %v279, %v436
    %v438 = vtanh.pop %v437
    %v439 = vsub.f32 1.0, %v434
    %v440 = vmul.f32 %v439, %v438
    %v441 = vmul.f32 %v434, %v274
    %v442 = vadd.f32 %v440, %v441
    %s443 = scalar_lea.vmem [#allocation9], 8
    %444 = vst [vmem:[%s443] sm:$0xff] %v442
    %s445 = scalar_lea.vmem [#allocation3], 48
    %v446 = vld [vmem:[%s445] sm:$0xff]
    %v447 = vld [vmem:[%s445 + $0x8] sm:$0xff]
    %v448 = vld [vmem:[%s445 + $0x10] sm:$0xff]
    %449 = vmatprep.subr.mxu0 %v60
    %450 = vmatpush1.msra.mxu0 %v59
    %451 = vmatprep.subr.mxu0 %v63
    %452 = vmatpush1.msra.mxu0 %v62
    %453 = vmatprep.subr.mxu0 %v66
    %454 = vmatpush1.msra.mxu0 %v65
    %455 = vmatprep.subr.mxu0 %v69
    %456 = vmatpush1.msra.mxu0 %v68
    %457 = vmatprep.subr.mxu0 %v72
    %458 = vmatpush1.msra.mxu0 %v71
    %459 = vmatprep.subr.mxu0 %v75
    %460 = vmatpush1.msra.mxu0 %v74
    %461 = vmatprep.subr.mxu0 %v78
    %462 = vmatpush1.msra.mxu0 %v77
    %463 = vmatprep.subr.mxu0 %v81
    %464 = vmatpush1.msra.mxu0 %v80
    %465 = vmatprep.subr.mxu0 %v84
    %466 = vmatpush1.msra.mxu0 %v83
    %467 = vmatprep.subr.mxu0 %v87
    %468 = vmatpush1.msra.mxu0 %v86
    %469 = vmatprep.subr.mxu0 %v90
    %470 = vmatpush1.msra.mxu0 %v89
    %471 = vmatprep.subr.mxu0 %v93
    %472 = vmatpush1.msra.mxu0 %v92
    %473 = vmatprep.subr.mxu0 %v96
    %474 = vmatpush1.msra.mxu0 %v95
    %475 = vmatprep.subr.mxu0 %v99
    %476 = vmatpush1.msra.mxu0 %v98
    %477 = vmatprep.subr.mxu0 %v102
    %478 = vmatpush1.msra.mxu0 %v101
    %479 = vmatprep.subr.mxu0 %v105
    %480 = vmatpush1.msra.mxu0 %v104
    %481 = vmatprep.subr.mxu0 0.0
    %482 = vmatpush1.msra.mxu0 0.0
    %483 = vmatprep.subr.mxu0 0.0
    %484 = vmatpush1.msra.mxu0 0.0
    %485 = vmatprep.subr.mxu0 0.0
    %486 = vmatpush1.msra.mxu0 0.0
    %487 = vmatprep.subr.mxu0 0.0
    %488 = vmatpush1.msra.mxu0 0.0
    %489 = vmatprep.subr.mxu0 0.0
    %490 = vmatpush1.msra.mxu0 0.0
    %491 = vmatprep.subr.mxu0 0.0
    %492 = vmatpush1.msra.mxu0 0.0
    %493 = vmatprep.subr.mxu0 0.0
    %494 = vmatpush1.msra.mxu0 0.0
    %495 = vmatprep.subr.mxu0 0.0
    %496 = vmatpush1.msra.mxu0 0.0
    %497 = vmatprep.subr.mxu0 0.0
    %498 = vmatpush1.msra.mxu0 0.0
    %499 = vmatprep.subr.mxu0 0.0
    %500 = vmatpush1.msra.mxu0 0.0
    %501 = vmatprep.subr.mxu0 0.0
    %502 = vmatpush1.msra.mxu0 0.0
    %503 = vmatprep.subr.mxu0 0.0
    %504 = vmatpush1.msra.mxu0 0.0
    %505 = vmatprep.subr.mxu0 0.0
    %506 = vmatpush1.msra.mxu0 0.0
    %507 = vmatprep.subr.mxu0 0.0
    %508 = vmatpush1.msra.mxu0 0.0
    %509 = vmatprep.subr.mxu0 0.0
    %510 = vmatpush1.msra.mxu0 0.0
    %511 = vmatprep.subr.mxu0 0.0
    %512 = vmatpush1.msra.mxu0 0.0
    %513 = vmatprep.mubr.f32.mxu0 0.0
    %514 = vmatmul.mubr.f32.gmra.mrb[0].mxu0 %v442
    %v515 = vpop.f32.mrb[0].mxu0
    %v516 = vadd.f32 0.0, %v515
    %v517 = vpop.f32.mrb[0].mxu0
    %v518 = vadd.f32 0.0, %v517
    %519 = vdwg.mxu0
    %520 = vmatprep.subr.mxu0 0.0
    %521 = vmatpush1.msra.mxu0 %v61
    %522 = vmatprep.subr.mxu0 0.0
    %523 = vmatpush1.msra.mxu0 %v64
    %524 = vmatprep.subr.mxu0 0.0
    %525 = vmatpush1.msra.mxu0 %v67
    %526 = vmatprep.subr.mxu0 0.0
    %527 = vmatpush1.msra.mxu0 %v70
    %528 = vmatprep.subr.mxu0 0.0
    %529 = vmatpush1.msra.mxu0 %v73
    %530 = vmatprep.subr.mxu0 0.0
    %531 = vmatpush1.msra.mxu0 %v76
    %532 = vmatprep.subr.mxu0 0.0
    %533 = vmatpush1.msra.mxu0 %v79
    %534 = vmatprep.subr.mxu0 0.0
    %535 = vmatpush1.msra.mxu0 %v82
    %536 = vmatprep.subr.mxu0 0.0
    %537 = vmatpush1.msra.mxu0 %v85
    %538 = vmatprep.subr.mxu0 0.0
    %539 = vmatpush1.msra.mxu0 %v88
    %540 = vmatprep.subr.mxu0 0.0
    %541 = vmatpush1.msra.mxu0 %v91
    %542 = vmatprep.subr.mxu0 0.0
    %543 = vmatpush1.msra.mxu0 %v94
    %544 = vmatprep.subr.mxu0 0.0
    %545 = vmatpush1.msra.mxu0 %v97
    %546 = vmatprep.subr.mxu0 0.0
    %547 = vmatpush1.msra.mxu0 %v100
    %548 = vmatprep.subr.mxu0 0.0
    %549 = vmatpush1.msra.mxu0 %v103
    %550 = vmatprep.subr.mxu0 0.0
    %551 = vmatpush1.msra.mxu0 %v106
    %552 = vmatprep.subr.mxu0 0.0
    %553 = vmatpush1.msra.mxu0 0.0
    %554 = vmatprep.subr.mxu0 0.0
    %555 = vmatpush1.msra.mxu0 0.0
    %556 = vmatprep.subr.mxu0 0.0
    %557 = vmatpush1.msra.mxu0 0.0
    %558 = vmatprep.subr.mxu0 0.0
    %559 = vmatpush1.msra.mxu0 0.0
    %560 = vmatprep.subr.mxu0 0.0
    %561 = vmatpush1.msra.mxu0 0.0
    %562 = vmatprep.subr.mxu0 0.0
    %563 = vmatpush1.msra.mxu0 0.0
    %564 = vmatprep.subr.mxu0 0.0
    %565 = vmatpush1.msra.mxu0 0.0
    %566 = vmatprep.subr.mxu0 0.0
    %567 = vmatpush1.msra.mxu0 0.0
    %568 = vmatprep.subr.mxu0 0.0
    %569 = vmatpush1.msra.mxu0 0.0
    %570 = vmatprep.subr.mxu0 0.0
    %571 = vmatpush1.msra.mxu0 0.0
    %572 = vmatprep.subr.mxu0 0.0
    %573 = vmatpush1.msra.mxu0 0.0
    %574 = vmatprep.subr.mxu0 0.0
    %575 = vmatpush1.msra.mxu0 0.0
    %576 = vmatprep.subr.mxu0 0.0
    %577 = vmatpush1.msra.mxu0 0.0
    %578 = vmatprep.subr.mxu0 0.0
    %579 = vmatpush1.msra.mxu0 0.0
    %580 = vmatprep.subr.mxu0 0.0
    %581 = vmatpush1.msra.mxu0 0.0
    %582 = vmatprep.subr.mxu0 0.0
    %583 = vmatpush1.msra.mxu0 0.0
    %584 = vmatprep.mubr.f32.mxu0 0.0
    %585 = vmatmul.mubr.f32.gmra.mrb[0].mxu0 %v442
    %v586 = vpop.f32.mrb[0].mxu0
    %v587 = vadd.f32 0.0, %v586
    %v588 = vpop.f32.mrb[0].mxu0
    %589 = vdwg.mxu0
    %v590 = vadd.f32 %v446, %v516
    %v591 = vxor.u32 %v590, 2147483648
    %v592 = vmul.f32 %v591, 1.442695
    %v593 = vpow.pop %v592
    %v594 = vadd.f32 %v593, 1.0
    %v595 = vrcp.pop %v594
    %v596 = vmul.f32 1.0, %v595
    %v597 = vadd.f32 %v447, %v518
    %v598 = vxor.u32 %v597, 2147483648
    %v599 = vmul.f32 %v598, 1.442695
    %v600 = vpow.pop %v599
    %v601 = vadd.f32 %v600, 1.0
    %v602 = vrcp.pop %v601
    %v603 = vmul.f32 1.0, %v602
    %v604 = vadd.f32 %v587, %v107
    %v605 = vmul.f32 %v596, %v604
    %v606 = vadd.f32 %v448, %v605
    %v607 = vtanh.pop %v606
    %v608 = vsub.f32 1.0, %v603
    %v609 = vmul.f32 %v608, %v607
    %v610 = vmul.f32 %v603, %v442
    %v611 = vadd.f32 %v609, %v610
    %s612 = scalar_lea.vmem [#allocation9], 16
    %613 = vst [vmem:[%s612] sm:$0xff] %v611
    %s614 = scalar_lea.vmem [#allocation3], 72
    %v615 = vld [vmem:[%s614] sm:$0xff]
    %v616 = vld [vmem:[%s614 + $0x8] sm:$0xff]
    %v617 = vld [vmem:[%s614 + $0x10] sm:$0xff]
    %618 = vmatprep.subr.mxu0 %v60
    %619 = vmatpush1.msra.mxu0 %v59
    %620 = vmatprep.subr.mxu0 %v63
    %621 = vmatpush1.msra.mxu0 %v62
    %622 = vmatprep.subr.mxu0 %v66
    %623 = vmatpush1.msra.mxu0 %v65
    %624 = vmatprep.subr.mxu0 %v69
    %625 = vmatpush1.msra.mxu0 %v68
    %626 = vmatprep.subr.mxu0 %v72
    %627 = vmatpush1.msra.mxu0 %v71
    %628 = vmatprep.subr.mxu0 %v75
    %629 = vmatpush1.msra.mxu0 %v74
    %630 = vmatprep.subr.mxu0 %v78
    %631 = vmatpush1.msra.mxu0 %v77
    %632 = vmatprep.subr.mxu0 %v81
    %633 = vmatpush1.msra.mxu0 %v80
    %634 = vmatprep.subr.mxu0 %v84
    %635 = vmatpush1.msra.mxu0 %v83
    %636 = vmatprep.subr.mxu0 %v87
    %637 = vmatpush1.msra.mxu0 %v86
    %638 = vmatprep.subr.mxu0 %v90
    %639 = vmatpush1.msra.mxu0 %v89
    %640 = vmatprep.subr.mxu0 %v93
    %641 = vmatpush1.msra.mxu0 %v92
    %642 = vmatprep.subr.mxu0 %v96
    %643 = vmatpush1.msra.mxu0 %v95
    %644 = vmatprep.subr.mxu0 %v99
    %645 = vmatpush1.msra.mxu0 %v98
    %646 = vmatprep.subr.mxu0 %v102
    %647 = vmatpush1.msra.mxu0 %v101
    %648 = vmatprep.subr.mxu0 %v105
    %649 = vmatpush1.msra.mxu0 %v104
    %650 = vmatprep.subr.mxu0 0.0
    %651 = vmatpush1.msra.mxu0 0.0
    %652 = vmatprep.subr.mxu0 0.0
    %653 = vmatpush1.msra.mxu0 0.0
    %654 = vmatprep.subr.mxu0 0.0
    %655 = vmatpush1.msra.mxu0 0.0
    %656 = vmatprep.subr.mxu0 0.0
    %657 = vmatpush1.msra.mxu0 0.0
    %658 = vmatprep.subr.mxu0 0.0
    %659 = vmatpush1.msra.mxu0 0.0
    %660 = vmatprep.subr.mxu0 0.0
    %661 = vmatpush1.msra.mxu0 0.0
    %662 = vmatprep.subr.mxu0 0.0
    %663 = vmatpush1.msra.mxu0 0.0
    %664 = vmatprep.subr.mxu0 0.0
    %665 = vmatpush1.msra.mxu0 0.0
    %666 = vmatprep.subr.mxu0 0.0
    %667 = vmatpush1.msra.mxu0 0.0
    %668 = vmatprep.subr.mxu0 0.0
    %669 = vmatpush1.msra.mxu0 0.0
    %670 = vmatprep.subr.mxu0 0.0
    %671 = vmatpush1.msra.mxu0 0.0
    %672 = vmatprep.subr.mxu0 0.0
    %673 = vmatpush1.msra.mxu0 0.0
    %674 = vmatprep.subr.mxu0 0.0
    %675 = vmatpush1.msra.mxu0 0.0
    %676 = vmatprep.subr.mxu0 0.0
    %677 = vmatpush1.msra.mxu0 0.0
    %678 = vmatprep.subr.mxu0 0.0
    %679 = vmatpush1.msra.mxu0 0.0
    %680 = vmatprep.subr.mxu0 0.0
    %681 = vmatpush1.msra.mxu0 0.0
    %682 = vmatprep.mubr.f32.mxu0 0.0
    %683 = vmatmul.mubr.f32.gmra.mrb[0].mxu0 %v611
    %v684 = vpop.f32.mrb[0].mxu0
    %v685 = vadd.f32 0.0, %v684
    %v686 = vpop.f32.mrb[0].mxu0
    %v687 = vadd.f32 0.0, %v686
    %688 = vdwg.mxu0
    %689 = vmatprep.subr.mxu0 0.0
    %690 = vmatpush1.msra.mxu0 %v61
    %691 = vmatprep.subr.mxu0 0.0
    %692 = vmatpush1.msra.mxu0 %v64
    %693 = vmatprep.subr.mxu0 0.0
    %694 = vmatpush1.msra.mxu0 %v67
    %695 = vmatprep.subr.mxu0 0.0
    %696 = vmatpush1.msra.mxu0 %v70
    %697 = vmatprep.subr.mxu0 0.0
    %698 = vmatpush1.msra.mxu0 %v73
    %699 = vmatprep.subr.mxu0 0.0
    %700 = vmatpush1.msra.mxu0 %v76
    %701 = vmatprep.subr.mxu0 0.0
    %702 = vmatpush1.msra.mxu0 %v79
    %703 = vmatprep.subr.mxu0 0.0
    %704 = vmatpush1.msra.mxu0 %v82
    %705 = vmatprep.subr.mxu0 0.0
    %706 = vmatpush1.msra.mxu0 %v85
    %707 = vmatprep.subr.mxu0 0.0
    %708 = vmatpush1.msra.mxu0 %v88
    %709 = vmatprep.subr.mxu0 0.0
    %710 = vmatpush1.msra.mxu0 %v91
    %711 = vmatprep.subr.mxu0 0.0
    %712 = vmatpush1.msra.mxu0 %v94
    %713 = vmatprep.subr.mxu0 0.0
    %714 = vmatpush1.msra.mxu0 %v97
    %715 = vmatprep.subr.mxu0 0.0
    %716 = vmatpush1.msra.mxu0 %v100
    %717 = vmatprep.subr.mxu0 0.0
    %718 = vmatpush1.msra.mxu0 %v103
    %719 = vmatprep.subr.mxu0 0.0
    %720 = vmatpush1.msra.mxu0 %v106
    %721 = vmatprep.subr.mxu0 0.0
    %722 = vmatpush1.msra.mxu0 0.0
    %723 = vmatprep.subr.mxu0 0.0
    %724 = vmatpush1.msra.mxu0 0.0
    %725 = vmatprep.subr.mxu0 0.0
    %726 = vmatpush1.msra.mxu0 0.0
    %727 = vmatprep.subr.mxu0 0.0
    %728 = vmatpush1.msra.mxu0 0.0
    %729 = vmatprep.subr.mxu0 0.0
    %730 = vmatpush1.msra.mxu0 0.0
    %731 = vmatprep.subr.mxu0 0.0
    %732 = vmatpush1.msra.mxu0 0.0
    %733 = vmatprep.subr.mxu0 0.0
    %734 = vmatpush1.msra.mxu0 0.0
    %735 = vmatprep.subr.mxu0 0.0
    %736 = vmatpush1.msra.mxu0 0.0
    %737 = vmatprep.subr.mxu0 0.0
    %738 = vmatpush1.msra.mxu0 0.0
    %739 = vmatprep.subr.mxu0 0.0
    %740 = vmatpush1.msra.mxu0 0.0
    %741 = vmatprep.subr.mxu0 0.0
    %742 = vmatpush1.msra.mxu0 0.0
    %743 = vmatprep.subr.mxu0 0.0
    %744 = vmatpush1.msra.mxu0 0.0
    %745 = vmatprep.subr.mxu0 0.0
    %746 = vmatpush1.msra.mxu0 0.0
    %747 = vmatprep.subr.mxu0 0.0
    %748 = vmatpush1.msra.mxu0 0.0
    %749 = vmatprep.subr.mxu0 0.0
    %750 = vmatpush1.msra.mxu0 0.0
    %751 = vmatprep.subr.mxu0 0.0
    %752 = vmatpush1.msra.mxu0 0.0
    %753 = vmatprep.mubr.f32.mxu0 0.0
    %754 = vmatmul.mubr.f32.gmra.mrb[0].mxu0 %v611
    %v755 = vpop.f32.mrb[0].mxu0
    %v756 = vadd.f32 0.0, %v755
    %v757 = vpop.f32.mrb[0].mxu0
    %758 = vdwg.mxu0
    %v759 = vadd.f32 %v615, %v685
    %v760 = vxor.u32 %v759, 2147483648
    %v761 = vmul.f32 %v760, 1.442695
    %v762 = vpow.pop %v761
    %v763 = vadd.f32 %v762, 1.0
    %v764 = vrcp.pop %v763
    %v765 = vmul.f32 1.0, %v764
    %v766 = vadd.f32 %v616, %v687
    %v767 = vxor.u32 %v766, 2147483648
    %v768 = vmul.f32 %v767, 1.442695
    %v769 = vpow.pop %v768
    %v770 = vadd.f32 %v769, 1.0
    %v771 = vrcp.pop %v770
    %v772 = vmul.f32 1.0, %v771
    %v773 = vadd.f32 %v756, %v107
    %v774 = vmul.f32 %v765, %v773
    %v775 = vadd.f32 %v617, %v774
    %v776 = vtanh.pop %v775
    %v777 = vsub.f32 1.0, %v772
    %v778 = vmul.f32 %v777, %v776
    %v779 = vmul.f32 %v772, %v611
    %v780 = vadd.f32 %v778, %v779
    %s781 = scalar_lea.vmem [#allocation9], 24
    %782 = vst [vmem:[%s781] sm:$0xff] %v780
    %s783 = scalar_lea.vmem [#allocation3], 96
    %v784 = vld [vmem:[%s783] sm:$0xff]
    %v785 = vld [vmem:[%s783 + $0x8] sm:$0xff]
    %v786 = vld [vmem:[%s783 + $0x10] sm:$0xff]
    %787 = vmatprep.subr.mxu0 %v60
    %788 = vmatpush1.msra.mxu0 %v59
    %789 = vmatprep.subr.mxu0 %v63
    %790 = vmatpush1.msra.mxu0 %v62
    %791 = vmatprep.subr.mxu0 %v66
    %792 = vmatpush1.msra.mxu0 %v65
    %793 = vmatprep.subr.mxu0 %v69
    %794 = vmatpush1.msra.mxu0 %v68
    %795 = vmatprep.subr.mxu0 %v72
    %796 = vmatpush1.msra.mxu0 %v71
    %797 = vmatprep.subr.mxu0 %v75
    %798 = vmatpush1.msra.mxu0 %v74
    %799 = vmatprep.subr.mxu0 %v78
    %800 = vmatpush1.msra.mxu0 %v77
    %801 = vmatprep.subr.mxu0 %v81
    %802 = vmatpush1.msra.mxu0 %v80
    %803 = vmatprep.subr.mxu0 %v84
    %804 = vmatpush1.msra.mxu0 %v83
    %805 = vmatprep.subr.mxu0 %v87
    %806 = vmatpush1.msra.mxu0 %v86
    %807 = vmatprep.subr.mxu0 %v90
    %808 = vmatpush1.msra.mxu0 %v89
    %809 = vmatprep.subr.mxu0 %v93
    %810 = vmatpush1.msra.mxu0 %v92
    %811 = vmatprep.subr.mxu0 %v96
    %812 = vmatpush1.msra.mxu0 %v95
    %813 = vmatprep.subr.mxu0 %v99
    %814 = vmatpush1.msra.mxu0 %v98
    %815 = vmatprep.subr.mxu0 %v102
    %816 = vmatpush1.msra.mxu0 %v101
    %817 = vmatprep.subr.mxu0 %v105
    %818 = vmatpush1.msra.mxu0 %v104
    %819 = vmatprep.subr.mxu0 0.0
    %820 = vmatpush1.msra.mxu0 0.0
    %821 = vmatprep.subr.mxu0 0.0
    %822 = vmatpush1.msra.mxu0 0.0
    %823 = vmatprep.subr.mxu0 0.0
    %824 = vmatpush1.msra.mxu0 0.0
    %825 = vmatprep.subr.mxu0 0.0
    %826 = vmatpush1.msra.mxu0 0.0
    %827 = vmatprep.subr.mxu0 0.0
    %828 = vmatpush1.msra.mxu0 0.0
    %829 = vmatprep.subr.mxu0 0.0
    %830 = vmatpush1.msra.mxu0 0.0
    %831 = vmatprep.subr.mxu0 0.0
    %832 = vmatpush1.msra.mxu0 0.0
    %833 = vmatprep.subr.mxu0 0.0
    %834 = vmatpush1.msra.mxu0 0.0
    %835 = vmatprep.subr.mxu0 0.0
    %836 = vmatpush1.msra.mxu0 0.0
    %837 = vmatprep.subr.mxu0 0.0
    %838 = vmatpush1.msra.mxu0 0.0
    %839 = vmatprep.subr.mxu0 0.0
    %840 = vmatpush1.msra.mxu0 0.0
    %841 = vmatprep.subr.mxu0 0.0
    %842 = vmatpush1.msra.mxu0 0.0
    %843 = vmatprep.subr.mxu0 0.0
    %844 = vmatpush1.msra.mxu0 0.0
    %845 = vmatprep.subr.mxu0 0.0
    %846 = vmatpush1.msra.mxu0 0.0
    %847 = vmatprep.subr.mxu0 0.0
    %848 = vmatpush1.msra.mxu0 0.0
    %849 = vmatprep.subr.mxu0 0.0
    %850 = vmatpush1.msra.mxu0 0.0
    %851 = vmatprep.mubr.f32.mxu0 0.0
    %852 = vmatmul.mubr.f32.gmra.mrb[0].mxu0 %v780
    %v853 = vpop.f32.mrb[0].mxu0
    %v854 = vadd.f32 0.0, %v853
    %v855 = vpop.f32.mrb[0].mxu0
    %v856 = vadd.f32 0.0, %v855
    %857 = vdwg.mxu0
    %858 = vmatprep.subr.mxu0 0.0
    %859 = vmatpush1.msra.mxu0 %v61
    %860 = vmatprep.subr.mxu0 0.0
    %861 = vmatpush1.msra.mxu0 %v64
    %862 = vmatprep.subr.mxu0 0.0
    %863 = vmatpush1.msra.mxu0 %v67
    %864 = vmatprep.subr.mxu0 0.0
    %865 = vmatpush1.msra.mxu0 %v70
    %866 = vmatprep.subr.mxu0 0.0
    %867 = vmatpush1.msra.mxu0 %v73
    %868 = vmatprep.subr.mxu0 0.0
    %869 = vmatpush1.msra.mxu0 %v76
    %870 = vmatprep.subr.mxu0 0.0
    %871 = vmatpush1.msra.mxu0 %v79
    %872 = vmatprep.subr.mxu0 0.0
    %873 = vmatpush1.msra.mxu0 %v82
    %874 = vmatprep.subr.mxu0 0.0
    %875 = vmatpush1.msra.mxu0 %v85
    %876 = vmatprep.subr.mxu0 0.0
    %877 = vmatpush1.msra.mxu0 %v88
    %878 = vmatprep.subr.mxu0 0.0
    %879 = vmatpush1.msra.mxu0 %v91
    %880 = vmatprep.subr.mxu0 0.0
    %881 = vmatpush1.msra.mxu0 %v94
    %882 = vmatprep.subr.mxu0 0.0
    %883 = vmatpush1.msra.mxu0 %v97
    %884 = vmatprep.subr.mxu0 0.0
    %885 = vmatpush1.msra.mxu0 %v100
    %886 = vmatprep.subr.mxu0 0.0
    %887 = vmatpush1.msra.mxu0 %v103
    %888 = vmatprep.subr.mxu0 0.0
    %889 = vmatpush1.msra.mxu0 %v106
    %890 = vmatprep.subr.mxu0 0.0
    %891 = vmatpush1.msra.mxu0 0.0
    %892 = vmatprep.subr.mxu0 0.0
    %893 = vmatpush1.msra.mxu0 0.0
    %894 = vmatprep.subr.mxu0 0.0
    %895 = vmatpush1.msra.mxu0 0.0
    %896 = vmatprep.subr.mxu0 0.0
    %897 = vmatpush1.msra.mxu0 0.0
    %898 = vmatprep.subr.mxu0 0.0
    %899 = vmatpush1.msra.mxu0 0.0
    %900 = vmatprep.subr.mxu0 0.0
    %901 = vmatpush1.msra.mxu0 0.0
    %902 = vmatprep.subr.mxu0 0.0
    %903 = vmatpush1.msra.mxu0 0.0
    %904 = vmatprep.subr.mxu0 0.0
    %905 = vmatpush1.msra.mxu0 0.0
    %906 = vmatprep.subr.mxu0 0.0
    %907 = vmatpush1.msra.mxu0 0.0
    %908 = vmatprep.subr.mxu0 0.0
    %909 = vmatpush1.msra.mxu0 0.0
    %910 = vmatprep.subr.mxu0 0.0
    %911 = vmatpush1.msra.mxu0 0.0
    %912 = vmatprep.subr.mxu0 0.0
    %913 = vmatpush1.msra.mxu0 0.0
    %914 = vmatprep.subr.mxu0 0.0
    %915 = vmatpush1.msra.mxu0 0.0
    %916 = vmatprep.subr.mxu0 0.0
    %917 = vmatpush1.msra.mxu0 0.0
    %918 = vmatprep.subr.mxu0 0.0
    %919 = vmatpush1.msra.mxu0 0.0
    %920 = vmatprep.subr.mxu0 0.0
    %921 = vmatpush1.msra.mxu0 0.0
    %922 = vmatprep.mubr.f32.mxu0 0.0
    %923 = vmatmul.mubr.f32.gmra.mrb[0].mxu0 %v780
    %v924 = vpop.f32.mrb[0].mxu0
    %v925 = vadd.f32 0.0, %v924
    %v926 = vpop.f32.mrb[0].mxu0
    %927 = vdwg.mxu0
    %v928 = vadd.f32 %v784, %v854
    %v929 = vxor.u32 %v928, 2147483648
    %v930 = vmul.f32 %v929, 1.442695
    %v931 = vpow.pop %v930
    %v932 = vadd.f32 %v931, 1.0
    %v933 = vrcp.pop %v932
    %v934 = vmul.f32 1.0, %v933
    %v935 = vadd.f32 %v785, %v856
    %v936 = vxor.u32 %v935, 2147483648
    %v937 = vmul.f32 %v936, 1.442695
    %v938 = vpow.pop %v937
    %v939 = vadd.f32 %v938, 1.0
    %v940 = vrcp.pop %v939
    %v941 = vmul.f32 1.0, %v940
    %v942 = vadd.f32 %v925, %v107
    %v943 = vmul.f32 %v934, %v942
    %v944 = vadd.f32 %v786, %v943
    %v945 = vtanh.pop %v944
    %v946 = vsub.f32 1.0, %v941
    %v947 = vmul.f32 %v946, %v945
    %v948 = vmul.f32 %v941, %v780
    %v949 = vadd.f32 %v947, %v948
    %s950 = scalar_lea.vmem [#allocation9], 32
    %951 = vst [vmem:[%s950] sm:$0xff] %v949
    %s952 = scalar_lea.vmem [#allocation3], 120
    %v953 = vld [vmem:[%s952] sm:$0xff]
    %v954 = vld [vmem:[%s952 + $0x8] sm:$0xff]
    %v955 = vld [vmem:[%s952 + $0x10] sm:$0xff]
    %956 = vmatprep.subr.mxu0 %v60
    %957 = vmatpush1.msra.mxu0 %v59
    %958 = vmatprep.subr.mxu0 %v63
    %959 = vmatpush1.msra.mxu0 %v62
    %960 = vmatprep.subr.mxu0 %v66
    %961 = vmatpush1.msra.mxu0 %v65
    %962 = vmatprep.subr.mxu0 %v69
    %963 = vmatpush1.msra.mxu0 %v68
    %964 = vmatprep.subr.mxu0 %v72
    %965 = vmatpush1.msra.mxu0 %v71
    %966 = vmatprep.subr.mxu0 %v75
    %967 = vmatpush1.msra.mxu0 %v74
    %968 = vmatprep.subr.mxu0 %v78
    %969 = vmatpush1.msra.mxu0 %v77
    %970 = vmatprep.subr.mxu0 %v81
    %971 = vmatpush1.msra.mxu0 %v80
    %972 = vmatprep.subr.mxu0 %v84
    %973 = vmatpush1.msra.mxu0 %v83
    %974 = vmatprep.subr.mxu0 %v87
    %975 = vmatpush1.msra.mxu0 %v86
    %976 = vmatprep.subr.mxu0 %v90
    %977 = vmatpush1.msra.mxu0 %v89
    %978 = vmatprep.subr.mxu0 %v93
    %979 = vmatpush1.msra.mxu0 %v92
    %980 = vmatprep.subr.mxu0 %v96
    %981 = vmatpush1.msra.mxu0 %v95
    %982 = vmatprep.subr.mxu0 %v99
    %983 = vmatpush1.msra.mxu0 %v98
    %984 = vmatprep.subr.mxu0 %v102
    %985 = vmatpush1.msra.mxu0 %v101
    %986 = vmatprep.subr.mxu0 %v105
    %987 = vmatpush1.msra.mxu0 %v104
    %988 = vmatprep.subr.mxu0 0.0
    %989 = vmatpush1.msra.mxu0 0.0
    %990 = vmatprep.subr.mxu0 0.0
    %991 = vmatpush1.msra.mxu0 0.0
    %992 = vmatprep.subr.mxu0 0.0
    %993 = vmatpush1.msra.mxu0 0.0
    %994 = vmatprep.subr.mxu0 0.0
    %995 = vmatpush1.msra.mxu0 0.0
    %996 = vmatprep.subr.mxu0 0.0
    %997 = vmatpush1.msra.mxu0 0.0
    %998 = vmatprep.subr.mxu0 0.0
    %999 = vmatpush1.msra.mxu0 0.0
    %1000 = vmatprep.subr.mxu0 0.0
    %1001 = vmatpush1.msra.mxu0 0.0
    %1002 = vmatprep.subr.mxu0 0.0
    %1003 = vmatpush1.msra.mxu0 0.0
    %1004 = vmatprep.subr.mxu0 0.0
    %1005 = vmatpush1.msra.mxu0 0.0
    %1006 = vmatprep.subr.mxu0 0.0
    %1007 = vmatpush1.msra.mxu0 0.0
    %1008 = vmatprep.subr.mxu0 0.0
    %1009 = vmatpush1.msra.mxu0 0.0
    %1010 = vmatprep.subr.mxu0 0.0
    %1011 = vmatpush1.msra.mxu0 0.0
    %1012 = vmatprep.subr.mxu0 0.0
    %1013 = vmatpush1.msra.mxu0 0.0
    %1014 = vmatprep.subr.mxu0 0.0
    %1015 = vmatpush1.msra.mxu0 0.0
    %1016 = vmatprep.subr.mxu0 0.0
    %1017 = vmatpush1.msra.mxu0 0.0
    %1018 = vmatprep.subr.mxu0 0.0
    %1019 = vmatpush1.msra.mxu0 0.0
    %1020 = vmatprep.mubr.f32.mxu0 0.0
    %1021 = vmatmul.mubr.f32.gmra.mrb[0].mxu0 %v949
    %v1022 = vpop.f32.mrb[0].mxu0
    %v1023 = vadd.f32 0.0, %v1022
    %v1024 = vpop.f32.mrb[0].mxu0
    %v1025 = vadd.f32 0.0, %v1024
    %1026 = vdwg.mxu0
    %1027 = vmatprep.subr.mxu0 0.0
    %1028 = vmatpush1.msra.mxu0 %v61
    %1029 = vmatprep.subr.mxu0 0.0
    %1030 = vmatpush1.msra.mxu0 %v64
    %1031 = vmatprep.subr.mxu0 0.0
    %1032 = vmatpush1.msra.mxu0 %v67
    %1033 = vmatprep.subr.mxu0 0.0
    %1034 = vmatpush1.msra.mxu0 %v70
    %1035 = vmatprep.subr.mxu0 0.0
    %1036 = vmatpush1.msra.mxu0 %v73
    %1037 = vmatprep.subr.mxu0 0.0
    %1038 = vmatpush1.msra.mxu0 %v76
    %1039 = vmatprep.subr.mxu0 0.0
    %1040 = vmatpush1.msra.mxu0 %v79
    %1041 = vmatprep.subr.mxu0 0.0
    %1042 = vmatpush1.msra.mxu0 %v82
    %1043 = vmatprep.subr.mxu0 0.0
    %1044 = vmatpush1.msra.mxu0 %v85
    %1045 = vmatprep.subr.mxu0 0.0
    %1046 = vmatpush1.msra.mxu0 %v88
    %1047 = vmatprep.subr.mxu0 0.0
    %1048 = vmatpush1.msra.mxu0 %v91
    %1049 = vmatprep.subr.mxu0 0.0
    %1050 = vmatpush1.msra.mxu0 %v94
    %1051 = vmatprep.subr.mxu0 0.0
    %1052 = vmatpush1.msra.mxu0 %v97
    %1053 = vmatprep.subr.mxu0 0.0
    %1054 = vmatpush1.msra.mxu0 %v100
    %1055 = vmatprep.subr.mxu0 0.0
    %1056 = vmatpush1.msra.mxu0 %v103
    %1057 = vmatprep.subr.mxu0 0.0
    %1058 = vmatpush1.msra.mxu0 %v106
    %1059 = vmatprep.subr.mxu0 0.0
    %1060 = vmatpush1.msra.mxu0 0.0
    %1061 = vmatprep.subr.mxu0 0.0
    %1062 = vmatpush1.msra.mxu0 0.0
    %1063 = vmatprep.subr.mxu0 0.0
    %1064 = vmatpush1.msra.mxu0 0.0
    %1065 = vmatprep.subr.mxu0 0.0
    %1066 = vmatpush1.msra.mxu0 0.0
    %1067 = vmatprep.subr.mxu0 0.0
    %1068 = vmatpush1.msra.mxu0 0.0
    %1069 = vmatprep.subr.mxu0 0.0
    %1070 = vmatpush1.msra.mxu0 0.0
    %1071 = vmatprep.subr.mxu0 0.0
    %1072 = vmatpush1.msra.mxu0 0.0
    %1073 = vmatprep.subr.mxu0 0.0
    %1074 = vmatpush1.msra.mxu0 0.0
    %1075 = vmatprep.subr.mxu0 0.0
    %1076 = vmatpush1.msra.mxu0 0.0
    %1077 = vmatprep.subr.mxu0 0.0
    %1078 = vmatpush1.msra.mxu0 0.0
    %1079 = vmatprep.subr.mxu0 0.0
    %1080 = vmatpush1.msra.mxu0 0.0
    %1081 = vmatprep.subr.mxu0 0.0
    %1082 = vmatpush1.msra.mxu0 0.0
    %1083 = vmatprep.subr.mxu0 0.0
    %1084 = vmatpush1.msra.mxu0 0.0
    %1085 = vmatprep.subr.mxu0 0.0
    %1086 = vmatpush1.msra.mxu0 0.0
    %1087 = vmatprep.subr.mxu0 0.0
    %1088 = vmatpush1.msra.mxu0 0.0
    %1089 = vmatprep.subr.mxu0 0.0
    %1090 = vmatpush1.msra.mxu0 0.0
    %1091 = vmatprep.mubr.f32.mxu0 0.0
    %1092 = vmatmul.mubr.f32.gmra.mrb[0].mxu0 %v949
    %v1093 = vpop.f32.mrb[0].mxu0
    %v1094 = vadd.f32 0.0, %v1093
    %v1095 = vpop.f32.mrb[0].mxu0
    %1096 = vdwg.mxu0
    %v1097 = vadd.f32 %v953, %v1023
    %v1098 = vxor.u32 %v1097, 2147483648
    %v1099 = vmul.f32 %v1098, 1.442695
    %v1100 = vpow.pop %v1099
    %v1101 = vadd.f32 %v1100, 1.0
    %v1102 = vrcp.pop %v1101
    %v1103 = vmul.f32 1.0, %v1102
    %v1104 = vadd.f32 %v954, %v1025
    %v1105 = vxor.u32 %v1104, 2147483648
    %v1106 = vmul.f32 %v1105, 1.442695
    %v1107 = vpow.pop %v1106
    %v1108 = vadd.f32 %v1107, 1.0
    %v1109 = vrcp.pop %v1108
    %v1110 = vmul.f32 1.0, %v1109
    %v1111 = vadd.f32 %v1094, %v107
    %v1112 = vmul.f32 %v1103, %v1111
    %v1113 = vadd.f32 %v955, %v1112
    %v1114 = vtanh.pop %v1113
    %v1115 = vsub.f32 1.0, %v1110
    %v1116 = vmul.f32 %v1115, %v1114
    %v1117 = vmul.f32 %v1110, %v949
    %v1118 = vadd.f32 %v1116, %v1117
    %s1119 = scalar_lea.vmem [#allocation9], 40
    %1120 = vst [vmem:[%s1119] sm:$0xff] %v1118
    %s1121 = scalar_lea.vmem [#allocation3], 144
    %v1122 = vld [vmem:[%s1121] sm:$0xff]
    %v1123 = vld [vmem:[%s1121 + $0x8] sm:$0xff]
    %v1124 = vld [vmem:[%s1121 + $0x10] sm:$0xff]
    %1125 = vmatprep.subr.mxu0 %v60
    %1126 = vmatpush1.msra.mxu0 %v59
    %1127 = vmatprep.subr.mxu0 %v63
    %1128 = vmatpush1.msra.mxu0 %v62
    %1129 = vmatprep.subr.mxu0 %v66
    %1130 = vmatpush1.msra.mxu0 %v65
    %1131 = vmatprep.subr.mxu0 %v69
    %1132 = vmatpush1.msra.mxu0 %v68
    %1133 = vmatprep.subr.mxu0 %v72
    %1134 = vmatpush1.msra.mxu0 %v71
    %1135 = vmatprep.subr.mxu0 %v75
    %1136 = vmatpush1.msra.mxu0 %v74
    %1137 = vmatprep.subr.mxu0 %v78
    %1138 = vmatpush1.msra.mxu0 %v77
    %1139 = vmatprep.subr.mxu0 %v81
    %1140 = vmatpush1.msra.mxu0 %v80
    %1141 = vmatprep.subr.mxu0 %v84
    %1142 = vmatpush1.msra.mxu0 %v83
    %1143 = vmatprep.subr.mxu0 %v87
    %1144 = vmatpush1.msra.mxu0 %v86
    %1145 = vmatprep.subr.mxu0 %v90
    %1146 = vmatpush1.msra.mxu0 %v89
    %1147 = vmatprep.subr.mxu0 %v93
    %1148 = vmatpush1.msra.mxu0 %v92
    %1149 = vmatprep.subr.mxu0 %v96
    %1150 = vmatpush1.msra.mxu0 %v95
    %1151 = vmatprep.subr.mxu0 %v99
    %1152 = vmatpush1.msra.mxu0 %v98
    %1153 = vmatprep.subr.mxu0 %v102
    %1154 = vmatpush1.msra.mxu0 %v101
    %1155 = vmatprep.subr.mxu0 %v105
    %1156 = vmatpush1.msra.mxu0 %v104
    %1157 = vmatprep.subr.mxu0 0.0
    %1158 = vmatpush1.msra.mxu0 0.0
    %1159 = vmatprep.subr.mxu0 0.0
    %1160 = vmatpush1.msra.mxu0 0.0
    %1161 = vmatprep.subr.mxu0 0.0
    %1162 = vmatpush1.msra.mxu0 0.0
    %1163 = vmatprep.subr.mxu0 0.0
    %1164 = vmatpush1.msra.mxu0 0.0
    %1165 = vmatprep.subr.mxu0 0.0
    %1166 = vmatpush1.msra.mxu0 0.0
    %1167 = vmatprep.subr.mxu0 0.0
    %1168 = vmatpush1.msra.mxu0 0.0
    %1169 = vmatprep.subr.mxu0 0.0
    %1170 = vmatpush1.msra.mxu0 0.0
    %1171 = vmatprep.subr.mxu0 0.0
    %1172 = vmatpush1.msra.mxu0 0.0
    %1173 = vmatprep.subr.mxu0 0.0
    %1174 = vmatpush1.msra.mxu0 0.0
    %1175 = vmatprep.subr.mxu0 0.0
    %1176 = vmatpush1.msra.mxu0 0.0
    %1177 = vmatprep.subr.mxu0 0.0
    %1178 = vmatpush1.msra.mxu0 0.0
    %1179 = vmatprep.subr.mxu0 0.0
    %1180 = vmatpush1.msra.mxu0 0.0
    %1181 = vmatprep.subr.mxu0 0.0
    %1182 = vmatpush1.msra.mxu0 0.0
    %1183 = vmatprep.subr.mxu0 0.0
    %1184 = vmatpush1.msra.mxu0 0.0
    %1185 = vmatprep.subr.mxu0 0.0
    %1186 = vmatpush1.msra.mxu0 0.0
    %1187 = vmatprep.subr.mxu0 0.0
    %1188 = vmatpush1.msra.mxu0 0.0
    %1189 = vmatprep.mubr.f32.mxu0 0.0
    %1190 = vmatmul.mubr.f32.gmra.mrb[0].mxu0 %v1118
    %v1191 = vpop.f32.mrb[0].mxu0
    %v1192 = vadd.f32 0.0, %v1191
    %v1193 = vpop.f32.mrb[0].mxu0
    %v1194 = vadd.f32 0.0, %v1193
    %1195 = vdwg.mxu0
    %1196 = vmatprep.subr.mxu0 0.0
    %1197 = vmatpush1.msra.mxu0 %v61
    %1198 = vmatprep.subr.mxu0 0.0
    %1199 = vmatpush1.msra.mxu0 %v64
    %1200 = vmatprep.subr.mxu0 0.0
    %1201 = vmatpush1.msra.mxu0 %v67
    %1202 = vmatprep.subr.mxu0 0.0
    %1203 = vmatpush1.msra.mxu0 %v70
    %1204 = vmatprep.subr.mxu0 0.0
    %1205 = vmatpush1.msra.mxu0 %v73
    %1206 = vmatprep.subr.mxu0 0.0
    %1207 = vmatpush1.msra.mxu0 %v76
    %1208 = vmatprep.subr.mxu0 0.0
    %1209 = vmatpush1.msra.mxu0 %v79
    %1210 = vmatprep.subr.mxu0 0.0
    %1211 = vmatpush1.msra.mxu0 %v82
    %1212 = vmatprep.subr.mxu0 0.0
    %1213 = vmatpush1.msra.mxu0 %v85
    %1214 = vmatprep.subr.mxu0 0.0
    %1215 = vmatpush1.msra.mxu0 %v88
    %1216 = vmatprep.subr.mxu0 0.0
    %1217 = vmatpush1.msra.mxu0 %v91
    %1218 = vmatprep.subr.mxu0 0.0
    %1219 = vmatpush1.msra.mxu0 %v94
    %1220 = vmatprep.subr.mxu0 0.0
    %1221 = vmatpush1.msra.mxu0 %v97
    %1222 = vmatprep.subr.mxu0 0.0
    %1223 = vmatpush1.msra.mxu0 %v100
    %1224 = vmatprep.subr.mxu0 0.0
    %1225 = vmatpush1.msra.mxu0 %v103
    %1226 = vmatprep.subr.mxu0 0.0
    %1227 = vmatpush1.msra.mxu0 %v106
    %1228 = vmatprep.subr.mxu0 0.0
    %1229 = vmatpush1.msra.mxu0 0.0
    %1230 = vmatprep.subr.mxu0 0.0
    %1231 = vmatpush1.msra.mxu0 0.0
    %1232 = vmatprep.subr.mxu0 0.0
    %1233 = vmatpush1.msra.mxu0 0.0
    %1234 = vmatprep.subr.mxu0 0.0
    %1235 = vmatpush1.msra.mxu0 0.0
    %1236 = vmatprep.subr.mxu0 0.0
    %1237 = vmatpush1.msra.mxu0 0.0
    %1238 = vmatprep.subr.mxu0 0.0
    %1239 = vmatpush1.msra.mxu0 0.0
    %1240 = vmatprep.subr.mxu0 0.0
    %1241 = vmatpush1.msra.mxu0 0.0
    %1242 = vmatprep.subr.mxu0 0.0
    %1243 = vmatpush1.msra.mxu0 0.0
    %1244 = vmatprep.subr.mxu0 0.0
    %1245 = vmatpush1.msra.mxu0 0.0
    %1246 = vmatprep.subr.mxu0 0.0
    %1247 = vmatpush1.msra.mxu0 0.0
    %1248 = vmatprep.subr.mxu0 0.0
    %1249 = vmatpush1.msra.mxu0 0.0
    %1250 = vmatprep.subr.mxu0 0.0
    %1251 = vmatpush1.msra.mxu0 0.0
    %1252 = vmatprep.subr.mxu0 0.0
    %1253 = vmatpush1.msra.mxu0 0.0
    %1254 = vmatprep.subr.mxu0 0.0
    %1255 = vmatpush1.msra.mxu0 0.0
    %1256 = vmatprep.subr.mxu0 0.0
    %1257 = vmatpush1.msra.mxu0 0.0
    %1258 = vmatprep.subr.mxu0 0.0
    %1259 = vmatpush1.msra.mxu0 0.0
    %1260 = vmatprep.mubr.f32.mxu0 0.0
    %1261 = vmatmul.mubr.f32.gmra.mrb[0].mxu0 %v1118
    %v1262 = vpop.f32.mrb[0].mxu0
    %v1263 = vadd.f32 0.0, %v1262
    %v1264 = vpop.f32.mrb[0].mxu0
    %1265 = vdwg.mxu0
    %v1266 = vadd.f32 %v1122, %v1192
    %v1267 = vxor.u32 %v1266, 2147483648
    %v1268 = vmul.f32 %v1267, 1.442695
    %v1269 = vpow.pop %v1268
    %v1270 = vadd.f32 %v1269, 1.0
    %v1271 = vrcp.pop %v1270
    %v1272 = vmul.f32 1.0, %v1271
    %v1273 = vadd.f32 %v1123, %v1194
    %v1274 = vxor.u32 %v1273, 2147483648
    %v1275 = vmul.f32 %v1274, 1.442695
    %v1276 = vpow.pop %v1275
    %v1277 = vadd.f32 %v1276, 1.0
    %v1278 = vrcp.pop %v1277
    %v1279 = vmul.f32 1.0, %v1278
    %v1280 = vadd.f32 %v1263, %v107
    %v1281 = vmul.f32 %v1272, %v1280
    %v1282 = vadd.f32 %v1124, %v1281
    %v1283 = vtanh.pop %v1282
    %v1284 = vsub.f32 1.0, %v1279
    %v1285 = vmul.f32 %v1284, %v1283
    %v1286 = vmul.f32 %v1279, %v1118
    %v1287 = vadd.f32 %v1285, %v1286
    %s1288 = scalar_lea.vmem [#allocation9], 48
    %1289 = vst [vmem:[%s1288] sm:$0xff] %v1287
    %s1290 = scalar_lea.vmem [#allocation3], 168
    %v1291 = vld [vmem:[%s1290] sm:$0xff]
    %v1292 = vld [vmem:[%s1290 + $0x8] sm:$0xff]
    %v1293 = vld [vmem:[%s1290 + $0x10] sm:$0xff]
    %1294 = vmatprep.subr.mxu0 %v60
    %1295 = vmatpush1.msra.mxu0 %v59
    %1296 = vmatprep.subr.mxu0 %v63
    %1297 = vmatpush1.msra.mxu0 %v62
    %1298 = vmatprep.subr.mxu0 %v66
    %1299 = vmatpush1.msra.mxu0 %v65
    %1300 = vmatprep.subr.mxu0 %v69
    %1301 = vmatpush1.msra.mxu0 %v68
    %1302 = vmatprep.subr.mxu0 %v72
    %1303 = vmatpush1.msra.mxu0 %v71
    %1304 = vmatprep.subr.mxu0 %v75
    %1305 = vmatpush1.msra.mxu0 %v74
    %1306 = vmatprep.subr.mxu0 %v78
    %1307 = vmatpush1.msra.mxu0 %v77
    %1308 = vmatprep.subr.mxu0 %v81
    %1309 = vmatpush1.msra.mxu0 %v80
    %1310 = vmatprep.subr.mxu0 %v84
    %1311 = vmatpush1.msra.mxu0 %v83
    %1312 = vmatprep.subr.mxu0 %v87
    %1313 = vmatpush1.msra.mxu0 %v86
    %1314 = vmatprep.subr.mxu0 %v90
    %1315 = vmatpush1.msra.mxu0 %v89
    %1316 = vmatprep.subr.mxu0 %v93
    %1317 = vmatpush1.msra.mxu0 %v92
    %1318 = vmatprep.subr.mxu0 %v96
    %1319 = vmatpush1.msra.mxu0 %v95
    %1320 = vmatprep.subr.mxu0 %v99
    %1321 = vmatpush1.msra.mxu0 %v98
    %1322 = vmatprep.subr.mxu0 %v102
    %1323 = vmatpush1.msra.mxu0 %v101
    %1324 = vmatprep.subr.mxu0 %v105
    %1325 = vmatpush1.msra.mxu0 %v104
    %1326 = vmatprep.subr.mxu0 0.0
    %1327 = vmatpush1.msra.mxu0 0.0
    %1328 = vmatprep.subr.mxu0 0.0
    %1329 = vmatpush1.msra.mxu0 0.0
    %1330 = vmatprep.subr.mxu0 0.0
    %1331 = vmatpush1.msra.mxu0 0.0
    %1332 = vmatprep.subr.mxu0 0.0
    %1333 = vmatpush1.msra.mxu0 0.0
    %1334 = vmatprep.subr.mxu0 0.0
    %1335 = vmatpush1.msra.mxu0 0.0
    %1336 = vmatprep.subr.mxu0 0.0
    %1337 = vmatpush1.msra.mxu0 0.0
    %1338 = vmatprep.subr.mxu0 0.0
    %1339 = vmatpush1.msra.mxu0 0.0
    %1340 = vmatprep.subr.mxu0 0.0
    %1341 = vmatpush1.msra.mxu0 0.0
    %1342 = vmatprep.subr.mxu0 0.0
    %1343 = vmatpush1.msra.mxu0 0.0
    %1344 = vmatprep.subr.mxu0 0.0
    %1345 = vmatpush1.msra.mxu0 0.0
    %1346 = vmatprep.subr.mxu0 0.0
    %1347 = vmatpush1.msra.mxu0 0.0
    %1348 = vmatprep.subr.mxu0 0.0
    %1349 = vmatpush1.msra.mxu0 0.0
    %1350 = vmatprep.subr.mxu0 0.0
    %1351 = vmatpush1.msra.mxu0 0.0
    %1352 = vmatprep.subr.mxu0 0.0
    %1353 = vmatpush1.msra.mxu0 0.0
    %1354 = vmatprep.subr.mxu0 0.0
    %1355 = vmatpush1.msra.mxu0 0.0
    %1356 = vmatprep.subr.mxu0 0.0
    %1357 = vmatpush1.msra.mxu0 0.0
    %1358 = vmatprep.mubr.f32.mxu0 0.0
    %1359 = vmatmul.mubr.f32.gmra.mrb[0].mxu0 %v1287
    %v1360 = vpop.f32.mrb[0].mxu0
    %v1361 = vadd.f32 0.0, %v1360
    %v1362 = vpop.f32.mrb[0].mxu0
    %v1363 = vadd.f32 0.0, %v1362
    %1364 = vdwg.mxu0
    %1365 = vmatprep.subr.mxu0 0.0
    %1366 = vmatpush1.msra.mxu0 %v61
    %1367 = vmatprep.subr.mxu0 0.0
    %1368 = vmatpush1.msra.mxu0 %v64
    %1369 = vmatprep.subr.mxu0 0.0
    %1370 = vmatpush1.msra.mxu0 %v67
    %1371 = vmatprep.subr.mxu0 0.0
    %1372 = vmatpush1.msra.mxu0 %v70
    %1373 = vmatprep.subr.mxu0 0.0
    %1374 = vmatpush1.msra.mxu0 %v73
    %1375 = vmatprep.subr.mxu0 0.0
    %1376 = vmatpush1.msra.mxu0 %v76
    %1377 = vmatprep.subr.mxu0 0.0
    %1378 = vmatpush1.msra.mxu0 %v79
    %1379 = vmatprep.subr.mxu0 0.0
    %1380 = vmatpush1.msra.mxu0 %v82
    %1381 = vmatprep.subr.mxu0 0.0
    %1382 = vmatpush1.msra.mxu0 %v85
    %1383 = vmatprep.subr.mxu0 0.0
    %1384 = vmatpush1.msra.mxu0 %v88
    %1385 = vmatprep.subr.mxu0 0.0
    %1386 = vmatpush1.msra.mxu0 %v91
    %1387 = vmatprep.subr.mxu0 0.0
    %1388 = vmatpush1.msra.mxu0 %v94
    %1389 = vmatprep.subr.mxu0 0.0
    %1390 = vmatpush1.msra.mxu0 %v97
    %1391 = vmatprep.subr.mxu0 0.0
    %1392 = vmatpush1.msra.mxu0 %v100
    %1393 = vmatprep.subr.mxu0 0.0
    %1394 = vmatpush1.msra.mxu0 %v103
    %1395 = vmatprep.subr.mxu0 0.0
    %1396 = vmatpush1.msra.mxu0 %v106
    %1397 = vmatprep.subr.mxu0 0.0
    %1398 = vmatpush1.msra.mxu0 0.0
    %1399 = vmatprep.subr.mxu0 0.0
    %1400 = vmatpush1.msra.mxu0 0.0
    %1401 = vmatprep.subr.mxu0 0.0
    %1402 = vmatpush1.msra.mxu0 0.0
    %1403 = vmatprep.subr.mxu0 0.0
    %1404 = vmatpush1.msra.mxu0 0.0
    %1405 = vmatprep.subr.mxu0 0.0
    %1406 = vmatpush1.msra.mxu0 0.0
    %1407 = vmatprep.subr.mxu0 0.0
    %1408 = vmatpush1.msra.mxu0 0.0
    %1409 = vmatprep.subr.mxu0 0.0
    %1410 = vmatpush1.msra.mxu0 0.0
    %1411 = vmatprep.subr.mxu0 0.0
    %1412 = vmatpush1.msra.mxu0 0.0
    %1413 = vmatprep.subr.mxu0 0.0
    %1414 = vmatpush1.msra.mxu0 0.0
    %1415 = vmatprep.subr.mxu0 0.0
    %1416 = vmatpush1.msra.mxu0 0.0
    %1417 = vmatprep.subr.mxu0 0.0
    %1418 = vmatpush1.msra.mxu0 0.0
    %1419 = vmatprep.subr.mxu0 0.0
    %1420 = vmatpush1.msra.mxu0 0.0
    %1421 = vmatprep.subr.mxu0 0.0
    %1422 = vmatpush1.msra.mxu0 0.0
    %1423 = vmatprep.subr.mxu0 0.0
    %1424 = vmatpush1.msra.mxu0 0.0
    %1425 = vmatprep.subr.mxu0 0.0
    %1426 = vmatpush1.msra.mxu0 0.0
    %1427 = vmatprep.subr.mxu0 0.0
    %1428 = vmatpush1.msra.mxu0 0.0
    %1429 = vmatprep.mubr.f32.mxu0 0.0
    %1430 = vmatmul.mubr.f32.gmra.mrb[0].mxu0 %v1287
    %v1431 = vpop.f32.mrb[0].mxu0
    %v1432 = vadd.f32 0.0, %v1431
    %v1433 = vpop.f32.mrb[0].mxu0
    %1434 = vdwg.mxu0
    %v1435 = vadd.f32 %v1291, %v1361
    %v1436 = vxor.u32 %v1435, 2147483648
    %v1437 = vmul.f32 %v1436, 1.442695
    %v1438 = vpow.pop %v1437
    %v1439 = vadd.f32 %v1438, 1.0
    %v1440 = vrcp.pop %v1439
    %v1441 = vmul.f32 1.0, %v1440
    %v1442 = vadd.f32 %v1292, %v1363
    %v1443 = vxor.u32 %v1442, 2147483648
    %v1444 = vmul.f32 %v1443, 1.442695
    %v1445 = vpow.pop %v1444
    %v1446 = vadd.f32 %v1445, 1.0
    %v1447 = vrcp.pop %v1446
    %v1448 = vmul.f32 1.0, %v1447
    %v1449 = vadd.f32 %v1432, %v107
    %v1450 = vmul.f32 %v1441, %v1449
    %v1451 = vadd.f32 %v1293, %v1450
    %v1452 = vtanh.pop %v1451
    %v1453 = vsub.f32 1.0, %v1448
    %v1454 = vmul.f32 %v1453, %v1452
    %v1455 = vmul.f32 %v1448, %v1287
    %v1456 = vadd.f32 %v1454, %v1455
    %s1457 = scalar_lea.vmem [#allocation9], 56
    %1458 = vst [vmem:[%s1457] sm:$0xff] %v1456
    %1459 = vst [vmem:[#allocation2] sm:$0xff] %v1456
    // Predicated region
    $region30: #{tpu_custom_call.1} parent=1 // pred_check
      _
    $region31: #{tpu_custom_call.1} parent=1 // pred_check_branch
      %1461 = sbr.rel (0) target = $region33
    $region32: #{tpu_custom_call.1} parent=1 // pred_region
      %s1463 = ssub.s32 1024, 1024
      %1464 = vsyncadd [#allocation5], %s1463
      %s1465 = sshll.u32 [#allocation9], 4
      %s1466 = int_to_ptr.vmem [resolvable:$true] %s1465
      %1471 = dma.vmem_to_hbm [thread:$0]  %s1466, 1024, %s3, [#allocation5], 128, 128, 8
    $region33: #{tpu_custom_call.1} parent=1 // pred_fallthru
      _
    // Predicated region
    $region34: #{tpu_custom_call.1} parent=1 // pred_check
      _
    $region35: #{tpu_custom_call.1} parent=1 // pred_check_branch
      %1473 = sbr.rel (0) target = $region37
    $region36: #{tpu_custom_call.1} parent=1 // pred_region
      %1474 = dma.done [#allocation5], 1024
    $region37: #{tpu_custom_call.1} parent=1 // pred_fallthru
      _
    %1475 = vsyncpa [#allocation4], 1
    %1476 = vsyncpa [#allocation7], 1
    %1477 = vsyncpa [#allocation5], 1

</llo_original>
